<compile_context>
chip_gen: v5e
topology: v5e:2x2
jax: 0.10.0
libtpu: 0.0.40
codegen_flags: <defaults>
</compile_context>

<pallas_src>
import math
import functools

import jax
import jax.numpy as jnp
from jax import lax
from jax.experimental import pallas as pl
from jax.experimental.pallas import tpu as pltpu

BF16 = jnp.bfloat16


# ----------------------------------------------------------------------------
# Fused forward kernel: encoder layer -> n_layers x (bi)GRU -> Linear
# ----------------------------------------------------------------------------
def make_fused_kernel(Bt, S, E, H, n_layers, D):
    DH = D * H                       # per-step hidden width [fwd | bwd]
    G3 = 3 * DH                      # gate columns: [r_fwd r_bwd | z_fwd z_bwd | n_fwd n_bwd]
    scale = 1.0 / math.sqrt(E)

    def layernorm(h, g, b):
        mu = jnp.mean(h, axis=-1, keepdims=True)
        var = jnp.mean((h - mu) ** 2, axis=-1, keepdims=True)
        return (h - mu) * lax.rsqrt(var + 1e-12) * g + b

    def kernel(x_ref, mask_ref,
               wqkv_ref, wo_ref, w1_ref, b1_ref, w2_ref, b2_ref,
               ln1_g_ref, ln1_b_ref, ln2_g_ref, ln2_b_ref,
               *rest):
        gru_refs = rest[:4 * n_layers]            # per layer: wi, wh(block-diag), bx, bhn
        wout_ref = rest[4 * n_layers]
        bout_ref = rest[4 * n_layers + 1]
        out_ref = rest[4 * n_layers + 2]
        seq_ref = rest[4 * n_layers + 3]          # VMEM scratch (S, Bt, DH), time-aligned

        # ---------------- synthetic "BERT" encoder layer (batched over Bt*S rows) ----------------
        xf = x_ref[...].reshape(Bt * S, E)                                     # (Bt*S, E) f32
        qkv = jnp.dot(xf.astype(BF16), wqkv_ref[...],
                      preferred_element_type=jnp.float32)                      # (Bt*S, 3E)
        q = qkv[:, 0:E].reshape(Bt, S, E)
        k = qkv[:, E:2 * E].reshape(Bt, S, E)
        v = qkv[:, 2 * E:3 * E].reshape(Bt, S, E)
        scores = jnp.einsum('bqd,bkd->bqk', q.astype(BF16), k.astype(BF16),
                            preferred_element_type=jnp.float32) * scale        # (Bt, S, S)
        scores = scores + (1.0 - mask_ref[...]) * (-1e9)                       # mask keys only
        m = jnp.max(scores, axis=-1, keepdims=True)
        e = jnp.exp(scores - m)
        # approx reciprocal on the EUP is ~free; ~1e-3 rel-err is fine for this synthetic encoder.
        p = e * pl.reciprocal(jnp.sum(e, axis=-1, keepdims=True), approx=True)
        attn = jnp.einsum('bqk,bkd->bqd', p.astype(BF16), v.astype(BF16),
                          preferred_element_type=jnp.float32)                  # (Bt, S, E)
        proj = jnp.dot(attn.reshape(Bt * S, E).astype(BF16), wo_ref[...],
                       preferred_element_type=jnp.float32)
        h1 = layernorm(xf + proj, ln1_g_ref[...], ln1_b_ref[...])              # (Bt*S, E) f32
        ff = jax.nn.gelu(jnp.dot(h1.astype(BF16), w1_ref[...],
                                 preferred_element_type=jnp.float32) + b1_ref[...])
        enc = layernorm(h1 + jnp.dot(ff.astype(BF16), w2_ref[...],
                                     preferred_element_type=jnp.float32) + b2_ref[...],
                        ln2_g_ref[...], ln2_b_ref[...])                        # (Bt*S, E), rows b*S+t

        # Time-major re-layout (rows t*Bt + b) once, so the recurrence reads contiguous slices.
        if Bt == 1:
            x_tm = enc                                                         # identical ordering
        else:
            x_tm = jnp.transpose(enc.reshape(Bt, S, E), (1, 0, 2)).reshape(S * Bt, E)

        # ---------------- GRU stack: both directions fused, gate-major column layout ----------------
        # PyTorch gate semantics: r = s(xWir+bir + hWhr+bhr), z = s(xWiz+biz + hWhz+bhz),
        #                         n = tanh(xWin+bin + r*(hWhn+bhn)), h' = (1-z)*n + z*h
        if D == 2:
            col = lax.broadcasted_iota(jnp.int32, (1, G3), 1)
            bwd_cols = (col % DH) >= H            # backward-direction columns of every gate block
        else:
            bwd_cols = None

        layer_in = x_tm                           # (S*Bt, In) f32, time-major
        h = jnp.zeros((Bt, DH), jnp.float32)
        for l in range(n_layers):
            wi_ref, wh_ref, bx_ref, bhn_ref = gru_refs[4 * l: 4 * l + 4]
            # Hoisted input-side gates for every time step (r/z biases and b_in folded in).
            xg = (jnp.dot(layer_in.astype(BF16), wi_ref[...],
                          preferred_element_type=jnp.float32) + bx_ref[...])   # (S*Bt, G3) f32
            wh = wh_ref[...]                                                   # (DH, G3) bf16, block-diag
            bhn = bhn_ref[...]                                                 # (1, DH) f32
            h = jnp.zeros((Bt, DH), jnp.float32)                               # cols: [fwd | bwd]
            last = (l == n_layers - 1)
            # TODO(synk): S is tiny here so the recurrence is fully unrolled; for larger S use
            #             lax.fori_loop(..., unroll=2..4) with seq_ref as the per-step store.
            for t in range(S):
                xf_t = xg[t * Bt:(t + 1) * Bt, :]                 # fwd dir consumes time t
                if D == 2:
                    xb_t = xg[(S - 1 - t) * Bt:(S - t) * Bt, :]   # bwd dir consumes time S-1-t
                    xg_t = jnp.where(bwd_cols, xb_t, xf_t)        # one VPU select, no concat
                else:
                    xg_t = xf_t
                hg = jnp.dot(h.astype(BF16), wh,
                             preferred_element_type=jnp.float32)               # (Bt, G3)
                r = jax.nn.sigmoid(xg_t[:, 0:DH] + hg[:, 0:DH])
                z = jax.nn.sigmoid(xg_t[:, DH:2 * DH] + hg[:, DH:2 * DH])
                n = jnp.tanh(xg_t[:, 2 * DH:3 * DH] + r * (hg[:, 2 * DH:3 * DH] + bhn))
                h = (1.0 - z) * n + z * h                                      # (Bt, DH) f32
                if not last:
                    # Sequence output for the next layer, written at the time-aligned row
                    # (so no reversal pass is needed at the layer boundary).
                    seq_ref[t, :, 0:H] = h[:, 0:H]
                    if D == 2:
                        seq_ref[S - 1 - t, :, H:DH] = h[:, H:DH]
            if not last:
                layer_in = seq_ref[...].reshape(S * Bt, DH)                    # already time-major

        # ---------------- classifier: Linear(cat(final fwd hidden, final bwd hidden)) ----------------
        # h already holds [fwd final | bwd final]; nn.Dropout is inference-mode identity (eval()).
        logits = (jnp.dot(h.astype(BF16), wout_ref[...],
                          preferred_element_type=jnp.float32) + bout_ref[...])  # (Bt, out_dim)
        out_ref[...] = logits.reshape(Bt, 1, -1)

    return kernel


# ----------------------------------------------------------------------------
# One-time weight packing (runs ONCE, outside the jitted forward)
# ----------------------------------------------------------------------------
def _pack_gru_layer(dirs, H):
    D = len(dirs)
    DH = D * H
    G3 = 3 * DH
    # Gate-major, direction-minor columns: [r_d0 r_d1 | z_d0 z_d1 | n_d0 n_d1]
    wi = jnp.concatenate(
        [jnp.concatenate([d[name] for d in dirs], axis=1)
         for name in ("wir", "wiz", "win")], axis=1).astype(BF16)          # (In, 3*DH)
    wh = jnp.zeros((DH, G3), jnp.float32)                                   # block-diagonal per dir
    for gi, name in enumerate(("whr", "whz", "whn")):
        for di, d in enumerate(dirs):
            wh = wh.at[di * H:(di + 1) * H,
                       gi * DH + di * H: gi * DH + (di + 1) * H].set(d[name])
    wh = wh.astype(BF16)
    bx = jnp.concatenate(
        [jnp.concatenate([d[name] for d in dirs], axis=1)
         for name in ("br", "bz", "bin")], axis=1)                          # (1, 3*DH) f32
    bhn = jnp.concatenate([d["bhn"] for d in dirs], axis=1)                 # (1, DH) f32
    return wi, wh, bx, bhn


def prepare_params(params):
    """Pre-pack / pre-cast all weights once; outputs feed the jitted forward directly."""
    H = params["gru"][0][0]["whr"].shape[0]
    enc = params["encoder"]
    return dict(
        tok_emb=params["tok_emb"], pos_emb=params["pos_emb"],
        emb_ln_g=params["emb_ln_g"], emb_ln_b=params["emb_ln_b"],
        encoder=dict(
            wqkv=jnp.concatenate([enc["wq"], enc["wk"], enc["wv"]], axis=1).astype(BF16),
            wo=enc["wo"].astype(BF16),
            w1=enc["w1"].astype(BF16), b1=enc["b1"],
            w2=enc["w2"].astype(BF16), b2=enc["b2"],
            ln1_g=enc["ln1_g"], ln1_b=enc["ln1_b"],
            ln2_g=enc["ln2_g"], ln2_b=enc["ln2_b"]),
        gru=[_pack_gru_layer(dirs, H) for dirs in params["gru"]],
        out_w=params["out_w"].astype(BF16), out_b=params["out_b"])


# ----------------------------------------------------------------------------
# Full forward pass (mirrors BERTClassifier.forward)
# ----------------------------------------------------------------------------
@functools.partial(jax.jit, static_argnums=(3,))
def bert_classifier_forward(packed, text, attention_mask, bidirectional):
    B, S = text.shape
    E = packed["tok_emb"].shape[1]
    n_layers = len(packed["gru"])
    D = 2 if bidirectional else 1
    DH = packed["gru"][0][3].shape[1]          # bhn: (1, D*H)
    H = DH // D
    out_dim = packed["out_w"].shape[1]

    # ---- "BERT" embeddings (no-grad in the reference; gather + pos + LN is JAX glue) ----
    emb = packed["tok_emb"][text] + packed["pos_emb"][None, :, :]
    mu = jnp.mean(emb, axis=-1, keepdims=True)
    var = jnp.mean((emb - mu) ** 2, axis=-1, keepdims=True)
    emb = (emb - mu) * lax.rsqrt(var + 1e-12) * packed["emb_ln_g"] + packed["emb_ln_b"]
    mask3 = attention_mask.astype(jnp.float32).reshape(B, 1, S)

    enc = packed["encoder"]
    gru_args = [a for layer in packed["gru"] for a in layer]
    args = (emb, mask3,
            enc["wqkv"], enc["wo"], enc["w1"], enc["b1"], enc["w2"], enc["b2"],
            enc["ln1_g"], enc["ln1_b"], enc["ln2_g"], enc["ln2_b"],
            *gru_args,
            packed["out_w"], packed["out_b"])

    # Grid over batch with "parallel" semantics: uses both TensorCores on v7x, a plain
    # sequential loop on v5e/v6e.  TODO(synk): at real shapes pick a batch tile that is a
    # multiple of 8 instead of 1.
    Bt = 1
    assert B % Bt == 0
    grid = (B // Bt,)

    def bspec(x, batch_tiled):
        shp = x.shape
        if batch_tiled:
            return pl.BlockSpec((Bt,) + shp[1:], lambda b: (b,) + (0,) * (len(shp) - 1))
        return pl.BlockSpec(shp, lambda b: (0,) * len(shp))

    in_specs = [bspec(emb, True), bspec(mask3, True)] + [bspec(a, False) for a in args[2:]]
    out_specs = pl.BlockSpec((Bt, 1, out_dim), lambda b: (b, 0, 0))

    kernel = make_fused_kernel(Bt, S, E, H, n_layers, D)
    out = pl.pallas_call(
        kernel,
        grid=grid,
        out_shape=jax.ShapeDtypeStruct((B, 1, out_dim), jnp.float32),
        in_specs=in_specs,
        out_specs=out_specs,
        scratch_shapes=[pltpu.VMEM((S, Bt, DH), jnp.float32)],
        compiler_params=pltpu.CompilerParams(dimension_semantics=("parallel",)),
    )(*args)
    return out.reshape(B, out_dim)


# ----------------------------------------------------------------------------
# Parameter init (deterministic, synthetic)
# ----------------------------------------------------------------------------
def init_params(key, vocab, S, E, FF, H, n_layers, bidirectional, out_dim):
    keys = iter(jax.random.split(key, 64))

    def nrm(shape, scale=0.02):
        return (scale * jax.random.normal(next(keys), shape)).astype(jnp.float32)

    params = {
        "tok_emb": nrm((vocab, E)),
        "pos_emb": nrm((S, E)),
        "emb_ln_g": jnp.ones((1, E), jnp.float32),
        "emb_ln_b": jnp.zeros((1, E), jnp.float32),
        "encoder": dict(
            wq=nrm((E, E)), wk=nrm((E, E)), wv=nrm((E, E)), wo=nrm((E, E)),
            w1=nrm((E, FF)), b1=jnp.zeros((1, FF), jnp.float32),
            w2=nrm((FF, E)), b2=jnp.zeros((1, E), jnp.float32),
            ln1_g=jnp.ones((1, E), jnp.float32), ln1_b=jnp.zeros((1, E), jnp.float32),
            ln2_g=jnp.ones((1, E), jnp.float32), ln2_b=jnp.zeros((1, E), jnp.float32)),
    }

    num_dirs = 2 if bidirectional else 1
    gru = []
    for l in range(n_layers):
        in_size = E if l == 0 else H * num_dirs
        dirs = []
        for _d in range(num_dirs):
            bound = 1.0 / math.sqrt(H)

            def uni(shape):
                return jax.random.uniform(next(keys), shape, jnp.float32, -bound, bound)

            wih = uni((3 * H, in_size))   # PyTorch layout (3H, In); gate order r, z, n
            whh = uni((3 * H, H))
            bih = uni((3 * H,))
            bhh = uni((3 * H,))
            dirs.append(dict(
                wir=wih[0:H].T, wiz=wih[H:2 * H].T, win=wih[2 * H:3 * H].T,
                whr=whh[0:H].T, whz=whh[H:2 * H].T, whn=whh[2 * H:3 * H].T,
                br=(bih[0:H] + bhh[0:H]).reshape(1, H),
                bz=(bih[H:2 * H] + bhh[H:2 * H]).reshape(1, H),
                bin=bih[2 * H:3 * H].reshape(1, H),
                bhn=bhh[2 * H:3 * H].reshape(1, H)))
        gru.append(dirs)
    params["gru"] = gru
    params["out_w"] = nrm((H * num_dirs, out_dim))
    params["out_b"] = jnp.zeros((1, out_dim), jnp.float32)
    return params


if __name__ == "__main__":
    B, S, E, FF = 2, 8, 32, 64          # E plays the role of bert hidden_size
    VOCAB = 50
    HIDDEN_DIM, OUTPUT_DIM = 16, 3
    N_LAYERS, BIDIRECTIONAL = 2, True

    key = jax.random.PRNGKey(0)
    pkey, tkey = jax.random.split(key)
    params = init_params(pkey, VOCAB, S, E, FF, HIDDEN_DIM, N_LAYERS, BIDIRECTIONAL, OUTPUT_DIM)
    packed = prepare_params(params)     # one-time weight packing (outside the jitted forward)

    text = jax.random.randint(tkey, (B, S), 0, VOCAB, dtype=jnp.int32)
    attention_mask = jnp.array([[1] * S, [1] * 6 + [0] * 2], dtype=jnp.int32)

    logits = bert_classifier_forward(packed, text, attention_mask, BIDIRECTIONAL)
    jax.block_until_ready(logits)
    assert logits.shape == (B, OUTPUT_DIM) and logits.dtype == jnp.float32
    print("KERNEL_OK")
</pallas_src>

<mosaic_0001>
module attributes {stable_mosaic.version = 11 : i64} {
  func.func @kernel(%arg0: i32, %arg1: memref<1x8x32xf32, #tpu.memory_space<vmem>>, %arg2: memref<1x1x8xf32, #tpu.memory_space<vmem>>, %arg3: memref<32x96xbf16, #tpu.memory_space<vmem>>, %arg4: memref<32x32xbf16, #tpu.memory_space<vmem>>, %arg5: memref<32x64xbf16, #tpu.memory_space<vmem>>, %arg6: memref<1x64xf32, #tpu.memory_space<vmem>>, %arg7: memref<64x32xbf16, #tpu.memory_space<vmem>>, %arg8: memref<1x32xf32, #tpu.memory_space<vmem>>, %arg9: memref<1x32xf32, #tpu.memory_space<vmem>>, %arg10: memref<1x32xf32, #tpu.memory_space<vmem>>, %arg11: memref<1x32xf32, #tpu.memory_space<vmem>>, %arg12: memref<1x32xf32, #tpu.memory_space<vmem>>, %arg13: memref<32x96xbf16, #tpu.memory_space<vmem>>, %arg14: memref<32x96xbf16, #tpu.memory_space<vmem>>, %arg15: memref<1x96xf32, #tpu.memory_space<vmem>>, %arg16: memref<1x32xf32, #tpu.memory_space<vmem>>, %arg17: memref<32x96xbf16, #tpu.memory_space<vmem>>, %arg18: memref<32x96xbf16, #tpu.memory_space<vmem>>, %arg19: memref<1x96xf32, #tpu.memory_space<vmem>>, %arg20: memref<1x32xf32, #tpu.memory_space<vmem>>, %arg21: memref<32x3xbf16, #tpu.memory_space<vmem>>, %arg22: memref<1x3xf32, #tpu.memory_space<vmem>>, %arg23: memref<1x1x3xf32, #tpu.memory_space<vmem>>, %arg24: memref<8x1x32xf32, #tpu.memory_space<vmem>>) attributes {dimension_semantics = [#tpu.dimension_semantics<parallel>], iteration_bounds = array<i64: 2>, scalar_prefetch = 0 : i64, scratch_operands = 1 : i64, tpu.core_type = #tpu.core_type<tc>, window_params = [{transform_indices = @transform_0, window_bounds = array<i64: 1, 8, 32>}, {transform_indices = @transform_1, window_bounds = array<i64: 1, 1, 8>}, {pipeline_mode = #tpu.pipeline_mode<synchronous>, transform_indices = @transform_2, window_bounds = array<i64: 32, 96>}, {pipeline_mode = #tpu.pipeline_mode<synchronous>, transform_indices = @transform_3, window_bounds = array<i64: 32, 32>}, {pipeline_mode = #tpu.pipeline_mode<synchronous>, transform_indices = @transform_4, window_bounds = array<i64: 32, 64>}, {pipeline_mode = #tpu.pipeline_mode<synchronous>, transform_indices = @transform_5, window_bounds = array<i64: 1, 64>}, {pipeline_mode = #tpu.pipeline_mode<synchronous>, transform_indices = @transform_6, window_bounds = array<i64: 64, 32>}, {pipeline_mode = #tpu.pipeline_mode<synchronous>, transform_indices = @transform_7, window_bounds = array<i64: 1, 32>}, {pipeline_mode = #tpu.pipeline_mode<synchronous>, transform_indices = @transform_8, window_bounds = array<i64: 1, 32>}, {pipeline_mode = #tpu.pipeline_mode<synchronous>, transform_indices = @transform_9, window_bounds = array<i64: 1, 32>}, {pipeline_mode = #tpu.pipeline_mode<synchronous>, transform_indices = @transform_10, window_bounds = array<i64: 1, 32>}, {pipeline_mode = #tpu.pipeline_mode<synchronous>, transform_indices = @transform_11, window_bounds = array<i64: 1, 32>}, {pipeline_mode = #tpu.pipeline_mode<synchronous>, transform_indices = @transform_12, window_bounds = array<i64: 32, 96>}, {pipeline_mode = #tpu.pipeline_mode<synchronous>, transform_indices = @transform_13, window_bounds = array<i64: 32, 96>}, {pipeline_mode = #tpu.pipeline_mode<synchronous>, transform_indices = @transform_14, window_bounds = array<i64: 1, 96>}, {pipeline_mode = #tpu.pipeline_mode<synchronous>, transform_indices = @transform_15, window_bounds = array<i64: 1, 32>}, {pipeline_mode = #tpu.pipeline_mode<synchronous>, transform_indices = @transform_16, window_bounds = array<i64: 32, 96>}, {pipeline_mode = #tpu.pipeline_mode<synchronous>, transform_indices = @transform_17, window_bounds = array<i64: 32, 96>}, {pipeline_mode = #tpu.pipeline_mode<synchronous>, transform_indices = @transform_18, window_bounds = array<i64: 1, 96>}, {pipeline_mode = #tpu.pipeline_mode<synchronous>, transform_indices = @transform_19, window_bounds = array<i64: 1, 32>}, {pipeline_mode = #tpu.pipeline_mode<synchronous>, transform_indices = @transform_20, window_bounds = array<i64: 32, 3>}, {pipeline_mode = #tpu.pipeline_mode<synchronous>, transform_indices = @transform_21, window_bounds = array<i64: 1, 3>}, {transform_indices = @transform_22, window_bounds = array<i64: 1, 1, 3>}]} {
    %c0 = arith.constant 0 : index
    %c0_0 = arith.constant 0 : index
    %c0_1 = arith.constant 0 : index
    %0 = vector.load %arg1[%c0, %c0_0, %c0_1] : memref<1x8x32xf32, #tpu.memory_space<vmem>>, vector<1x8x32xf32>
    %1 = vector.shape_cast %0 : vector<1x8x32xf32> to vector<8x32xf32>
    %2 = arith.truncf %1 : vector<8x32xf32> to vector<8x32xbf16>
    %c0_2 = arith.constant 0 : index
    %c0_3 = arith.constant 0 : index
    %3 = vector.load %arg3[%c0_2, %c0_3] : memref<32x96xbf16, #tpu.memory_space<vmem>>, vector<32x96xbf16>
    %cst = arith.constant dense<0.000000e+00> : vector<8x96xf32>
    %4 = tpu.matmul %2, %3, %cst {dimension_numbers = #tpu.dot_dimension_numbers<[1], [0], [0], [1], [0, 0, 1, 1], [], []>} : vector<8x32xbf16>, vector<32x96xbf16>, vector<8x96xf32> -> vector<8x96xf32>
    %5 = vector.extract_strided_slice %4 {offsets = [0, 0], sizes = [8, 32], strides = [1, 1]} : vector<8x96xf32> to vector<8x32xf32>
    %6 = vector.shape_cast %5 : vector<8x32xf32> to vector<1x8x32xf32>
    %7 = vector.extract_strided_slice %4 {offsets = [0, 32], sizes = [8, 32], strides = [1, 1]} : vector<8x96xf32> to vector<8x32xf32>
    %8 = vector.shape_cast %7 : vector<8x32xf32> to vector<1x8x32xf32>
    %9 = vector.extract_strided_slice %4 {offsets = [0, 64], sizes = [8, 32], strides = [1, 1]} : vector<8x96xf32> to vector<8x32xf32>
    %10 = vector.shape_cast %9 : vector<8x32xf32> to vector<1x8x32xf32>
    %11 = arith.truncf %6 : vector<1x8x32xf32> to vector<1x8x32xbf16>
    %12 = arith.truncf %8 : vector<1x8x32xf32> to vector<1x8x32xbf16>
    "tpu.trace_start"() <{level = 10 : i32, message = "bqd,bkd->bqk"}> : () -> ()
    %cst_4 = arith.constant dense<0.000000e+00> : vector<1x8x8xf32>
    %13 = tpu.matmul %11, %12, %cst_4 {dimension_numbers = #tpu.dot_dimension_numbers<[2], [2], [1], [1], [0, 0, 0, 1, 1, 1], [0], [0]>} : vector<1x8x32xbf16>, vector<1x8x32xbf16>, vector<1x8x8xf32> -> vector<1x8x8xf32>
    "tpu.trace_stop"() : () -> ()
    %cst_5 = arith.constant 0.176776692 : f32
    %14 = vector.broadcast %cst_5 : f32 to vector<1x8x8xf32>
    %15 = arith.mulf %13, %14 : vector<1x8x8xf32>
    %c0_6 = arith.constant 0 : index
    %c0_7 = arith.constant 0 : index
    %c0_8 = arith.constant 0 : index
    %16 = vector.load %arg2[%c0_6, %c0_7, %c0_8] : memref<1x1x8xf32, #tpu.memory_space<vmem>>, vector<1x1x8xf32>
    %cst_9 = arith.constant 1.000000e+00 : f32
    %17 = vector.broadcast %cst_9 : f32 to vector<1x1x8xf32>
    %18 = arith.subf %17, %16 : vector<1x1x8xf32>
    %cst_10 = arith.constant -1.000000e+09 : f32
    %19 = vector.broadcast %cst_10 : f32 to vector<1x1x8xf32>
    %20 = arith.mulf %18, %19 : vector<1x1x8xf32>
    %21 = vector.broadcast %20 : vector<1x1x8xf32> to vector<1x8x8xf32>
    %22 = arith.addf %15, %21 : vector<1x8x8xf32>
    %cst_11 = arith.constant dense<0xFF800000> : vector<1x8xf32>
    %23 = vector.multi_reduction <maximumf>, %22, %cst_11 [2] : vector<1x8x8xf32> to vector<1x8xf32>
    %24 = vector.shape_cast %23 : vector<1x8xf32> to vector<1x8x1xf32>
    %25 = vector.broadcast %24 : vector<1x8x1xf32> to vector<1x8x8xf32>
    %26 = arith.subf %22, %25 : vector<1x8x8xf32>
    %27 = math.exp %26 : vector<1x8x8xf32>
    %cst_12 = arith.constant dense<0.000000e+00> : vector<1x8xf32>
    %28 = vector.multi_reduction <add>, %27, %cst_12 [2] : vector<1x8x8xf32> to vector<1x8xf32>
    %29 = vector.shape_cast %28 : vector<1x8xf32> to vector<1x8x1xf32>
    %30 = tpu.reciprocal %29 {approx = true} : vector<1x8x1xf32> -> vector<1x8x1xf32>
    %31 = vector.broadcast %30 : vector<1x8x1xf32> to vector<1x8x8xf32>
    %32 = arith.mulf %27, %31 : vector<1x8x8xf32>
    %33 = arith.truncf %32 : vector<1x8x8xf32> to vector<1x8x8xbf16>
    %34 = arith.truncf %10 : vector<1x8x32xf32> to vector<1x8x32xbf16>
    "tpu.trace_start"() <{level = 10 : i32, message = "bqk,bkd->bqd"}> : () -> ()
    %cst_13 = arith.constant dense<0.000000e+00> : vector<1x8x32xf32>
    %35 = tpu.matmul %33, %34, %cst_13 {dimension_numbers = #tpu.dot_dimension_numbers<[2], [1], [1], [2], [0, 0, 0, 1, 1, 2], [0], [0]>} : vector<1x8x8xbf16>, vector<1x8x32xbf16>, vector<1x8x32xf32> -> vector<1x8x32xf32>
    "tpu.trace_stop"() : () -> ()
    %36 = vector.shape_cast %35 : vector<1x8x32xf32> to vector<8x32xf32>
    %37 = arith.truncf %36 : vector<8x32xf32> to vector<8x32xbf16>
    %c0_14 = arith.constant 0 : index
    %c0_15 = arith.constant 0 : index
    %38 = vector.load %arg4[%c0_14, %c0_15] : memref<32x32xbf16, #tpu.memory_space<vmem>>, vector<32x32xbf16>
    %cst_16 = arith.constant dense<0.000000e+00> : vector<8x32xf32>
    %39 = tpu.matmul %37, %38, %cst_16 {dimension_numbers = #tpu.dot_dimension_numbers<[1], [0], [0], [1], [0, 0, 1, 1], [], []>} : vector<8x32xbf16>, vector<32x32xbf16>, vector<8x32xf32> -> vector<8x32xf32>
    %40 = arith.addf %1, %39 : vector<8x32xf32>
    %c0_17 = arith.constant 0 : index
    %c0_18 = arith.constant 0 : index
    %41 = vector.load %arg9[%c0_17, %c0_18] : memref<1x32xf32, #tpu.memory_space<vmem>>, vector<1x32xf32>
    %c0_19 = arith.constant 0 : index
    %c0_20 = arith.constant 0 : index
    %42 = vector.load %arg10[%c0_19, %c0_20] : memref<1x32xf32, #tpu.memory_space<vmem>>, vector<1x32xf32>
    %cst_21 = arith.constant dense<0.000000e+00> : vector<8xf32>
    %43 = vector.multi_reduction <add>, %40, %cst_21 [1] : vector<8x32xf32> to vector<8xf32>
    %44 = vector.shape_cast %43 : vector<8xf32> to vector<8x1xf32>
    %cst_22 = arith.constant 3.200000e+01 : f32
    %45 = vector.broadcast %cst_22 : f32 to vector<8x1xf32>
    %46 = arith.divf %44, %45 : vector<8x1xf32>
    %47 = vector.broadcast %46 : vector<8x1xf32> to vector<8x32xf32>
    %48 = arith.subf %40, %47 : vector<8x32xf32>
    %49 = arith.mulf %48, %48 : vector<8x32xf32>
    %cst_23 = arith.constant dense<0.000000e+00> : vector<8xf32>
    %50 = vector.multi_reduction <add>, %49, %cst_23 [1] : vector<8x32xf32> to vector<8xf32>
    %51 = vector.shape_cast %50 : vector<8xf32> to vector<8x1xf32>
    %cst_24 = arith.constant 3.200000e+01 : f32
    %52 = vector.broadcast %cst_24 : f32 to vector<8x1xf32>
    %53 = arith.divf %51, %52 : vector<8x1xf32>
    %54 = vector.broadcast %46 : vector<8x1xf32> to vector<8x32xf32>
    %55 = arith.subf %40, %54 : vector<8x32xf32>
    %cst_25 = arith.constant 9.99999996E-13 : f32
    %56 = vector.broadcast %cst_25 : f32 to vector<8x1xf32>
    %57 = arith.addf %53, %56 : vector<8x1xf32>
    %58 = math.rsqrt %57 : vector<8x1xf32>
    %59 = vector.broadcast %58 : vector<8x1xf32> to vector<8x32xf32>
    %60 = arith.mulf %55, %59 : vector<8x32xf32>
    %61 = vector.broadcast %41 : vector<1x32xf32> to vector<8x32xf32>
    %62 = arith.mulf %60, %61 : vector<8x32xf32>
    %63 = vector.broadcast %42 : vector<1x32xf32> to vector<8x32xf32>
    %64 = arith.addf %62, %63 : vector<8x32xf32>
    %65 = arith.truncf %64 : vector<8x32xf32> to vector<8x32xbf16>
    %c0_26 = arith.constant 0 : index
    %c0_27 = arith.constant 0 : index
    %66 = vector.load %arg5[%c0_26, %c0_27] : memref<32x64xbf16, #tpu.memory_space<vmem>>, vector<32x64xbf16>
    %cst_28 = arith.constant dense<0.000000e+00> : vector<8x64xf32>
    %67 = tpu.matmul %65, %66, %cst_28 {dimension_numbers = #tpu.dot_dimension_numbers<[1], [0], [0], [1], [0, 0, 1, 1], [], []>} : vector<8x32xbf16>, vector<32x64xbf16>, vector<8x64xf32> -> vector<8x64xf32>
    %c0_29 = arith.constant 0 : index
    %c0_30 = arith.constant 0 : index
    %68 = vector.load %arg6[%c0_29, %c0_30] : memref<1x64xf32, #tpu.memory_space<vmem>>, vector<1x64xf32>
    %69 = vector.broadcast %68 : vector<1x64xf32> to vector<8x64xf32>
    %70 = arith.addf %67, %69 : vector<8x64xf32>
    %71 = arith.mulf %70, %70 : vector<8x64xf32>
    %72 = arith.mulf %70, %71 : vector<8x64xf32>
    %cst_31 = arith.constant 4.471500e-02 : f32
    %73 = vector.broadcast %cst_31 : f32 to vector<8x64xf32>
    %74 = arith.mulf %73, %72 : vector<8x64xf32>
    %75 = arith.addf %70, %74 : vector<8x64xf32>
    %cst_32 = arith.constant 0.797884583 : f32
    %76 = vector.broadcast %cst_32 : f32 to vector<8x64xf32>
    %77 = arith.mulf %76, %75 : vector<8x64xf32>
    %78 = math.tanh %77 : vector<8x64xf32>
    %cst_33 = arith.constant 1.000000e+00 : f32
    %79 = vector.broadcast %cst_33 : f32 to vector<8x64xf32>
    %80 = arith.addf %79, %78 : vector<8x64xf32>
    %cst_34 = arith.constant 5.000000e-01 : f32
    %81 = vector.broadcast %cst_34 : f32 to vector<8x64xf32>
    %82 = arith.mulf %81, %80 : vector<8x64xf32>
    %83 = arith.mulf %70, %82 : vector<8x64xf32>
    %84 = arith.truncf %83 : vector<8x64xf32> to vector<8x64xbf16>
    %c0_35 = arith.constant 0 : index
    %c0_36 = arith.constant 0 : index
    %85 = vector.load %arg7[%c0_35, %c0_36] : memref<64x32xbf16, #tpu.memory_space<vmem>>, vector<64x32xbf16>
    %cst_37 = arith.constant dense<0.000000e+00> : vector<8x32xf32>
    %86 = tpu.matmul %84, %85, %cst_37 {dimension_numbers = #tpu.dot_dimension_numbers<[1], [0], [0], [1], [0, 0, 1, 1], [], []>} : vector<8x64xbf16>, vector<64x32xbf16>, vector<8x32xf32> -> vector<8x32xf32>
    %87 = arith.addf %64, %86 : vector<8x32xf32>
    %c0_38 = arith.constant 0 : index
    %c0_39 = arith.constant 0 : index
    %88 = vector.load %arg8[%c0_38, %c0_39] : memref<1x32xf32, #tpu.memory_space<vmem>>, vector<1x32xf32>
    %89 = vector.broadcast %88 : vector<1x32xf32> to vector<8x32xf32>
    %90 = arith.addf %87, %89 : vector<8x32xf32>
    %c0_40 = arith.constant 0 : index
    %c0_41 = arith.constant 0 : index
    %91 = vector.load %arg11[%c0_40, %c0_41] : memref<1x32xf32, #tpu.memory_space<vmem>>, vector<1x32xf32>
    %c0_42 = arith.constant 0 : index
    %c0_43 = arith.constant 0 : index
    %92 = vector.load %arg12[%c0_42, %c0_43] : memref<1x32xf32, #tpu.memory_space<vmem>>, vector<1x32xf32>
    %cst_44 = arith.constant dense<0.000000e+00> : vector<8xf32>
    %93 = vector.multi_reduction <add>, %90, %cst_44 [1] : vector<8x32xf32> to vector<8xf32>
    %94 = vector.shape_cast %93 : vector<8xf32> to vector<8x1xf32>
    %cst_45 = arith.constant 3.200000e+01 : f32
    %95 = vector.broadcast %cst_45 : f32 to vector<8x1xf32>
    %96 = arith.divf %94, %95 : vector<8x1xf32>
    %97 = vector.broadcast %96 : vector<8x1xf32> to vector<8x32xf32>
    %98 = arith.subf %90, %97 : vector<8x32xf32>
    %99 = arith.mulf %98, %98 : vector<8x32xf32>
    %cst_46 = arith.constant dense<0.000000e+00> : vector<8xf32>
    %100 = vector.multi_reduction <add>, %99, %cst_46 [1] : vector<8x32xf32> to vector<8xf32>
    %101 = vector.shape_cast %100 : vector<8xf32> to vector<8x1xf32>
    %cst_47 = arith.constant 3.200000e+01 : f32
    %102 = vector.broadcast %cst_47 : f32 to vector<8x1xf32>
    %103 = arith.divf %101, %102 : vector<8x1xf32>
    %104 = vector.broadcast %96 : vector<8x1xf32> to vector<8x32xf32>
    %105 = arith.subf %90, %104 : vector<8x32xf32>
    %cst_48 = arith.constant 9.99999996E-13 : f32
    %106 = vector.broadcast %cst_48 : f32 to vector<8x1xf32>
    %107 = arith.addf %103, %106 : vector<8x1xf32>
    %108 = math.rsqrt %107 : vector<8x1xf32>
    %109 = vector.broadcast %108 : vector<8x1xf32> to vector<8x32xf32>
    %110 = arith.mulf %105, %109 : vector<8x32xf32>
    %111 = vector.broadcast %91 : vector<1x32xf32> to vector<8x32xf32>
    %112 = arith.mulf %110, %111 : vector<8x32xf32>
    %113 = vector.broadcast %92 : vector<1x32xf32> to vector<8x32xf32>
    %114 = arith.addf %112, %113 : vector<8x32xf32>
    %115 = tpu.iota {dimensions = array<i32: 1>} : vector<1x96xi32>
    %c32_i32 = arith.constant 32 : i32
    %c0_i32 = arith.constant 0 : i32
    %116 = arith.cmpi eq, %c32_i32, %c0_i32 : i32
    %c1_i32 = arith.constant 1 : i32
    %117 = arith.select %116, %c1_i32, %c32_i32 : i32
    %118 = vector.broadcast %117 : i32 to vector<1x96xi32>
    %119 = arith.remsi %115, %118 : vector<1x96xi32>
    %c0_i32_49 = arith.constant 0 : i32
    %120 = vector.broadcast %c0_i32_49 : i32 to vector<1x96xi32>
    %121 = arith.cmpi ne, %119, %120 : vector<1x96xi32>
    %c0_i32_50 = arith.constant 0 : i32
    %122 = vector.broadcast %c0_i32_50 : i32 to vector<1x96xi32>
    %123 = arith.cmpi slt, %119, %122 : vector<1x96xi32>
    %c0_i32_51 = arith.constant 0 : i32
    %124 = arith.cmpi slt, %117, %c0_i32_51 : i32
    %125 = vector.broadcast %124 : i1 to vector<1x96xi1>
    %126 = vector.broadcast %125 : vector<1x96xi1> to vector<1x96xi1>
    %127 = arith.xori %123, %126 : vector<1x96xi1>
    %128 = arith.andi %127, %121 : vector<1x96xi1>
    %129 = vector.broadcast %117 : i32 to vector<1x96xi32>
    %130 = arith.addi %119, %129 : vector<1x96xi32>
    %131 = arith.select %128, %130, %119 : vector<1x96xi1>, vector<1x96xi32>
    %c16_i32 = arith.constant 16 : i32
    %132 = vector.broadcast %c16_i32 : i32 to vector<1x96xi32>
    %133 = arith.cmpi sge, %131, %132 : vector<1x96xi32>
    %134 = arith.truncf %114 : vector<8x32xf32> to vector<8x32xbf16>
    %c0_52 = arith.constant 0 : index
    %c0_53 = arith.constant 0 : index
    %135 = vector.load %arg13[%c0_52, %c0_53] : memref<32x96xbf16, #tpu.memory_space<vmem>>, vector<32x96xbf16>
    %cst_54 = arith.constant dense<0.000000e+00> : vector<8x96xf32>
    %136 = tpu.matmul %134, %135, %cst_54 {dimension_numbers = #tpu.dot_dimension_numbers<[1], [0], [0], [1], [0, 0, 1, 1], [], []>} : vector<8x32xbf16>, vector<32x96xbf16>, vector<8x96xf32> -> vector<8x96xf32>
    %c0_55 = arith.constant 0 : index
    %c0_56 = arith.constant 0 : index
    %137 = vector.load %arg15[%c0_55, %c0_56] : memref<1x96xf32, #tpu.memory_space<vmem>>, vector<1x96xf32>
    %138 = vector.broadcast %137 : vector<1x96xf32> to vector<8x96xf32>
    %139 = arith.addf %136, %138 : vector<8x96xf32>
    %c0_57 = arith.constant 0 : index
    %c0_58 = arith.constant 0 : index
    %140 = vector.load %arg14[%c0_57, %c0_58] : memref<32x96xbf16, #tpu.memory_space<vmem>>, vector<32x96xbf16>
    %c0_59 = arith.constant 0 : index
    %c0_60 = arith.constant 0 : index
    %141 = vector.load %arg16[%c0_59, %c0_60] : memref<1x32xf32, #tpu.memory_space<vmem>>, vector<1x32xf32>
    %cst_61 = arith.constant 0.000000e+00 : f32
    %142 = vector.broadcast %cst_61 : f32 to vector<1x32xf32>
    %143 = vector.extract_strided_slice %139 {offsets = [0, 0], sizes = [1, 96], strides = [1, 1]} : vector<8x96xf32> to vector<1x96xf32>
    %144 = vector.extract_strided_slice %139 {offsets = [7, 0], sizes = [1, 96], strides = [1, 1]} : vector<8x96xf32> to vector<1x96xf32>
    %145 = arith.select %133, %144, %143 : vector<1x96xi1>, vector<1x96xf32>
    %146 = arith.truncf %142 : vector<1x32xf32> to vector<1x32xbf16>
    %cst_62 = arith.constant dense<0.000000e+00> : vector<1x96xf32>
    %147 = tpu.matmul %146, %140, %cst_62 {dimension_numbers = #tpu.dot_dimension_numbers<[1], [0], [0], [1], [0, 0, 1, 1], [], []>} : vector<1x32xbf16>, vector<32x96xbf16>, vector<1x96xf32> -> vector<1x96xf32>
    %148 = vector.extract_strided_slice %145 {offsets = [0, 0], sizes = [1, 32], strides = [1, 1]} : vector<1x96xf32> to vector<1x32xf32>
    %149 = vector.extract_strided_slice %147 {offsets = [0, 0], sizes = [1, 32], strides = [1, 1]} : vector<1x96xf32> to vector<1x32xf32>
    %150 = arith.addf %148, %149 : vector<1x32xf32>
    %151 = arith.negf %150 : vector<1x32xf32>
    %152 = math.exp %151 : vector<1x32xf32>
    %cst_63 = arith.constant 1.000000e+00 : f32
    %153 = vector.broadcast %cst_63 : f32 to vector<1x32xf32>
    %154 = arith.addf %153, %152 : vector<1x32xf32>
    %155 = arith.divf %153, %154 : vector<1x32xf32>
    %156 = vector.extract_strided_slice %145 {offsets = [0, 32], sizes = [1, 32], strides = [1, 1]} : vector<1x96xf32> to vector<1x32xf32>
    %157 = vector.extract_strided_slice %147 {offsets = [0, 32], sizes = [1, 32], strides = [1, 1]} : vector<1x96xf32> to vector<1x32xf32>
    %158 = arith.addf %156, %157 : vector<1x32xf32>
    %159 = arith.negf %158 : vector<1x32xf32>
    %160 = math.exp %159 : vector<1x32xf32>
    %cst_64 = arith.constant 1.000000e+00 : f32
    %161 = vector.broadcast %cst_64 : f32 to vector<1x32xf32>
    %162 = arith.addf %161, %160 : vector<1x32xf32>
    %163 = arith.divf %161, %162 : vector<1x32xf32>
    %164 = vector.extract_strided_slice %145 {offsets = [0, 64], sizes = [1, 32], strides = [1, 1]} : vector<1x96xf32> to vector<1x32xf32>
    %165 = vector.extract_strided_slice %147 {offsets = [0, 64], sizes = [1, 32], strides = [1, 1]} : vector<1x96xf32> to vector<1x32xf32>
    %166 = arith.addf %165, %141 : vector<1x32xf32>
    %167 = arith.mulf %155, %166 : vector<1x32xf32>
    %168 = arith.addf %164, %167 : vector<1x32xf32>
    %169 = math.tanh %168 : vector<1x32xf32>
    %cst_65 = arith.constant 1.000000e+00 : f32
    %170 = vector.broadcast %cst_65 : f32 to vector<1x32xf32>
    %171 = arith.subf %170, %163 : vector<1x32xf32>
    %172 = arith.mulf %171, %169 : vector<1x32xf32>
    %173 = arith.mulf %163, %142 : vector<1x32xf32>
    %174 = arith.addf %172, %173 : vector<1x32xf32>
    %175 = vector.extract_strided_slice %174 {offsets = [0, 0], sizes = [1, 16], strides = [1, 1]} : vector<1x32xf32> to vector<1x16xf32>
    %c0_66 = arith.constant 0 : index
    %c0_67 = arith.constant 0 : index
    %c0_68 = arith.constant 0 : index
    %176 = vector.load %arg24[%c0_66, %c0_67, %c0_68] : memref<8x1x32xf32, #tpu.memory_space<vmem>>, vector<1x1x16xf32>
    %177 = vector.shape_cast %176 : vector<1x1x16xf32> to vector<1x16xf32>
    %178 = vector.shape_cast %175 : vector<1x16xf32> to vector<1x1x16xf32>
    tpu.vector_store %arg24[%c0_66, %c0_67, %c0_68], %178 {strides = array<i32>} : memref<8x1x32xf32, #tpu.memory_space<vmem>>, vector<1x1x16xf32>,
    %179 = vector.extract_strided_slice %174 {offsets = [0, 16], sizes = [1, 16], strides = [1, 1]} : vector<1x32xf32> to vector<1x16xf32>
    %c7 = arith.constant 7 : index
    %c0_69 = arith.constant 0 : index
    %c16 = arith.constant 16 : index
    %180 = vector.load %arg24[%c7, %c0_69, %c16] : memref<8x1x32xf32, #tpu.memory_space<vmem>>, vector<1x1x16xf32>
    %181 = vector.shape_cast %180 : vector<1x1x16xf32> to vector<1x16xf32>
    %182 = vector.shape_cast %179 : vector<1x16xf32> to vector<1x1x16xf32>
    tpu.vector_store %arg24[%c7, %c0_69, %c16], %182 {strides = array<i32>} : memref<8x1x32xf32, #tpu.memory_space<vmem>>, vector<1x1x16xf32>,
    %183 = vector.extract_strided_slice %139 {offsets = [1, 0], sizes = [1, 96], strides = [1, 1]} : vector<8x96xf32> to vector<1x96xf32>
    %184 = vector.extract_strided_slice %139 {offsets = [6, 0], sizes = [1, 96], strides = [1, 1]} : vector<8x96xf32> to vector<1x96xf32>
    %185 = arith.select %133, %184, %183 : vector<1x96xi1>, vector<1x96xf32>
    %186 = arith.truncf %174 : vector<1x32xf32> to vector<1x32xbf16>
    %cst_70 = arith.constant dense<0.000000e+00> : vector<1x96xf32>
    %187 = tpu.matmul %186, %140, %cst_70 {dimension_numbers = #tpu.dot_dimension_numbers<[1], [0], [0], [1], [0, 0, 1, 1], [], []>} : vector<1x32xbf16>, vector<32x96xbf16>, vector<1x96xf32> -> vector<1x96xf32>
    %188 = vector.extract_strided_slice %185 {offsets = [0, 0], sizes = [1, 32], strides = [1, 1]} : vector<1x96xf32> to vector<1x32xf32>
    %189 = vector.extract_strided_slice %187 {offsets = [0, 0], sizes = [1, 32], strides = [1, 1]} : vector<1x96xf32> to vector<1x32xf32>
    %190 = arith.addf %188, %189 : vector<1x32xf32>
    %191 = arith.negf %190 : vector<1x32xf32>
    %192 = math.exp %191 : vector<1x32xf32>
    %cst_71 = arith.constant 1.000000e+00 : f32
    %193 = vector.broadcast %cst_71 : f32 to vector<1x32xf32>
    %194 = arith.addf %193, %192 : vector<1x32xf32>
    %195 = arith.divf %193, %194 : vector<1x32xf32>
    %196 = vector.extract_strided_slice %185 {offsets = [0, 32], sizes = [1, 32], strides = [1, 1]} : vector<1x96xf32> to vector<1x32xf32>
    %197 = vector.extract_strided_slice %187 {offsets = [0, 32], sizes = [1, 32], strides = [1, 1]} : vector<1x96xf32> to vector<1x32xf32>
    %198 = arith.addf %196, %197 : vector<1x32xf32>
    %199 = arith.negf %198 : vector<1x32xf32>
    %200 = math.exp %199 : vector<1x32xf32>
    %cst_72 = arith.constant 1.000000e+00 : f32
    %201 = vector.broadcast %cst_72 : f32 to vector<1x32xf32>
    %202 = arith.addf %201, %200 : vector<1x32xf32>
    %203 = arith.divf %201, %202 : vector<1x32xf32>
    %204 = vector.extract_strided_slice %185 {offsets = [0, 64], sizes = [1, 32], strides = [1, 1]} : vector<1x96xf32> to vector<1x32xf32>
    %205 = vector.extract_strided_slice %187 {offsets = [0, 64], sizes = [1, 32], strides = [1, 1]} : vector<1x96xf32> to vector<1x32xf32>
    %206 = arith.addf %205, %141 : vector<1x32xf32>
    %207 = arith.mulf %195, %206 : vector<1x32xf32>
    %208 = arith.addf %204, %207 : vector<1x32xf32>
    %209 = math.tanh %208 : vector<1x32xf32>
    %cst_73 = arith.constant 1.000000e+00 : f32
    %210 = vector.broadcast %cst_73 : f32 to vector<1x32xf32>
    %211 = arith.subf %210, %203 : vector<1x32xf32>
    %212 = arith.mulf %211, %209 : vector<1x32xf32>
    %213 = arith.mulf %203, %174 : vector<1x32xf32>
    %214 = arith.addf %212, %213 : vector<1x32xf32>
    %215 = vector.extract_strided_slice %214 {offsets = [0, 0], sizes = [1, 16], strides = [1, 1]} : vector<1x32xf32> to vector<1x16xf32>
    %c1 = arith.constant 1 : index
    %c0_74 = arith.constant 0 : index
    %c0_75 = arith.constant 0 : index
    %216 = vector.load %arg24[%c1, %c0_74, %c0_75] : memref<8x1x32xf32, #tpu.memory_space<vmem>>, vector<1x1x16xf32>
    %217 = vector.shape_cast %216 : vector<1x1x16xf32> to vector<1x16xf32>
    %218 = vector.shape_cast %215 : vector<1x16xf32> to vector<1x1x16xf32>
    tpu.vector_store %arg24[%c1, %c0_74, %c0_75], %218 {strides = array<i32>} : memref<8x1x32xf32, #tpu.memory_space<vmem>>, vector<1x1x16xf32>,
    %219 = vector.extract_strided_slice %214 {offsets = [0, 16], sizes = [1, 16], strides = [1, 1]} : vector<1x32xf32> to vector<1x16xf32>
    %c6 = arith.constant 6 : index
    %c0_76 = arith.constant 0 : index
    %c16_77 = arith.constant 16 : index
    %220 = vector.load %arg24[%c6, %c0_76, %c16_77] : memref<8x1x32xf32, #tpu.memory_space<vmem>>, vector<1x1x16xf32>
    %221 = vector.shape_cast %220 : vector<1x1x16xf32> to vector<1x16xf32>
    %222 = vector.shape_cast %219 : vector<1x16xf32> to vector<1x1x16xf32>
    tpu.vector_store %arg24[%c6, %c0_76, %c16_77], %222 {strides = array<i32>} : memref<8x1x32xf32, #tpu.memory_space<vmem>>, vector<1x1x16xf32>,
    %223 = vector.extract_strided_slice %139 {offsets = [2, 0], sizes = [1, 96], strides = [1, 1]} : vector<8x96xf32> to vector<1x96xf32>
    %224 = vector.extract_strided_slice %139 {offsets = [5, 0], sizes = [1, 96], strides = [1, 1]} : vector<8x96xf32> to vector<1x96xf32>
    %225 = arith.select %133, %224, %223 : vector<1x96xi1>, vector<1x96xf32>
    %226 = arith.truncf %214 : vector<1x32xf32> to vector<1x32xbf16>
    %cst_78 = arith.constant dense<0.000000e+00> : vector<1x96xf32>
    %227 = tpu.matmul %226, %140, %cst_78 {dimension_numbers = #tpu.dot_dimension_numbers<[1], [0], [0], [1], [0, 0, 1, 1], [], []>} : vector<1x32xbf16>, vector<32x96xbf16>, vector<1x96xf32> -> vector<1x96xf32>
    %228 = vector.extract_strided_slice %225 {offsets = [0, 0], sizes = [1, 32], strides = [1, 1]} : vector<1x96xf32> to vector<1x32xf32>
    %229 = vector.extract_strided_slice %227 {offsets = [0, 0], sizes = [1, 32], strides = [1, 1]} : vector<1x96xf32> to vector<1x32xf32>
    %230 = arith.addf %228, %229 : vector<1x32xf32>
    %231 = arith.negf %230 : vector<1x32xf32>
    %232 = math.exp %231 : vector<1x32xf32>
    %cst_79 = arith.constant 1.000000e+00 : f32
    %233 = vector.broadcast %cst_79 : f32 to vector<1x32xf32>
    %234 = arith.addf %233, %232 : vector<1x32xf32>
    %235 = arith.divf %233, %234 : vector<1x32xf32>
    %236 = vector.extract_strided_slice %225 {offsets = [0, 32], sizes = [1, 32], strides = [1, 1]} : vector<1x96xf32> to vector<1x32xf32>
    %237 = vector.extract_strided_slice %227 {offsets = [0, 32], sizes = [1, 32], strides = [1, 1]} : vector<1x96xf32> to vector<1x32xf32>
    %238 = arith.addf %236, %237 : vector<1x32xf32>
    %239 = arith.negf %238 : vector<1x32xf32>
    %240 = math.exp %239 : vector<1x32xf32>
    %cst_80 = arith.constant 1.000000e+00 : f32
    %241 = vector.broadcast %cst_80 : f32 to vector<1x32xf32>
    %242 = arith.addf %241, %240 : vector<1x32xf32>
    %243 = arith.divf %241, %242 : vector<1x32xf32>
    %244 = vector.extract_strided_slice %225 {offsets = [0, 64], sizes = [1, 32], strides = [1, 1]} : vector<1x96xf32> to vector<1x32xf32>
    %245 = vector.extract_strided_slice %227 {offsets = [0, 64], sizes = [1, 32], strides = [1, 1]} : vector<1x96xf32> to vector<1x32xf32>
    %246 = arith.addf %245, %141 : vector<1x32xf32>
    %247 = arith.mulf %235, %246 : vector<1x32xf32>
    %248 = arith.addf %244, %247 : vector<1x32xf32>
    %249 = math.tanh %248 : vector<1x32xf32>
    %cst_81 = arith.constant 1.000000e+00 : f32
    %250 = vector.broadcast %cst_81 : f32 to vector<1x32xf32>
    %251 = arith.subf %250, %243 : vector<1x32xf32>
    %252 = arith.mulf %251, %249 : vector<1x32xf32>
    %253 = arith.mulf %243, %214 : vector<1x32xf32>
    %254 = arith.addf %252, %253 : vector<1x32xf32>
    %255 = vector.extract_strided_slice %254 {offsets = [0, 0], sizes = [1, 16], strides = [1, 1]} : vector<1x32xf32> to vector<1x16xf32>
    %c2 = arith.constant 2 : index
    %c0_82 = arith.constant 0 : index
    %c0_83 = arith.constant 0 : index
    %256 = vector.load %arg24[%c2, %c0_82, %c0_83] : memref<8x1x32xf32, #tpu.memory_space<vmem>>, vector<1x1x16xf32>
    %257 = vector.shape_cast %256 : vector<1x1x16xf32> to vector<1x16xf32>
    %258 = vector.shape_cast %255 : vector<1x16xf32> to vector<1x1x16xf32>
    tpu.vector_store %arg24[%c2, %c0_82, %c0_83], %258 {strides = array<i32>} : memref<8x1x32xf32, #tpu.memory_space<vmem>>, vector<1x1x16xf32>,
    %259 = vector.extract_strided_slice %254 {offsets = [0, 16], sizes = [1, 16], strides = [1, 1]} : vector<1x32xf32> to vector<1x16xf32>
    %c5 = arith.constant 5 : index
    %c0_84 = arith.constant 0 : index
    %c16_85 = arith.constant 16 : index
    %260 = vector.load %arg24[%c5, %c0_84, %c16_85] : memref<8x1x32xf32, #tpu.memory_space<vmem>>, vector<1x1x16xf32>
    %261 = vector.shape_cast %260 : vector<1x1x16xf32> to vector<1x16xf32>
    %262 = vector.shape_cast %259 : vector<1x16xf32> to vector<1x1x16xf32>
    tpu.vector_store %arg24[%c5, %c0_84, %c16_85], %262 {strides = array<i32>} : memref<8x1x32xf32, #tpu.memory_space<vmem>>, vector<1x1x16xf32>,
    %263 = vector.extract_strided_slice %139 {offsets = [3, 0], sizes = [1, 96], strides = [1, 1]} : vector<8x96xf32> to vector<1x96xf32>
    %264 = vector.extract_strided_slice %139 {offsets = [4, 0], sizes = [1, 96], strides = [1, 1]} : vector<8x96xf32> to vector<1x96xf32>
    %265 = arith.select %133, %264, %263 : vector<1x96xi1>, vector<1x96xf32>
    %266 = arith.truncf %254 : vector<1x32xf32> to vector<1x32xbf16>
    %cst_86 = arith.constant dense<0.000000e+00> : vector<1x96xf32>
    %267 = tpu.matmul %266, %140, %cst_86 {dimension_numbers = #tpu.dot_dimension_numbers<[1], [0], [0], [1], [0, 0, 1, 1], [], []>} : vector<1x32xbf16>, vector<32x96xbf16>, vector<1x96xf32> -> vector<1x96xf32>
    %268 = vector.extract_strided_slice %265 {offsets = [0, 0], sizes = [1, 32], strides = [1, 1]} : vector<1x96xf32> to vector<1x32xf32>
    %269 = vector.extract_strided_slice %267 {offsets = [0, 0], sizes = [1, 32], strides = [1, 1]} : vector<1x96xf32> to vector<1x32xf32>
    %270 = arith.addf %268, %269 : vector<1x32xf32>
    %271 = arith.negf %270 : vector<1x32xf32>
    %272 = math.exp %271 : vector<1x32xf32>
    %cst_87 = arith.constant 1.000000e+00 : f32
    %273 = vector.broadcast %cst_87 : f32 to vector<1x32xf32>
    %274 = arith.addf %273, %272 : vector<1x32xf32>
    %275 = arith.divf %273, %274 : vector<1x32xf32>
    %276 = vector.extract_strided_slice %265 {offsets = [0, 32], sizes = [1, 32], strides = [1, 1]} : vector<1x96xf32> to vector<1x32xf32>
    %277 = vector.extract_strided_slice %267 {offsets = [0, 32], sizes = [1, 32], strides = [1, 1]} : vector<1x96xf32> to vector<1x32xf32>
    %278 = arith.addf %276, %277 : vector<1x32xf32>
    %279 = arith.negf %278 : vector<1x32xf32>
    %280 = math.exp %279 : vector<1x32xf32>
    %cst_88 = arith.constant 1.000000e+00 : f32
    %281 = vector.broadcast %cst_88 : f32 to vector<1x32xf32>
    %282 = arith.addf %281, %280 : vector<1x32xf32>
    %283 = arith.divf %281, %282 : vector<1x32xf32>
    %284 = vector.extract_strided_slice %265 {offsets = [0, 64], sizes = [1, 32], strides = [1, 1]} : vector<1x96xf32> to vector<1x32xf32>
    %285 = vector.extract_strided_slice %267 {offsets = [0, 64], sizes = [1, 32], strides = [1, 1]} : vector<1x96xf32> to vector<1x32xf32>
    %286 = arith.addf %285, %141 : vector<1x32xf32>
    %287 = arith.mulf %275, %286 : vector<1x32xf32>
    %288 = arith.addf %284, %287 : vector<1x32xf32>
    %289 = math.tanh %288 : vector<1x32xf32>
    %cst_89 = arith.constant 1.000000e+00 : f32
    %290 = vector.broadcast %cst_89 : f32 to vector<1x32xf32>
    %291 = arith.subf %290, %283 : vector<1x32xf32>
    %292 = arith.mulf %291, %289 : vector<1x32xf32>
    %293 = arith.mulf %283, %254 : vector<1x32xf32>
    %294 = arith.addf %292, %293 : vector<1x32xf32>
    %295 = vector.extract_strided_slice %294 {offsets = [0, 0], sizes = [1, 16], strides = [1, 1]} : vector<1x32xf32> to vector<1x16xf32>
    %c3 = arith.constant 3 : index
    %c0_90 = arith.constant 0 : index
    %c0_91 = arith.constant 0 : index
    %296 = vector.load %arg24[%c3, %c0_90, %c0_91] : memref<8x1x32xf32, #tpu.memory_space<vmem>>, vector<1x1x16xf32>
    %297 = vector.shape_cast %296 : vector<1x1x16xf32> to vector<1x16xf32>
    %298 = vector.shape_cast %295 : vector<1x16xf32> to vector<1x1x16xf32>
    tpu.vector_store %arg24[%c3, %c0_90, %c0_91], %298 {strides = array<i32>} : memref<8x1x32xf32, #tpu.memory_space<vmem>>, vector<1x1x16xf32>,
    %299 = vector.extract_strided_slice %294 {offsets = [0, 16], sizes = [1, 16], strides = [1, 1]} : vector<1x32xf32> to vector<1x16xf32>
    %c4 = arith.constant 4 : index
    %c0_92 = arith.constant 0 : index
    %c16_93 = arith.constant 16 : index
    %300 = vector.load %arg24[%c4, %c0_92, %c16_93] : memref<8x1x32xf32, #tpu.memory_space<vmem>>, vector<1x1x16xf32>
    %301 = vector.shape_cast %300 : vector<1x1x16xf32> to vector<1x16xf32>
    %302 = vector.shape_cast %299 : vector<1x16xf32> to vector<1x1x16xf32>
    tpu.vector_store %arg24[%c4, %c0_92, %c16_93], %302 {strides = array<i32>} : memref<8x1x32xf32, #tpu.memory_space<vmem>>, vector<1x1x16xf32>,
    %303 = vector.extract_strided_slice %139 {offsets = [4, 0], sizes = [1, 96], strides = [1, 1]} : vector<8x96xf32> to vector<1x96xf32>
    %304 = vector.extract_strided_slice %139 {offsets = [3, 0], sizes = [1, 96], strides = [1, 1]} : vector<8x96xf32> to vector<1x96xf32>
    %305 = arith.select %133, %304, %303 : vector<1x96xi1>, vector<1x96xf32>
    %306 = arith.truncf %294 : vector<1x32xf32> to vector<1x32xbf16>
    %cst_94 = arith.constant dense<0.000000e+00> : vector<1x96xf32>
    %307 = tpu.matmul %306, %140, %cst_94 {dimension_numbers = #tpu.dot_dimension_numbers<[1], [0], [0], [1], [0, 0, 1, 1], [], []>} : vector<1x32xbf16>, vector<32x96xbf16>, vector<1x96xf32> -> vector<1x96xf32>
    %308 = vector.extract_strided_slice %305 {offsets = [0, 0], sizes = [1, 32], strides = [1, 1]} : vector<1x96xf32> to vector<1x32xf32>
    %309 = vector.extract_strided_slice %307 {offsets = [0, 0], sizes = [1, 32], strides = [1, 1]} : vector<1x96xf32> to vector<1x32xf32>
    %310 = arith.addf %308, %309 : vector<1x32xf32>
    %311 = arith.negf %310 : vector<1x32xf32>
    %312 = math.exp %311 : vector<1x32xf32>
    %cst_95 = arith.constant 1.000000e+00 : f32
    %313 = vector.broadcast %cst_95 : f32 to vector<1x32xf32>
    %314 = arith.addf %313, %312 : vector<1x32xf32>
    %315 = arith.divf %313, %314 : vector<1x32xf32>
    %316 = vector.extract_strided_slice %305 {offsets = [0, 32], sizes = [1, 32], strides = [1, 1]} : vector<1x96xf32> to vector<1x32xf32>
    %317 = vector.extract_strided_slice %307 {offsets = [0, 32], sizes = [1, 32], strides = [1, 1]} : vector<1x96xf32> to vector<1x32xf32>
    %318 = arith.addf %316, %317 : vector<1x32xf32>
    %319 = arith.negf %318 : vector<1x32xf32>
    %320 = math.exp %319 : vector<1x32xf32>
    %cst_96 = arith.constant 1.000000e+00 : f32
    %321 = vector.broadcast %cst_96 : f32 to vector<1x32xf32>
    %322 = arith.addf %321, %320 : vector<1x32xf32>
    %323 = arith.divf %321, %322 : vector<1x32xf32>
    %324 = vector.extract_strided_slice %305 {offsets = [0, 64], sizes = [1, 32], strides = [1, 1]} : vector<1x96xf32> to vector<1x32xf32>
    %325 = vector.extract_strided_slice %307 {offsets = [0, 64], sizes = [1, 32], strides = [1, 1]} : vector<1x96xf32> to vector<1x32xf32>
    %326 = arith.addf %325, %141 : vector<1x32xf32>
    %327 = arith.mulf %315, %326 : vector<1x32xf32>
    %328 = arith.addf %324, %327 : vector<1x32xf32>
    %329 = math.tanh %328 : vector<1x32xf32>
    %cst_97 = arith.constant 1.000000e+00 : f32
    %330 = vector.broadcast %cst_97 : f32 to vector<1x32xf32>
    %331 = arith.subf %330, %323 : vector<1x32xf32>
    %332 = arith.mulf %331, %329 : vector<1x32xf32>
    %333 = arith.mulf %323, %294 : vector<1x32xf32>
    %334 = arith.addf %332, %333 : vector<1x32xf32>
    %335 = vector.extract_strided_slice %334 {offsets = [0, 0], sizes = [1, 16], strides = [1, 1]} : vector<1x32xf32> to vector<1x16xf32>
    %c4_98 = arith.constant 4 : index
    %c0_99 = arith.constant 0 : index
    %c0_100 = arith.constant 0 : index
    %336 = vector.load %arg24[%c4_98, %c0_99, %c0_100] : memref<8x1x32xf32, #tpu.memory_space<vmem>>, vector<1x1x16xf32>
    %337 = vector.shape_cast %336 : vector<1x1x16xf32> to vector<1x16xf32>
    %338 = vector.shape_cast %335 : vector<1x16xf32> to vector<1x1x16xf32>
    tpu.vector_store %arg24[%c4_98, %c0_99, %c0_100], %338 {strides = array<i32>} : memref<8x1x32xf32, #tpu.memory_space<vmem>>, vector<1x1x16xf32>,
    %339 = vector.extract_strided_slice %334 {offsets = [0, 16], sizes = [1, 16], strides = [1, 1]} : vector<1x32xf32> to vector<1x16xf32>
    %c3_101 = arith.constant 3 : index
    %c0_102 = arith.constant 0 : index
    %c16_103 = arith.constant 16 : index
    %340 = vector.load %arg24[%c3_101, %c0_102, %c16_103] : memref<8x1x32xf32, #tpu.memory_space<vmem>>, vector<1x1x16xf32>
    %341 = vector.shape_cast %340 : vector<1x1x16xf32> to vector<1x16xf32>
    %342 = vector.shape_cast %339 : vector<1x16xf32> to vector<1x1x16xf32>
    tpu.vector_store %arg24[%c3_101, %c0_102, %c16_103], %342 {strides = array<i32>} : memref<8x1x32xf32, #tpu.memory_space<vmem>>, vector<1x1x16xf32>,
    %343 = vector.extract_strided_slice %139 {offsets = [5, 0], sizes = [1, 96], strides = [1, 1]} : vector<8x96xf32> to vector<1x96xf32>
    %344 = vector.extract_strided_slice %139 {offsets = [2, 0], sizes = [1, 96], strides = [1, 1]} : vector<8x96xf32> to vector<1x96xf32>
    %345 = arith.select %133, %344, %343 : vector<1x96xi1>, vector<1x96xf32>
    %346 = arith.truncf %334 : vector<1x32xf32> to vector<1x32xbf16>
    %cst_104 = arith.constant dense<0.000000e+00> : vector<1x96xf32>
    %347 = tpu.matmul %346, %140, %cst_104 {dimension_numbers = #tpu.dot_dimension_numbers<[1], [0], [0], [1], [0, 0, 1, 1], [], []>} : vector<1x32xbf16>, vector<32x96xbf16>, vector<1x96xf32> -> vector<1x96xf32>
    %348 = vector.extract_strided_slice %345 {offsets = [0, 0], sizes = [1, 32], strides = [1, 1]} : vector<1x96xf32> to vector<1x32xf32>
    %349 = vector.extract_strided_slice %347 {offsets = [0, 0], sizes = [1, 32], strides = [1, 1]} : vector<1x96xf32> to vector<1x32xf32>
    %350 = arith.addf %348, %349 : vector<1x32xf32>
    %351 = arith.negf %350 : vector<1x32xf32>
    %352 = math.exp %351 : vector<1x32xf32>
    %cst_105 = arith.constant 1.000000e+00 : f32
    %353 = vector.broadcast %cst_105 : f32 to vector<1x32xf32>
    %354 = arith.addf %353, %352 : vector<1x32xf32>
    %355 = arith.divf %353, %354 : vector<1x32xf32>
    %356 = vector.extract_strided_slice %345 {offsets = [0, 32], sizes = [1, 32], strides = [1, 1]} : vector<1x96xf32> to vector<1x32xf32>
    %357 = vector.extract_strided_slice %347 {offsets = [0, 32], sizes = [1, 32], strides = [1, 1]} : vector<1x96xf32> to vector<1x32xf32>
    %358 = arith.addf %356, %357 : vector<1x32xf32>
    %359 = arith.negf %358 : vector<1x32xf32>
    %360 = math.exp %359 : vector<1x32xf32>
    %cst_106 = arith.constant 1.000000e+00 : f32
    %361 = vector.broadcast %cst_106 : f32 to vector<1x32xf32>
    %362 = arith.addf %361, %360 : vector<1x32xf32>
    %363 = arith.divf %361, %362 : vector<1x32xf32>
    %364 = vector.extract_strided_slice %345 {offsets = [0, 64], sizes = [1, 32], strides = [1, 1]} : vector<1x96xf32> to vector<1x32xf32>
    %365 = vector.extract_strided_slice %347 {offsets = [0, 64], sizes = [1, 32], strides = [1, 1]} : vector<1x96xf32> to vector<1x32xf32>
    %366 = arith.addf %365, %141 : vector<1x32xf32>
    %367 = arith.mulf %355, %366 : vector<1x32xf32>
    %368 = arith.addf %364, %367 : vector<1x32xf32>
    %369 = math.tanh %368 : vector<1x32xf32>
    %cst_107 = arith.constant 1.000000e+00 : f32
    %370 = vector.broadcast %cst_107 : f32 to vector<1x32xf32>
    %371 = arith.subf %370, %363 : vector<1x32xf32>
    %372 = arith.mulf %371, %369 : vector<1x32xf32>
    %373 = arith.mulf %363, %334 : vector<1x32xf32>
    %374 = arith.addf %372, %373 : vector<1x32xf32>
    %375 = vector.extract_strided_slice %374 {offsets = [0, 0], sizes = [1, 16], strides = [1, 1]} : vector<1x32xf32> to vector<1x16xf32>
    %c5_108 = arith.constant 5 : index
    %c0_109 = arith.constant 0 : index
    %c0_110 = arith.constant 0 : index
    %376 = vector.load %arg24[%c5_108, %c0_109, %c0_110] : memref<8x1x32xf32, #tpu.memory_space<vmem>>, vector<1x1x16xf32>
    %377 = vector.shape_cast %376 : vector<1x1x16xf32> to vector<1x16xf32>
    %378 = vector.shape_cast %375 : vector<1x16xf32> to vector<1x1x16xf32>
    tpu.vector_store %arg24[%c5_108, %c0_109, %c0_110], %378 {strides = array<i32>} : memref<8x1x32xf32, #tpu.memory_space<vmem>>, vector<1x1x16xf32>,
    %379 = vector.extract_strided_slice %374 {offsets = [0, 16], sizes = [1, 16], strides = [1, 1]} : vector<1x32xf32> to vector<1x16xf32>
    %c2_111 = arith.constant 2 : index
    %c0_112 = arith.constant 0 : index
    %c16_113 = arith.constant 16 : index
    %380 = vector.load %arg24[%c2_111, %c0_112, %c16_113] : memref<8x1x32xf32, #tpu.memory_space<vmem>>, vector<1x1x16xf32>
    %381 = vector.shape_cast %380 : vector<1x1x16xf32> to vector<1x16xf32>
    %382 = vector.shape_cast %379 : vector<1x16xf32> to vector<1x1x16xf32>
    tpu.vector_store %arg24[%c2_111, %c0_112, %c16_113], %382 {strides = array<i32>} : memref<8x1x32xf32, #tpu.memory_space<vmem>>, vector<1x1x16xf32>,
    %383 = vector.extract_strided_slice %139 {offsets = [6, 0], sizes = [1, 96], strides = [1, 1]} : vector<8x96xf32> to vector<1x96xf32>
    %384 = vector.extract_strided_slice %139 {offsets = [1, 0], sizes = [1, 96], strides = [1, 1]} : vector<8x96xf32> to vector<1x96xf32>
    %385 = arith.select %133, %384, %383 : vector<1x96xi1>, vector<1x96xf32>
    %386 = arith.truncf %374 : vector<1x32xf32> to vector<1x32xbf16>
    %cst_114 = arith.constant dense<0.000000e+00> : vector<1x96xf32>
    %387 = tpu.matmul %386, %140, %cst_114 {dimension_numbers = #tpu.dot_dimension_numbers<[1], [0], [0], [1], [0, 0, 1, 1], [], []>} : vector<1x32xbf16>, vector<32x96xbf16>, vector<1x96xf32> -> vector<1x96xf32>
    %388 = vector.extract_strided_slice %385 {offsets = [0, 0], sizes = [1, 32], strides = [1, 1]} : vector<1x96xf32> to vector<1x32xf32>
    %389 = vector.extract_strided_slice %387 {offsets = [0, 0], sizes = [1, 32], strides = [1, 1]} : vector<1x96xf32> to vector<1x32xf32>
    %390 = arith.addf %388, %389 : vector<1x32xf32>
    %391 = arith.negf %390 : vector<1x32xf32>
    %392 = math.exp %391 : vector<1x32xf32>
    %cst_115 = arith.constant 1.000000e+00 : f32
    %393 = vector.broadcast %cst_115 : f32 to vector<1x32xf32>
    %394 = arith.addf %393, %392 : vector<1x32xf32>
    %395 = arith.divf %393, %394 : vector<1x32xf32>
    %396 = vector.extract_strided_slice %385 {offsets = [0, 32], sizes = [1, 32], strides = [1, 1]} : vector<1x96xf32> to vector<1x32xf32>
    %397 = vector.extract_strided_slice %387 {offsets = [0, 32], sizes = [1, 32], strides = [1, 1]} : vector<1x96xf32> to vector<1x32xf32>
    %398 = arith.addf %396, %397 : vector<1x32xf32>
    %399 = arith.negf %398 : vector<1x32xf32>
    %400 = math.exp %399 : vector<1x32xf32>
    %cst_116 = arith.constant 1.000000e+00 : f32
    %401 = vector.broadcast %cst_116 : f32 to vector<1x32xf32>
    %402 = arith.addf %401, %400 : vector<1x32xf32>
    %403 = arith.divf %401, %402 : vector<1x32xf32>
    %404 = vector.extract_strided_slice %385 {offsets = [0, 64], sizes = [1, 32], strides = [1, 1]} : vector<1x96xf32> to vector<1x32xf32>
    %405 = vector.extract_strided_slice %387 {offsets = [0, 64], sizes = [1, 32], strides = [1, 1]} : vector<1x96xf32> to vector<1x32xf32>
    %406 = arith.addf %405, %141 : vector<1x32xf32>
    %407 = arith.mulf %395, %406 : vector<1x32xf32>
    %408 = arith.addf %404, %407 : vector<1x32xf32>
    %409 = math.tanh %408 : vector<1x32xf32>
    %cst_117 = arith.constant 1.000000e+00 : f32
    %410 = vector.broadcast %cst_117 : f32 to vector<1x32xf32>
    %411 = arith.subf %410, %403 : vector<1x32xf32>
    %412 = arith.mulf %411, %409 : vector<1x32xf32>
    %413 = arith.mulf %403, %374 : vector<1x32xf32>
    %414 = arith.addf %412, %413 : vector<1x32xf32>
    %415 = vector.extract_strided_slice %414 {offsets = [0, 0], sizes = [1, 16], strides = [1, 1]} : vector<1x32xf32> to vector<1x16xf32>
    %c6_118 = arith.constant 6 : index
    %c0_119 = arith.constant 0 : index
    %c0_120 = arith.constant 0 : index
    %416 = vector.load %arg24[%c6_118, %c0_119, %c0_120] : memref<8x1x32xf32, #tpu.memory_space<vmem>>, vector<1x1x16xf32>
    %417 = vector.shape_cast %416 : vector<1x1x16xf32> to vector<1x16xf32>
    %418 = vector.shape_cast %415 : vector<1x16xf32> to vector<1x1x16xf32>
    tpu.vector_store %arg24[%c6_118, %c0_119, %c0_120], %418 {strides = array<i32>} : memref<8x1x32xf32, #tpu.memory_space<vmem>>, vector<1x1x16xf32>,
    %419 = vector.extract_strided_slice %414 {offsets = [0, 16], sizes = [1, 16], strides = [1, 1]} : vector<1x32xf32> to vector<1x16xf32>
    %c1_121 = arith.constant 1 : index
    %c0_122 = arith.constant 0 : index
    %c16_123 = arith.constant 16 : index
    %420 = vector.load %arg24[%c1_121, %c0_122, %c16_123] : memref<8x1x32xf32, #tpu.memory_space<vmem>>, vector<1x1x16xf32>
    %421 = vector.shape_cast %420 : vector<1x1x16xf32> to vector<1x16xf32>
    %422 = vector.shape_cast %419 : vector<1x16xf32> to vector<1x1x16xf32>
    tpu.vector_store %arg24[%c1_121, %c0_122, %c16_123], %422 {strides = array<i32>} : memref<8x1x32xf32, #tpu.memory_space<vmem>>, vector<1x1x16xf32>,
    %423 = vector.extract_strided_slice %139 {offsets = [7, 0], sizes = [1, 96], strides = [1, 1]} : vector<8x96xf32> to vector<1x96xf32>
    %424 = vector.extract_strided_slice %139 {offsets = [0, 0], sizes = [1, 96], strides = [1, 1]} : vector<8x96xf32> to vector<1x96xf32>
    %425 = arith.select %133, %424, %423 : vector<1x96xi1>, vector<1x96xf32>
    %426 = arith.truncf %414 : vector<1x32xf32> to vector<1x32xbf16>
    %cst_124 = arith.constant dense<0.000000e+00> : vector<1x96xf32>
    %427 = tpu.matmul %426, %140, %cst_124 {dimension_numbers = #tpu.dot_dimension_numbers<[1], [0], [0], [1], [0, 0, 1, 1], [], []>} : vector<1x32xbf16>, vector<32x96xbf16>, vector<1x96xf32> -> vector<1x96xf32>
    %428 = vector.extract_strided_slice %425 {offsets = [0, 0], sizes = [1, 32], strides = [1, 1]} : vector<1x96xf32> to vector<1x32xf32>
    %429 = vector.extract_strided_slice %427 {offsets = [0, 0], sizes = [1, 32], strides = [1, 1]} : vector<1x96xf32> to vector<1x32xf32>
    %430 = arith.addf %428, %429 : vector<1x32xf32>
    %431 = arith.negf %430 : vector<1x32xf32>
    %432 = math.exp %431 : vector<1x32xf32>
    %cst_125 = arith.constant 1.000000e+00 : f32
    %433 = vector.broadcast %cst_125 : f32 to vector<1x32xf32>
    %434 = arith.addf %433, %432 : vector<1x32xf32>
    %435 = arith.divf %433, %434 : vector<1x32xf32>
    %436 = vector.extract_strided_slice %425 {offsets = [0, 32], sizes = [1, 32], strides = [1, 1]} : vector<1x96xf32> to vector<1x32xf32>
    %437 = vector.extract_strided_slice %427 {offsets = [0, 32], sizes = [1, 32], strides = [1, 1]} : vector<1x96xf32> to vector<1x32xf32>
    %438 = arith.addf %436, %437 : vector<1x32xf32>
    %439 = arith.negf %438 : vector<1x32xf32>
    %440 = math.exp %439 : vector<1x32xf32>
    %cst_126 = arith.constant 1.000000e+00 : f32
    %441 = vector.broadcast %cst_126 : f32 to vector<1x32xf32>
    %442 = arith.addf %441, %440 : vector<1x32xf32>
    %443 = arith.divf %441, %442 : vector<1x32xf32>
    %444 = vector.extract_strided_slice %425 {offsets = [0, 64], sizes = [1, 32], strides = [1, 1]} : vector<1x96xf32> to vector<1x32xf32>
    %445 = vector.extract_strided_slice %427 {offsets = [0, 64], sizes = [1, 32], strides = [1, 1]} : vector<1x96xf32> to vector<1x32xf32>
    %446 = arith.addf %445, %141 : vector<1x32xf32>
    %447 = arith.mulf %435, %446 : vector<1x32xf32>
    %448 = arith.addf %444, %447 : vector<1x32xf32>
    %449 = math.tanh %448 : vector<1x32xf32>
    %cst_127 = arith.constant 1.000000e+00 : f32
    %450 = vector.broadcast %cst_127 : f32 to vector<1x32xf32>
    %451 = arith.subf %450, %443 : vector<1x32xf32>
    %452 = arith.mulf %451, %449 : vector<1x32xf32>
    %453 = arith.mulf %443, %414 : vector<1x32xf32>
    %454 = arith.addf %452, %453 : vector<1x32xf32>
    %455 = vector.extract_strided_slice %454 {offsets = [0, 0], sizes = [1, 16], strides = [1, 1]} : vector<1x32xf32> to vector<1x16xf32>
    %c7_128 = arith.constant 7 : index
    %c0_129 = arith.constant 0 : index
    %c0_130 = arith.constant 0 : index
    %456 = vector.load %arg24[%c7_128, %c0_129, %c0_130] : memref<8x1x32xf32, #tpu.memory_space<vmem>>, vector<1x1x16xf32>
    %457 = vector.shape_cast %456 : vector<1x1x16xf32> to vector<1x16xf32>
    %458 = vector.shape_cast %455 : vector<1x16xf32> to vector<1x1x16xf32>
    tpu.vector_store %arg24[%c7_128, %c0_129, %c0_130], %458 {strides = array<i32>} : memref<8x1x32xf32, #tpu.memory_space<vmem>>, vector<1x1x16xf32>,
    %459 = vector.extract_strided_slice %454 {offsets = [0, 16], sizes = [1, 16], strides = [1, 1]} : vector<1x32xf32> to vector<1x16xf32>
    %c0_131 = arith.constant 0 : index
    %c0_132 = arith.constant 0 : index
    %c16_133 = arith.constant 16 : index
    %460 = vector.load %arg24[%c0_131, %c0_132, %c16_133] : memref<8x1x32xf32, #tpu.memory_space<vmem>>, vector<1x1x16xf32>
    %461 = vector.shape_cast %460 : vector<1x1x16xf32> to vector<1x16xf32>
    %462 = vector.shape_cast %459 : vector<1x16xf32> to vector<1x1x16xf32>
    tpu.vector_store %arg24[%c0_131, %c0_132, %c16_133], %462 {strides = array<i32>} : memref<8x1x32xf32, #tpu.memory_space<vmem>>, vector<1x1x16xf32>,
    %c0_134 = arith.constant 0 : index
    %c0_135 = arith.constant 0 : index
    %c0_136 = arith.constant 0 : index
    %463 = vector.load %arg24[%c0_134, %c0_135, %c0_136] : memref<8x1x32xf32, #tpu.memory_space<vmem>>, vector<8x1x32xf32>
    %464 = vector.shape_cast %463 : vector<8x1x32xf32> to vector<8x32xf32>
    %465 = arith.truncf %464 : vector<8x32xf32> to vector<8x32xbf16>
    %c0_137 = arith.constant 0 : index
    %c0_138 = arith.constant 0 : index
    %466 = vector.load %arg17[%c0_137, %c0_138] : memref<32x96xbf16, #tpu.memory_space<vmem>>, vector<32x96xbf16>
    %cst_139 = arith.constant dense<0.000000e+00> : vector<8x96xf32>
    %467 = tpu.matmul %465, %466, %cst_139 {dimension_numbers = #tpu.dot_dimension_numbers<[1], [0], [0], [1], [0, 0, 1, 1], [], []>} : vector<8x32xbf16>, vector<32x96xbf16>, vector<8x96xf32> -> vector<8x96xf32>
    %c0_140 = arith.constant 0 : index
    %c0_141 = arith.constant 0 : index
    %468 = vector.load %arg19[%c0_140, %c0_141] : memref<1x96xf32, #tpu.memory_space<vmem>>, vector<1x96xf32>
    %469 = vector.broadcast %468 : vector<1x96xf32> to vector<8x96xf32>
    %470 = arith.addf %467, %469 : vector<8x96xf32>
    %c0_142 = arith.constant 0 : index
    %c0_143 = arith.constant 0 : index
    %471 = vector.load %arg18[%c0_142, %c0_143] : memref<32x96xbf16, #tpu.memory_space<vmem>>, vector<32x96xbf16>
    %c0_144 = arith.constant 0 : index
    %c0_145 = arith.constant 0 : index
    %472 = vector.load %arg20[%c0_144, %c0_145] : memref<1x32xf32, #tpu.memory_space<vmem>>, vector<1x32xf32>
    %cst_146 = arith.constant 0.000000e+00 : f32
    %473 = vector.broadcast %cst_146 : f32 to vector<1x32xf32>
    %474 = vector.extract_strided_slice %470 {offsets = [0, 0], sizes = [1, 96], strides = [1, 1]} : vector<8x96xf32> to vector<1x96xf32>
    %475 = vector.extract_strided_slice %470 {offsets = [7, 0], sizes = [1, 96], strides = [1, 1]} : vector<8x96xf32> to vector<1x96xf32>
    %476 = arith.select %133, %475, %474 : vector<1x96xi1>, vector<1x96xf32>
    %477 = arith.truncf %473 : vector<1x32xf32> to vector<1x32xbf16>
    %cst_147 = arith.constant dense<0.000000e+00> : vector<1x96xf32>
    %478 = tpu.matmul %477, %471, %cst_147 {dimension_numbers = #tpu.dot_dimension_numbers<[1], [0], [0], [1], [0, 0, 1, 1], [], []>} : vector<1x32xbf16>, vector<32x96xbf16>, vector<1x96xf32> -> vector<1x96xf32>
    %479 = vector.extract_strided_slice %476 {offsets = [0, 0], sizes = [1, 32], strides = [1, 1]} : vector<1x96xf32> to vector<1x32xf32>
    %480 = vector.extract_strided_slice %478 {offsets = [0, 0], sizes = [1, 32], strides = [1, 1]} : vector<1x96xf32> to vector<1x32xf32>
    %481 = arith.addf %479, %480 : vector<1x32xf32>
    %482 = arith.negf %481 : vector<1x32xf32>
    %483 = math.exp %482 : vector<1x32xf32>
    %cst_148 = arith.constant 1.000000e+00 : f32
    %484 = vector.broadcast %cst_148 : f32 to vector<1x32xf32>
    %485 = arith.addf %484, %483 : vector<1x32xf32>
    %486 = arith.divf %484, %485 : vector<1x32xf32>
    %487 = vector.extract_strided_slice %476 {offsets = [0, 32], sizes = [1, 32], strides = [1, 1]} : vector<1x96xf32> to vector<1x32xf32>
    %488 = vector.extract_strided_slice %478 {offsets = [0, 32], sizes = [1, 32], strides = [1, 1]} : vector<1x96xf32> to vector<1x32xf32>
    %489 = arith.addf %487, %488 : vector<1x32xf32>
    %490 = arith.negf %489 : vector<1x32xf32>
    %491 = math.exp %490 : vector<1x32xf32>
    %cst_149 = arith.constant 1.000000e+00 : f32
    %492 = vector.broadcast %cst_149 : f32 to vector<1x32xf32>
    %493 = arith.addf %492, %491 : vector<1x32xf32>
    %494 = arith.divf %492, %493 : vector<1x32xf32>
    %495 = vector.extract_strided_slice %476 {offsets = [0, 64], sizes = [1, 32], strides = [1, 1]} : vector<1x96xf32> to vector<1x32xf32>
    %496 = vector.extract_strided_slice %478 {offsets = [0, 64], sizes = [1, 32], strides = [1, 1]} : vector<1x96xf32> to vector<1x32xf32>
    %497 = arith.addf %496, %472 : vector<1x32xf32>
    %498 = arith.mulf %486, %497 : vector<1x32xf32>
    %499 = arith.addf %495, %498 : vector<1x32xf32>
    %500 = math.tanh %499 : vector<1x32xf32>
    %cst_150 = arith.constant 1.000000e+00 : f32
    %501 = vector.broadcast %cst_150 : f32 to vector<1x32xf32>
    %502 = arith.subf %501, %494 : vector<1x32xf32>
    %503 = arith.mulf %502, %500 : vector<1x32xf32>
    %504 = arith.mulf %494, %473 : vector<1x32xf32>
    %505 = arith.addf %503, %504 : vector<1x32xf32>
    %506 = vector.extract_strided_slice %470 {offsets = [1, 0], sizes = [1, 96], strides = [1, 1]} : vector<8x96xf32> to vector<1x96xf32>
    %507 = vector.extract_strided_slice %470 {offsets = [6, 0], sizes = [1, 96], strides = [1, 1]} : vector<8x96xf32> to vector<1x96xf32>
    %508 = arith.select %133, %507, %506 : vector<1x96xi1>, vector<1x96xf32>
    %509 = arith.truncf %505 : vector<1x32xf32> to vector<1x32xbf16>
    %cst_151 = arith.constant dense<0.000000e+00> : vector<1x96xf32>
    %510 = tpu.matmul %509, %471, %cst_151 {dimension_numbers = #tpu.dot_dimension_numbers<[1], [0], [0], [1], [0, 0, 1, 1], [], []>} : vector<1x32xbf16>, vector<32x96xbf16>, vector<1x96xf32> -> vector<1x96xf32>
    %511 = vector.extract_strided_slice %508 {offsets = [0, 0], sizes = [1, 32], strides = [1, 1]} : vector<1x96xf32> to vector<1x32xf32>
    %512 = vector.extract_strided_slice %510 {offsets = [0, 0], sizes = [1, 32], strides = [1, 1]} : vector<1x96xf32> to vector<1x32xf32>
    %513 = arith.addf %511, %512 : vector<1x32xf32>
    %514 = arith.negf %513 : vector<1x32xf32>
    %515 = math.exp %514 : vector<1x32xf32>
    %cst_152 = arith.constant 1.000000e+00 : f32
    %516 = vector.broadcast %cst_152 : f32 to vector<1x32xf32>
    %517 = arith.addf %516, %515 : vector<1x32xf32>
    %518 = arith.divf %516, %517 : vector<1x32xf32>
    %519 = vector.extract_strided_slice %508 {offsets = [0, 32], sizes = [1, 32], strides = [1, 1]} : vector<1x96xf32> to vector<1x32xf32>
    %520 = vector.extract_strided_slice %510 {offsets = [0, 32], sizes = [1, 32], strides = [1, 1]} : vector<1x96xf32> to vector<1x32xf32>
    %521 = arith.addf %519, %520 : vector<1x32xf32>
    %522 = arith.negf %521 : vector<1x32xf32>
    %523 = math.exp %522 : vector<1x32xf32>
    %cst_153 = arith.constant 1.000000e+00 : f32
    %524 = vector.broadcast %cst_153 : f32 to vector<1x32xf32>
    %525 = arith.addf %524, %523 : vector<1x32xf32>
    %526 = arith.divf %524, %525 : vector<1x32xf32>
    %527 = vector.extract_strided_slice %508 {offsets = [0, 64], sizes = [1, 32], strides = [1, 1]} : vector<1x96xf32> to vector<1x32xf32>
    %528 = vector.extract_strided_slice %510 {offsets = [0, 64], sizes = [1, 32], strides = [1, 1]} : vector<1x96xf32> to vector<1x32xf32>
    %529 = arith.addf %528, %472 : vector<1x32xf32>
    %530 = arith.mulf %518, %529 : vector<1x32xf32>
    %531 = arith.addf %527, %530 : vector<1x32xf32>
    %532 = math.tanh %531 : vector<1x32xf32>
    %cst_154 = arith.constant 1.000000e+00 : f32
    %533 = vector.broadcast %cst_154 : f32 to vector<1x32xf32>
    %534 = arith.subf %533, %526 : vector<1x32xf32>
    %535 = arith.mulf %534, %532 : vector<1x32xf32>
    %536 = arith.mulf %526, %505 : vector<1x32xf32>
    %537 = arith.addf %535, %536 : vector<1x32xf32>
    %538 = vector.extract_strided_slice %470 {offsets = [2, 0], sizes = [1, 96], strides = [1, 1]} : vector<8x96xf32> to vector<1x96xf32>
    %539 = vector.extract_strided_slice %470 {offsets = [5, 0], sizes = [1, 96], strides = [1, 1]} : vector<8x96xf32> to vector<1x96xf32>
    %540 = arith.select %133, %539, %538 : vector<1x96xi1>, vector<1x96xf32>
    %541 = arith.truncf %537 : vector<1x32xf32> to vector<1x32xbf16>
    %cst_155 = arith.constant dense<0.000000e+00> : vector<1x96xf32>
    %542 = tpu.matmul %541, %471, %cst_155 {dimension_numbers = #tpu.dot_dimension_numbers<[1], [0], [0], [1], [0, 0, 1, 1], [], []>} : vector<1x32xbf16>, vector<32x96xbf16>, vector<1x96xf32> -> vector<1x96xf32>
    %543 = vector.extract_strided_slice %540 {offsets = [0, 0], sizes = [1, 32], strides = [1, 1]} : vector<1x96xf32> to vector<1x32xf32>
    %544 = vector.extract_strided_slice %542 {offsets = [0, 0], sizes = [1, 32], strides = [1, 1]} : vector<1x96xf32> to vector<1x32xf32>
    %545 = arith.addf %543, %544 : vector<1x32xf32>
    %546 = arith.negf %545 : vector<1x32xf32>
    %547 = math.exp %546 : vector<1x32xf32>
    %cst_156 = arith.constant 1.000000e+00 : f32
    %548 = vector.broadcast %cst_156 : f32 to vector<1x32xf32>
    %549 = arith.addf %548, %547 : vector<1x32xf32>
    %550 = arith.divf %548, %549 : vector<1x32xf32>
    %551 = vector.extract_strided_slice %540 {offsets = [0, 32], sizes = [1, 32], strides = [1, 1]} : vector<1x96xf32> to vector<1x32xf32>
    %552 = vector.extract_strided_slice %542 {offsets = [0, 32], sizes = [1, 32], strides = [1, 1]} : vector<1x96xf32> to vector<1x32xf32>
    %553 = arith.addf %551, %552 : vector<1x32xf32>
    %554 = arith.negf %553 : vector<1x32xf32>
    %555 = math.exp %554 : vector<1x32xf32>
    %cst_157 = arith.constant 1.000000e+00 : f32
    %556 = vector.broadcast %cst_157 : f32 to vector<1x32xf32>
    %557 = arith.addf %556, %555 : vector<1x32xf32>
    %558 = arith.divf %556, %557 : vector<1x32xf32>
    %559 = vector.extract_strided_slice %540 {offsets = [0, 64], sizes = [1, 32], strides = [1, 1]} : vector<1x96xf32> to vector<1x32xf32>
    %560 = vector.extract_strided_slice %542 {offsets = [0, 64], sizes = [1, 32], strides = [1, 1]} : vector<1x96xf32> to vector<1x32xf32>
    %561 = arith.addf %560, %472 : vector<1x32xf32>
    %562 = arith.mulf %550, %561 : vector<1x32xf32>
    %563 = arith.addf %559, %562 : vector<1x32xf32>
    %564 = math.tanh %563 : vector<1x32xf32>
    %cst_158 = arith.constant 1.000000e+00 : f32
    %565 = vector.broadcast %cst_158 : f32 to vector<1x32xf32>
    %566 = arith.subf %565, %558 : vector<1x32xf32>
    %567 = arith.mulf %566, %564 : vector<1x32xf32>
    %568 = arith.mulf %558, %537 : vector<1x32xf32>
    %569 = arith.addf %567, %568 : vector<1x32xf32>
    %570 = vector.extract_strided_slice %470 {offsets = [3, 0], sizes = [1, 96], strides = [1, 1]} : vector<8x96xf32> to vector<1x96xf32>
    %571 = vector.extract_strided_slice %470 {offsets = [4, 0], sizes = [1, 96], strides = [1, 1]} : vector<8x96xf32> to vector<1x96xf32>
    %572 = arith.select %133, %571, %570 : vector<1x96xi1>, vector<1x96xf32>
    %573 = arith.truncf %569 : vector<1x32xf32> to vector<1x32xbf16>
    %cst_159 = arith.constant dense<0.000000e+00> : vector<1x96xf32>
    %574 = tpu.matmul %573, %471, %cst_159 {dimension_numbers = #tpu.dot_dimension_numbers<[1], [0], [0], [1], [0, 0, 1, 1], [], []>} : vector<1x32xbf16>, vector<32x96xbf16>, vector<1x96xf32> -> vector<1x96xf32>
    %575 = vector.extract_strided_slice %572 {offsets = [0, 0], sizes = [1, 32], strides = [1, 1]} : vector<1x96xf32> to vector<1x32xf32>
    %576 = vector.extract_strided_slice %574 {offsets = [0, 0], sizes = [1, 32], strides = [1, 1]} : vector<1x96xf32> to vector<1x32xf32>
    %577 = arith.addf %575, %576 : vector<1x32xf32>
    %578 = arith.negf %577 : vector<1x32xf32>
    %579 = math.exp %578 : vector<1x32xf32>
    %cst_160 = arith.constant 1.000000e+00 : f32
    %580 = vector.broadcast %cst_160 : f32 to vector<1x32xf32>
    %581 = arith.addf %580, %579 : vector<1x32xf32>
    %582 = arith.divf %580, %581 : vector<1x32xf32>
    %583 = vector.extract_strided_slice %572 {offsets = [0, 32], sizes = [1, 32], strides = [1, 1]} : vector<1x96xf32> to vector<1x32xf32>
    %584 = vector.extract_strided_slice %574 {offsets = [0, 32], sizes = [1, 32], strides = [1, 1]} : vector<1x96xf32> to vector<1x32xf32>
    %585 = arith.addf %583, %584 : vector<1x32xf32>
    %586 = arith.negf %585 : vector<1x32xf32>
    %587 = math.exp %586 : vector<1x32xf32>
    %cst_161 = arith.constant 1.000000e+00 : f32
    %588 = vector.broadcast %cst_161 : f32 to vector<1x32xf32>
    %589 = arith.addf %588, %587 : vector<1x32xf32>
    %590 = arith.divf %588, %589 : vector<1x32xf32>
    %591 = vector.extract_strided_slice %572 {offsets = [0, 64], sizes = [1, 32], strides = [1, 1]} : vector<1x96xf32> to vector<1x32xf32>
    %592 = vector.extract_strided_slice %574 {offsets = [0, 64], sizes = [1, 32], strides = [1, 1]} : vector<1x96xf32> to vector<1x32xf32>
    %593 = arith.addf %592, %472 : vector<1x32xf32>
    %594 = arith.mulf %582, %593 : vector<1x32xf32>
    %595 = arith.addf %591, %594 : vector<1x32xf32>
    %596 = math.tanh %595 : vector<1x32xf32>
    %cst_162 = arith.constant 1.000000e+00 : f32
    %597 = vector.broadcast %cst_162 : f32 to vector<1x32xf32>
    %598 = arith.subf %597, %590 : vector<1x32xf32>
    %599 = arith.mulf %598, %596 : vector<1x32xf32>
    %600 = arith.mulf %590, %569 : vector<1x32xf32>
    %601 = arith.addf %599, %600 : vector<1x32xf32>
    %602 = vector.extract_strided_slice %470 {offsets = [4, 0], sizes = [1, 96], strides = [1, 1]} : vector<8x96xf32> to vector<1x96xf32>
    %603 = vector.extract_strided_slice %470 {offsets = [3, 0], sizes = [1, 96], strides = [1, 1]} : vector<8x96xf32> to vector<1x96xf32>
    %604 = arith.select %133, %603, %602 : vector<1x96xi1>, vector<1x96xf32>
    %605 = arith.truncf %601 : vector<1x32xf32> to vector<1x32xbf16>
    %cst_163 = arith.constant dense<0.000000e+00> : vector<1x96xf32>
    %606 = tpu.matmul %605, %471, %cst_163 {dimension_numbers = #tpu.dot_dimension_numbers<[1], [0], [0], [1], [0, 0, 1, 1], [], []>} : vector<1x32xbf16>, vector<32x96xbf16>, vector<1x96xf32> -> vector<1x96xf32>
    %607 = vector.extract_strided_slice %604 {offsets = [0, 0], sizes = [1, 32], strides = [1, 1]} : vector<1x96xf32> to vector<1x32xf32>
    %608 = vector.extract_strided_slice %606 {offsets = [0, 0], sizes = [1, 32], strides = [1, 1]} : vector<1x96xf32> to vector<1x32xf32>
    %609 = arith.addf %607, %608 : vector<1x32xf32>
    %610 = arith.negf %609 : vector<1x32xf32>
    %611 = math.exp %610 : vector<1x32xf32>
    %cst_164 = arith.constant 1.000000e+00 : f32
    %612 = vector.broadcast %cst_164 : f32 to vector<1x32xf32>
    %613 = arith.addf %612, %611 : vector<1x32xf32>
    %614 = arith.divf %612, %613 : vector<1x32xf32>
    %615 = vector.extract_strided_slice %604 {offsets = [0, 32], sizes = [1, 32], strides = [1, 1]} : vector<1x96xf32> to vector<1x32xf32>
    %616 = vector.extract_strided_slice %606 {offsets = [0, 32], sizes = [1, 32], strides = [1, 1]} : vector<1x96xf32> to vector<1x32xf32>
    %617 = arith.addf %615, %616 : vector<1x32xf32>
    %618 = arith.negf %617 : vector<1x32xf32>
    %619 = math.exp %618 : vector<1x32xf32>
    %cst_165 = arith.constant 1.000000e+00 : f32
    %620 = vector.broadcast %cst_165 : f32 to vector<1x32xf32>
    %621 = arith.addf %620, %619 : vector<1x32xf32>
    %622 = arith.divf %620, %621 : vector<1x32xf32>
    %623 = vector.extract_strided_slice %604 {offsets = [0, 64], sizes = [1, 32], strides = [1, 1]} : vector<1x96xf32> to vector<1x32xf32>
    %624 = vector.extract_strided_slice %606 {offsets = [0, 64], sizes = [1, 32], strides = [1, 1]} : vector<1x96xf32> to vector<1x32xf32>
    %625 = arith.addf %624, %472 : vector<1x32xf32>
    %626 = arith.mulf %614, %625 : vector<1x32xf32>
    %627 = arith.addf %623, %626 : vector<1x32xf32>
    %628 = math.tanh %627 : vector<1x32xf32>
    %cst_166 = arith.constant 1.000000e+00 : f32
    %629 = vector.broadcast %cst_166 : f32 to vector<1x32xf32>
    %630 = arith.subf %629, %622 : vector<1x32xf32>
    %631 = arith.mulf %630, %628 : vector<1x32xf32>
    %632 = arith.mulf %622, %601 : vector<1x32xf32>
    %633 = arith.addf %631, %632 : vector<1x32xf32>
    %634 = vector.extract_strided_slice %470 {offsets = [5, 0], sizes = [1, 96], strides = [1, 1]} : vector<8x96xf32> to vector<1x96xf32>
    %635 = vector.extract_strided_slice %470 {offsets = [2, 0], sizes = [1, 96], strides = [1, 1]} : vector<8x96xf32> to vector<1x96xf32>
    %636 = arith.select %133, %635, %634 : vector<1x96xi1>, vector<1x96xf32>
    %637 = arith.truncf %633 : vector<1x32xf32> to vector<1x32xbf16>
    %cst_167 = arith.constant dense<0.000000e+00> : vector<1x96xf32>
    %638 = tpu.matmul %637, %471, %cst_167 {dimension_numbers = #tpu.dot_dimension_numbers<[1], [0], [0], [1], [0, 0, 1, 1], [], []>} : vector<1x32xbf16>, vector<32x96xbf16>, vector<1x96xf32> -> vector<1x96xf32>
    %639 = vector.extract_strided_slice %636 {offsets = [0, 0], sizes = [1, 32], strides = [1, 1]} : vector<1x96xf32> to vector<1x32xf32>
    %640 = vector.extract_strided_slice %638 {offsets = [0, 0], sizes = [1, 32], strides = [1, 1]} : vector<1x96xf32> to vector<1x32xf32>
    %641 = arith.addf %639, %640 : vector<1x32xf32>
    %642 = arith.negf %641 : vector<1x32xf32>
    %643 = math.exp %642 : vector<1x32xf32>
    %cst_168 = arith.constant 1.000000e+00 : f32
    %644 = vector.broadcast %cst_168 : f32 to vector<1x32xf32>
    %645 = arith.addf %644, %643 : vector<1x32xf32>
    %646 = arith.divf %644, %645 : vector<1x32xf32>
    %647 = vector.extract_strided_slice %636 {offsets = [0, 32], sizes = [1, 32], strides = [1, 1]} : vector<1x96xf32> to vector<1x32xf32>
    %648 = vector.extract_strided_slice %638 {offsets = [0, 32], sizes = [1, 32], strides = [1, 1]} : vector<1x96xf32> to vector<1x32xf32>
    %649 = arith.addf %647, %648 : vector<1x32xf32>
    %650 = arith.negf %649 : vector<1x32xf32>
    %651 = math.exp %650 : vector<1x32xf32>
    %cst_169 = arith.constant 1.000000e+00 : f32
    %652 = vector.broadcast %cst_169 : f32 to vector<1x32xf32>
    %653 = arith.addf %652, %651 : vector<1x32xf32>
    %654 = arith.divf %652, %653 : vector<1x32xf32>
    %655 = vector.extract_strided_slice %636 {offsets = [0, 64], sizes = [1, 32], strides = [1, 1]} : vector<1x96xf32> to vector<1x32xf32>
    %656 = vector.extract_strided_slice %638 {offsets = [0, 64], sizes = [1, 32], strides = [1, 1]} : vector<1x96xf32> to vector<1x32xf32>
    %657 = arith.addf %656, %472 : vector<1x32xf32>
    %658 = arith.mulf %646, %657 : vector<1x32xf32>
    %659 = arith.addf %655, %658 : vector<1x32xf32>
    %660 = math.tanh %659 : vector<1x32xf32>
    %cst_170 = arith.constant 1.000000e+00 : f32
    %661 = vector.broadcast %cst_170 : f32 to vector<1x32xf32>
    %662 = arith.subf %661, %654 : vector<1x32xf32>
    %663 = arith.mulf %662, %660 : vector<1x32xf32>
    %664 = arith.mulf %654, %633 : vector<1x32xf32>
    %665 = arith.addf %663, %664 : vector<1x32xf32>
    %666 = vector.extract_strided_slice %470 {offsets = [6, 0], sizes = [1, 96], strides = [1, 1]} : vector<8x96xf32> to vector<1x96xf32>
    %667 = vector.extract_strided_slice %470 {offsets = [1, 0], sizes = [1, 96], strides = [1, 1]} : vector<8x96xf32> to vector<1x96xf32>
    %668 = arith.select %133, %667, %666 : vector<1x96xi1>, vector<1x96xf32>
    %669 = arith.truncf %665 : vector<1x32xf32> to vector<1x32xbf16>
    %cst_171 = arith.constant dense<0.000000e+00> : vector<1x96xf32>
    %670 = tpu.matmul %669, %471, %cst_171 {dimension_numbers = #tpu.dot_dimension_numbers<[1], [0], [0], [1], [0, 0, 1, 1], [], []>} : vector<1x32xbf16>, vector<32x96xbf16>, vector<1x96xf32> -> vector<1x96xf32>
    %671 = vector.extract_strided_slice %668 {offsets = [0, 0], sizes = [1, 32], strides = [1, 1]} : vector<1x96xf32> to vector<1x32xf32>
    %672 = vector.extract_strided_slice %670 {offsets = [0, 0], sizes = [1, 32], strides = [1, 1]} : vector<1x96xf32> to vector<1x32xf32>
    %673 = arith.addf %671, %672 : vector<1x32xf32>
    %674 = arith.negf %673 : vector<1x32xf32>
    %675 = math.exp %674 : vector<1x32xf32>
    %cst_172 = arith.constant 1.000000e+00 : f32
    %676 = vector.broadcast %cst_172 : f32 to vector<1x32xf32>
    %677 = arith.addf %676, %675 : vector<1x32xf32>
    %678 = arith.divf %676, %677 : vector<1x32xf32>
    %679 = vector.extract_strided_slice %668 {offsets = [0, 32], sizes = [1, 32], strides = [1, 1]} : vector<1x96xf32> to vector<1x32xf32>
    %680 = vector.extract_strided_slice %670 {offsets = [0, 32], sizes = [1, 32], strides = [1, 1]} : vector<1x96xf32> to vector<1x32xf32>
    %681 = arith.addf %679, %680 : vector<1x32xf32>
    %682 = arith.negf %681 : vector<1x32xf32>
    %683 = math.exp %682 : vector<1x32xf32>
    %cst_173 = arith.constant 1.000000e+00 : f32
    %684 = vector.broadcast %cst_173 : f32 to vector<1x32xf32>
    %685 = arith.addf %684, %683 : vector<1x32xf32>
    %686 = arith.divf %684, %685 : vector<1x32xf32>
    %687 = vector.extract_strided_slice %668 {offsets = [0, 64], sizes = [1, 32], strides = [1, 1]} : vector<1x96xf32> to vector<1x32xf32>
    %688 = vector.extract_strided_slice %670 {offsets = [0, 64], sizes = [1, 32], strides = [1, 1]} : vector<1x96xf32> to vector<1x32xf32>
    %689 = arith.addf %688, %472 : vector<1x32xf32>
    %690 = arith.mulf %678, %689 : vector<1x32xf32>
    %691 = arith.addf %687, %690 : vector<1x32xf32>
    %692 = math.tanh %691 : vector<1x32xf32>
    %cst_174 = arith.constant 1.000000e+00 : f32
    %693 = vector.broadcast %cst_174 : f32 to vector<1x32xf32>
    %694 = arith.subf %693, %686 : vector<1x32xf32>
    %695 = arith.mulf %694, %692 : vector<1x32xf32>
    %696 = arith.mulf %686, %665 : vector<1x32xf32>
    %697 = arith.addf %695, %696 : vector<1x32xf32>
    %698 = vector.extract_strided_slice %470 {offsets = [7, 0], sizes = [1, 96], strides = [1, 1]} : vector<8x96xf32> to vector<1x96xf32>
    %699 = vector.extract_strided_slice %470 {offsets = [0, 0], sizes = [1, 96], strides = [1, 1]} : vector<8x96xf32> to vector<1x96xf32>
    %700 = arith.select %133, %699, %698 : vector<1x96xi1>, vector<1x96xf32>
    %701 = arith.truncf %697 : vector<1x32xf32> to vector<1x32xbf16>
    %cst_175 = arith.constant dense<0.000000e+00> : vector<1x96xf32>
    %702 = tpu.matmul %701, %471, %cst_175 {dimension_numbers = #tpu.dot_dimension_numbers<[1], [0], [0], [1], [0, 0, 1, 1], [], []>} : vector<1x32xbf16>, vector<32x96xbf16>, vector<1x96xf32> -> vector<1x96xf32>
    %703 = vector.extract_strided_slice %700 {offsets = [0, 0], sizes = [1, 32], strides = [1, 1]} : vector<1x96xf32> to vector<1x32xf32>
    %704 = vector.extract_strided_slice %702 {offsets = [0, 0], sizes = [1, 32], strides = [1, 1]} : vector<1x96xf32> to vector<1x32xf32>
    %705 = arith.addf %703, %704 : vector<1x32xf32>
    %706 = arith.negf %705 : vector<1x32xf32>
    %707 = math.exp %706 : vector<1x32xf32>
    %cst_176 = arith.constant 1.000000e+00 : f32
    %708 = vector.broadcast %cst_176 : f32 to vector<1x32xf32>
    %709 = arith.addf %708, %707 : vector<1x32xf32>
    %710 = arith.divf %708, %709 : vector<1x32xf32>
    %711 = vector.extract_strided_slice %700 {offsets = [0, 32], sizes = [1, 32], strides = [1, 1]} : vector<1x96xf32> to vector<1x32xf32>
    %712 = vector.extract_strided_slice %702 {offsets = [0, 32], sizes = [1, 32], strides = [1, 1]} : vector<1x96xf32> to vector<1x32xf32>
    %713 = arith.addf %711, %712 : vector<1x32xf32>
    %714 = arith.negf %713 : vector<1x32xf32>
    %715 = math.exp %714 : vector<1x32xf32>
    %cst_177 = arith.constant 1.000000e+00 : f32
    %716 = vector.broadcast %cst_177 : f32 to vector<1x32xf32>
    %717 = arith.addf %716, %715 : vector<1x32xf32>
    %718 = arith.divf %716, %717 : vector<1x32xf32>
    %719 = vector.extract_strided_slice %700 {offsets = [0, 64], sizes = [1, 32], strides = [1, 1]} : vector<1x96xf32> to vector<1x32xf32>
    %720 = vector.extract_strided_slice %702 {offsets = [0, 64], sizes = [1, 32], strides = [1, 1]} : vector<1x96xf32> to vector<1x32xf32>
    %721 = arith.addf %720, %472 : vector<1x32xf32>
    %722 = arith.mulf %710, %721 : vector<1x32xf32>
    %723 = arith.addf %719, %722 : vector<1x32xf32>
    %724 = math.tanh %723 : vector<1x32xf32>
    %cst_178 = arith.constant 1.000000e+00 : f32
    %725 = vector.broadcast %cst_178 : f32 to vector<1x32xf32>
    %726 = arith.subf %725, %718 : vector<1x32xf32>
    %727 = arith.mulf %726, %724 : vector<1x32xf32>
    %728 = arith.mulf %718, %697 : vector<1x32xf32>
    %729 = arith.addf %727, %728 : vector<1x32xf32>
    %730 = arith.truncf %729 : vector<1x32xf32> to vector<1x32xbf16>
    %c0_179 = arith.constant 0 : index
    %c0_180 = arith.constant 0 : index
    %731 = vector.load %arg21[%c0_179, %c0_180] : memref<32x3xbf16, #tpu.memory_space<vmem>>, vector<32x3xbf16>
    %cst_181 = arith.constant dense<0.000000e+00> : vector<1x3xf32>
    %732 = tpu.matmul %730, %731, %cst_181 {dimension_numbers = #tpu.dot_dimension_numbers<[1], [0], [0], [1], [0, 0, 1, 1], [], []>} : vector<1x32xbf16>, vector<32x3xbf16>, vector<1x3xf32> -> vector<1x3xf32>
    %c0_182 = arith.constant 0 : index
    %c0_183 = arith.constant 0 : index
    %733 = vector.load %arg22[%c0_182, %c0_183] : memref<1x3xf32, #tpu.memory_space<vmem>>, vector<1x3xf32>
    %734 = arith.addf %732, %733 : vector<1x3xf32>
    %735 = vector.shape_cast %734 : vector<1x3xf32> to vector<1x1x3xf32>
    %c0_184 = arith.constant 0 : index
    %c0_185 = arith.constant 0 : index
    %c0_186 = arith.constant 0 : index
    %736 = vector.load %arg23[%c0_184, %c0_185, %c0_186] : memref<1x1x3xf32, #tpu.memory_space<vmem>>, vector<1x1x3xf32>
    tpu.vector_store %arg23[%c0_184, %c0_185, %c0_186], %735 {strides = array<i32>} : memref<1x1x3xf32, #tpu.memory_space<vmem>>, vector<1x1x3xf32>,
    return
  }
  func.func @transform_0(%arg0: i32) -> (i32, i32, i32) {
    %c0_i32 = arith.constant 0 : i32
    %c0_i32_0 = arith.constant 0 : i32
    %c0_i32_1 = arith.constant 0 : i32
    return %arg0, %c0_i32, %c0_i32_0 : i32, i32, i32
  }
  func.func @transform_1(%arg0: i32) -> (i32, i32, i32) {
    %c0_i32 = arith.constant 0 : i32
    %c0_i32_0 = arith.constant 0 : i32
    %c0_i32_1 = arith.constant 0 : i32
    return %arg0, %c0_i32, %c0_i32_0 : i32, i32, i32
  }
  func.func @transform_2(%arg0: i32) -> (i32, i32) {
    %c0_i32 = arith.constant 0 : i32
    %c0_i32_0 = arith.constant 0 : i32
    %c0_i32_1 = arith.constant 0 : i32
    return %c0_i32, %c0_i32_0 : i32, i32
  }
  func.func @transform_3(%arg0: i32) -> (i32, i32) {
    %c0_i32 = arith.constant 0 : i32
    %c0_i32_0 = arith.constant 0 : i32
    %c0_i32_1 = arith.constant 0 : i32
    return %c0_i32, %c0_i32_0 : i32, i32
  }
  func.func @transform_4(%arg0: i32) -> (i32, i32) {
    %c0_i32 = arith.constant 0 : i32
    %c0_i32_0 = arith.constant 0 : i32
    %c0_i32_1 = arith.constant 0 : i32
    return %c0_i32, %c0_i32_0 : i32, i32
  }
  func.func @transform_5(%arg0: i32) -> (i32, i32) {
    %c0_i32 = arith.constant 0 : i32
    %c0_i32_0 = arith.constant 0 : i32
    %c0_i32_1 = arith.constant 0 : i32
    return %c0_i32, %c0_i32_0 : i32, i32
  }
  func.func @transform_6(%arg0: i32) -> (i32, i32) {
    %c0_i32 = arith.constant 0 : i32
    %c0_i32_0 = arith.constant 0 : i32
    %c0_i32_1 = arith.constant 0 : i32
    return %c0_i32, %c0_i32_0 : i32, i32
  }
  func.func @transform_7(%arg0: i32) -> (i32, i32) {
    %c0_i32 = arith.constant 0 : i32
    %c0_i32_0 = arith.constant 0 : i32
    %c0_i32_1 = arith.constant 0 : i32
    return %c0_i32, %c0_i32_0 : i32, i32
  }
  func.func @transform_8(%arg0: i32) -> (i32, i32) {
    %c0_i32 = arith.constant 0 : i32
    %c0_i32_0 = arith.constant 0 : i32
    %c0_i32_1 = arith.constant 0 : i32
    return %c0_i32, %c0_i32_0 : i32, i32
  }
  func.func @transform_9(%arg0: i32) -> (i32, i32) {
    %c0_i32 = arith.constant 0 : i32
    %c0_i32_0 = arith.constant 0 : i32
    %c0_i32_1 = arith.constant 0 : i32
    return %c0_i32, %c0_i32_0 : i32, i32
  }
  func.func @transform_10(%arg0: i32) -> (i32, i32) {
    %c0_i32 = arith.constant 0 : i32
    %c0_i32_0 = arith.constant 0 : i32
    %c0_i32_1 = arith.constant 0 : i32
    return %c0_i32, %c0_i32_0 : i32, i32
  }
  func.func @transform_11(%arg0: i32) -> (i32, i32) {
    %c0_i32 = arith.constant 0 : i32
    %c0_i32_0 = arith.constant 0 : i32
    %c0_i32_1 = arith.constant 0 : i32
    return %c0_i32, %c0_i32_0 : i32, i32
  }
  func.func @transform_12(%arg0: i32) -> (i32, i32) {
    %c0_i32 = arith.constant 0 : i32
    %c0_i32_0 = arith.constant 0 : i32
    %c0_i32_1 = arith.constant 0 : i32
    return %c0_i32, %c0_i32_0 : i32, i32
  }
  func.func @transform_13(%arg0: i32) -> (i32, i32) {
    %c0_i32 = arith.constant 0 : i32
    %c0_i32_0 = arith.constant 0 : i32
    %c0_i32_1 = arith.constant 0 : i32
    return %c0_i32, %c0_i32_0 : i32, i32
  }
  func.func @transform_14(%arg0: i32) -> (i32, i32) {
    %c0_i32 = arith.constant 0 : i32
    %c0_i32_0 = arith.constant 0 : i32
    %c0_i32_1 = arith.constant 0 : i32
    return %c0_i32, %c0_i32_0 : i32, i32
  }
  func.func @transform_15(%arg0: i32) -> (i32, i32) {
    %c0_i32 = arith.constant 0 : i32
    %c0_i32_0 = arith.constant 0 : i32
    %c0_i32_1 = arith.constant 0 : i32
    return %c0_i32, %c0_i32_0 : i32, i32
  }
  func.func @transform_16(%arg0: i32) -> (i32, i32) {
    %c0_i32 = arith.constant 0 : i32
    %c0_i32_0 = arith.constant 0 : i32
    %c0_i32_1 = arith.constant 0 : i32
    return %c0_i32, %c0_i32_0 : i32, i32
  }
  func.func @transform_17(%arg0: i32) -> (i32, i32) {
    %c0_i32 = arith.constant 0 : i32
    %c0_i32_0 = arith.constant 0 : i32
    %c0_i32_1 = arith.constant 0 : i32
    return %c0_i32, %c0_i32_0 : i32, i32
  }
  func.func @transform_18(%arg0: i32) -> (i32, i32) {
    %c0_i32 = arith.constant 0 : i32
    %c0_i32_0 = arith.constant 0 : i32
    %c0_i32_1 = arith.constant 0 : i32
    return %c0_i32, %c0_i32_0 : i32, i32
  }
  func.func @transform_19(%arg0: i32) -> (i32, i32) {
    %c0_i32 = arith.constant 0 : i32
    %c0_i32_0 = arith.constant 0 : i32
    %c0_i32_1 = arith.constant 0 : i32
    return %c0_i32, %c0_i32_0 : i32, i32
  }
  func.func @transform_20(%arg0: i32) -> (i32, i32) {
    %c0_i32 = arith.constant 0 : i32
    %c0_i32_0 = arith.constant 0 : i32
    %c0_i32_1 = arith.constant 0 : i32
    return %c0_i32, %c0_i32_0 : i32, i32
  }
  func.func @transform_21(%arg0: i32) -> (i32, i32) {
    %c0_i32 = arith.constant 0 : i32
    %c0_i32_0 = arith.constant 0 : i32
    %c0_i32_1 = arith.constant 0 : i32
    return %c0_i32, %c0_i32_0 : i32, i32
  }
  func.func @transform_22(%arg0: i32) -> (i32, i32, i32) {
    %c0_i32 = arith.constant 0 : i32
    %c0_i32_0 = arith.constant 0 : i32
    %c0_i32_1 = arith.constant 0 : i32
    return %arg0, %c0_i32, %c0_i32_0 : i32, i32, i32
  }
}

</mosaic_0001>

<llo_original>
// kernel: bert_classifier_forward.1
$region0: #{bert_classifier_forward.1}
  #allocation0 [shape = 'u32[]', space=smem, size = 0x4, offset = 0x4, fixed_abs, tag = 'smem constant byte address 0x4 - core index']
  #allocation1 [shape = 'u32[72,128]{1,0:T(1,128)}', space=vmem, size = 0x9000, scoped, tag = 'internal scratch']
  #allocation2 [shape = 'f32[8,1,32]{2,1,0:T(1,128)}', space=vmem, size = 0x1000, scoped, tag = 'scratch operand']
  %s0 = inlined_call_operand.vmem [shape: f32[2,8,32], index: 0, kind: input, shape index: {}]
  %s1 = inlined_call_operand.vmem [shape: f32[2,1,8], index: 1, kind: input, shape index: {}]
  %s2 = inlined_call_operand.vmem [shape: bf16[32,96], index: 2, kind: input, shape index: {}]
  %s3 = inlined_call_operand.vmem [shape: bf16[32,32], index: 3, kind: input, shape index: {}]
  %s4 = inlined_call_operand.vmem [shape: bf16[32,64], index: 4, kind: input, shape index: {}]
  %s5 = inlined_call_operand.vmem [shape: f32[1,64], index: 5, kind: input, shape index: {}]
  %s6 = inlined_call_operand.vmem [shape: bf16[64,32], index: 6, kind: input, shape index: {}]
  %s7 = inlined_call_operand.vmem [shape: f32[1,32], index: 7, kind: input, shape index: {}]
  %s8 = inlined_call_operand.vmem [shape: f32[1,32], index: 8, kind: input, shape index: {}]
  %s9 = inlined_call_operand.vmem [shape: f32[1,32], index: 9, kind: input, shape index: {}]
  %s10 = inlined_call_operand.vmem [shape: f32[1,32], index: 10, kind: input, shape index: {}]
  %s11 = inlined_call_operand.vmem [shape: f32[1,32], index: 11, kind: input, shape index: {}]
  %s12 = inlined_call_operand.vmem [shape: bf16[32,96], index: 12, kind: input, shape index: {}]
  %s13 = inlined_call_operand.vmem [shape: bf16[32,96], index: 13, kind: input, shape index: {}]
  %s14 = inlined_call_operand.vmem [shape: f32[1,96], index: 14, kind: input, shape index: {}]
  %s15 = inlined_call_operand.vmem [shape: f32[1,32], index: 15, kind: input, shape index: {}]
  %s16 = inlined_call_operand.vmem [shape: bf16[32,96], index: 16, kind: input, shape index: {}]
  %s17 = inlined_call_operand.vmem [shape: bf16[32,96], index: 17, kind: input, shape index: {}]
  %s18 = inlined_call_operand.vmem [shape: f32[1,96], index: 18, kind: input, shape index: {}]
  %s19 = inlined_call_operand.vmem [shape: f32[1,32], index: 19, kind: input, shape index: {}]
  %s20 = inlined_call_operand.vmem [shape: bf16[32,3], index: 20, kind: input, shape index: {}]
  %s21 = inlined_call_operand.vmem [shape: f32[1,3], index: 21, kind: input, shape index: {}]
  %s22 = inlined_call_operand.hbm [shape: f32[2,1,3], index: 22, kind: output, shape index: {}]
  %s23 = sld [smem:[#allocation0]]
  $region121: #{bert_classifier_forward.1} parent=0
    _
  %s25 = ssub.s32 1, %s23
  %s26 = scalar_select 0, %s25, %s23
  $region1: #{bert_classifier_forward.1} parent=0
    #allocation3 [shape = 'u8[1024]{0}', space=vmem, size = 0x400, scoped, tag = 'output window, operand 0']
    #allocation4 [shape = 's32[2]{0}', space=sflag, size = 0x8, scoped, tag = 'scoped memory for bert_classifier_forward.1']
    %27 = vsyncpa [#allocation4], 0
    %s28 = scalar_lea.sflag [#allocation4], 1
    %29 = vsyncpa %s28, 0
    loop: start=0, step=1, limit=4
    $region2: #{bert_classifier_forward.1} parent=1 // loop_pre_header
      _
    $region3: #{bert_classifier_forward.1} parent=1 // loop_header
      %s31 = sphi 0, %s35
      %p32 = scmp.ge.s32.totalorder %s31, 4
      %s41 = sphi 0, %s43
      %s44 = sphi 0, %s41
      %s45 = sphi 0, %s44
      %s61 = sphi 0, %s45
      %s67 = sphi 0, %s69
      %s70 = sphi 0, %s67
      %s71 = sphi 0, %s70
      %s87 = sphi 0, %s71
      %s91 = sphi 0, %s91
      %s93 = sphi 0, %s91
      %s94 = sphi 0, %s93
      %s108 = sphi 0, %s94
      %s112 = sphi 0, %s112
      %s114 = sphi 0, %s112
      %s115 = sphi 0, %s114
      %s129 = sphi 0, %s115
      %s133 = sphi 0, %s133
      %s135 = sphi 0, %s133
      %s136 = sphi 0, %s135
      %s150 = sphi 0, %s136
      %s154 = sphi 0, %s154
      %s156 = sphi 0, %s154
      %s157 = sphi 0, %s156
      %s171 = sphi 0, %s157
      %s175 = sphi 0, %s175
      %s177 = sphi 0, %s175
      %s178 = sphi 0, %s177
      %s192 = sphi 0, %s178
      %s196 = sphi 0, %s196
      %s198 = sphi 0, %s196
      %s199 = sphi 0, %s198
      %s213 = sphi 0, %s199
      %s217 = sphi 0, %s217
      %s219 = sphi 0, %s217
      %s220 = sphi 0, %s219
      %s234 = sphi 0, %s220
      %s238 = sphi 0, %s238
      %s240 = sphi 0, %s238
      %s241 = sphi 0, %s240
      %s255 = sphi 0, %s241
      %s259 = sphi 0, %s259
      %s261 = sphi 0, %s259
      %s262 = sphi 0, %s261
      %s276 = sphi 0, %s262
      %s280 = sphi 0, %s280
      %s282 = sphi 0, %s280
      %s283 = sphi 0, %s282
      %s297 = sphi 0, %s283
      %s301 = sphi 0, %s301
      %s303 = sphi 0, %s301
      %s304 = sphi 0, %s303
      %s318 = sphi 0, %s304
      %s322 = sphi 0, %s322
      %s324 = sphi 0, %s322
      %s325 = sphi 0, %s324
      %s339 = sphi 0, %s325
      %s343 = sphi 0, %s343
      %s345 = sphi 0, %s343
      %s346 = sphi 0, %s345
      %s360 = sphi 0, %s346
      %s364 = sphi 0, %s364
      %s366 = sphi 0, %s364
      %s367 = sphi 0, %s366
      %s381 = sphi 0, %s367
      %s385 = sphi 0, %s385
      %s387 = sphi 0, %s385
      %s388 = sphi 0, %s387
      %s402 = sphi 0, %s388
      %s406 = sphi 0, %s406
      %s408 = sphi 0, %s406
      %s409 = sphi 0, %s408
      %s423 = sphi 0, %s409
      %s427 = sphi 0, %s427
      %s429 = sphi 0, %s427
      %s430 = sphi 0, %s429
      %s444 = sphi 0, %s430
      %s448 = sphi 0, %s448
      %s450 = sphi 0, %s448
      %s451 = sphi 0, %s450
      %s465 = sphi 0, %s451
      %s469 = sphi 0, %s469
      %s471 = sphi 0, %s469
      %s472 = sphi 0, %s471
      %s486 = sphi 0, %s472
      %s490 = sphi 0, %s490
      %s492 = sphi 0, %s490
      %s493 = sphi 0, %s492
      %s507 = sphi 0, %s493
      %s513 = sphi 0, %s515
      %s516 = sphi 0, %s513
      %s517 = sphi 0, %s516
      %s533 = sphi 0, %s517
    $region4: #{bert_classifier_forward.1} parent=1 // loop_header_branch
      %34 = sbr.rel (%p32) target = $region8
    $region5: #{bert_classifier_forward.1} parent=1 // loop_body
      %s36 = ssub.s32 %s31, 1
      %s37 = ssub.s32 %s31, 2
      %s38 = sadd.s32 %s31, 1
      %s39 = ssub.s32 %s31, %s38
      %p40 = scmp.eq.s32.totalorder %s39, 0
      %s42 = sadd.s32 %s41, 1
      %s43 = scalar_select %p40, %s41, %s42
      %p46 = pneg %p40
      %p47 = scmp.eq.s32.totalorder %s31, 1
      %p48 = por %p46, %p47
      %p49 = scmp.ne.s32.totalorder %s41, %s44
      %p50 = scmp.eq.s32.totalorder %s31, 0
      %p51 = por %p49, %p50
      %p52 = scmp.ne.s32.totalorder %s41, %s44
      %p53 = scmp.eq.s32.totalorder %s36, 1
      %p54 = por %p52, %p53
      %p55 = scmp.ne.s32.totalorder %s44, %s45
      %p56 = scmp.eq.s32.totalorder %s36, 0
      %p57 = por %p55, %p56
      %p58 = scmp.ne.s32.totalorder %s44, %s45
      %p59 = scmp.eq.s32.totalorder %s37, 1
      %p60 = por %p58, %p59
      %p62 = scmp.ne.s32.totalorder %s45, %s61
      %p63 = scmp.eq.s32.totalorder %s37, 0
      %p64 = por %p62, %p63
      %s65 = ssub.s32 %s31, %s38
      %p66 = scmp.eq.s32.totalorder %s65, 0
      %s68 = sadd.s32 %s67, 1
      %s69 = scalar_select %p66, %s67, %s68
      %p72 = pneg %p66
      %p73 = scmp.eq.s32.totalorder %s31, 1
      %p74 = por %p72, %p73
      %p75 = scmp.ne.s32.totalorder %s67, %s70
      %p76 = scmp.eq.s32.totalorder %s31, 0
      %p77 = por %p75, %p76
      %p78 = scmp.ne.s32.totalorder %s67, %s70
      %p79 = scmp.eq.s32.totalorder %s36, 1
      %p80 = por %p78, %p79
      %p81 = scmp.ne.s32.totalorder %s70, %s71
      %p82 = scmp.eq.s32.totalorder %s36, 0
      %p83 = por %p81, %p82
      %p84 = scmp.ne.s32.totalorder %s70, %s71
      %p85 = scmp.eq.s32.totalorder %s37, 1
      %p86 = por %p84, %p85
      %p88 = scmp.ne.s32.totalorder %s71, %s87
      %p89 = scmp.eq.s32.totalorder %s37, 0
      %p90 = por %p88, %p89
      %s92 = sadd.s32 %s91, 1
      %p95 = scmp.eq.s32.totalorder %s31, 1
      %p96 = scmp.ne.s32.totalorder %s91, %s93
      %p97 = scmp.eq.s32.totalorder %s31, 0
      %p98 = por %p96, %p97
      %p99 = scmp.ne.s32.totalorder %s91, %s93
      %p100 = scmp.eq.s32.totalorder %s36, 1
      %p101 = por %p99, %p100
      %p102 = scmp.ne.s32.totalorder %s93, %s94
      %p103 = scmp.eq.s32.totalorder %s36, 0
      %p104 = por %p102, %p103
      %p105 = scmp.ne.s32.totalorder %s93, %s94
      %p106 = scmp.eq.s32.totalorder %s37, 1
      %p107 = por %p105, %p106
      %p109 = scmp.ne.s32.totalorder %s94, %s108
      %p110 = scmp.eq.s32.totalorder %s37, 0
      %p111 = por %p109, %p110
      %s113 = sadd.s32 %s112, 1
      %p116 = scmp.eq.s32.totalorder %s31, 1
      %p117 = scmp.ne.s32.totalorder %s112, %s114
      %p118 = scmp.eq.s32.totalorder %s31, 0
      %p119 = por %p117, %p118
      %p120 = scmp.ne.s32.totalorder %s112, %s114
      %p121 = scmp.eq.s32.totalorder %s36, 1
      %p122 = por %p120, %p121
      %p123 = scmp.ne.s32.totalorder %s114, %s115
      %p124 = scmp.eq.s32.totalorder %s36, 0
      %p125 = por %p123, %p124
      %p126 = scmp.ne.s32.totalorder %s114, %s115
      %p127 = scmp.eq.s32.totalorder %s37, 1
      %p128 = por %p126, %p127
      %p130 = scmp.ne.s32.totalorder %s115, %s129
      %p131 = scmp.eq.s32.totalorder %s37, 0
      %p132 = por %p130, %p131
      %s134 = sadd.s32 %s133, 1
      %p137 = scmp.eq.s32.totalorder %s31, 1
      %p138 = scmp.ne.s32.totalorder %s133, %s135
      %p139 = scmp.eq.s32.totalorder %s31, 0
      %p140 = por %p138, %p139
      %p141 = scmp.ne.s32.totalorder %s133, %s135
      %p142 = scmp.eq.s32.totalorder %s36, 1
      %p143 = por %p141, %p142
      %p144 = scmp.ne.s32.totalorder %s135, %s136
      %p145 = scmp.eq.s32.totalorder %s36, 0
      %p146 = por %p144, %p145
      %p147 = scmp.ne.s32.totalorder %s135, %s136
      %p148 = scmp.eq.s32.totalorder %s37, 1
      %p149 = por %p147, %p148
      %p151 = scmp.ne.s32.totalorder %s136, %s150
      %p152 = scmp.eq.s32.totalorder %s37, 0
      %p153 = por %p151, %p152
      %s155 = sadd.s32 %s154, 1
      %p158 = scmp.eq.s32.totalorder %s31, 1
      %p159 = scmp.ne.s32.totalorder %s154, %s156
      %p160 = scmp.eq.s32.totalorder %s31, 0
      %p161 = por %p159, %p160
      %p162 = scmp.ne.s32.totalorder %s154, %s156
      %p163 = scmp.eq.s32.totalorder %s36, 1
      %p164 = por %p162, %p163
      %p165 = scmp.ne.s32.totalorder %s156, %s157
      %p166 = scmp.eq.s32.totalorder %s36, 0
      %p167 = por %p165, %p166
      %p168 = scmp.ne.s32.totalorder %s156, %s157
      %p169 = scmp.eq.s32.totalorder %s37, 1
      %p170 = por %p168, %p169
      %p172 = scmp.ne.s32.totalorder %s157, %s171
      %p173 = scmp.eq.s32.totalorder %s37, 0
      %p174 = por %p172, %p173
      %s176 = sadd.s32 %s175, 1
      %p179 = scmp.eq.s32.totalorder %s31, 1
      %p180 = scmp.ne.s32.totalorder %s175, %s177
      %p181 = scmp.eq.s32.totalorder %s31, 0
      %p182 = por %p180, %p181
      %p183 = scmp.ne.s32.totalorder %s175, %s177
      %p184 = scmp.eq.s32.totalorder %s36, 1
      %p185 = por %p183, %p184
      %p186 = scmp.ne.s32.totalorder %s177, %s178
      %p187 = scmp.eq.s32.totalorder %s36, 0
      %p188 = por %p186, %p187
      %p189 = scmp.ne.s32.totalorder %s177, %s178
      %p190 = scmp.eq.s32.totalorder %s37, 1
      %p191 = por %p189, %p190
      %p193 = scmp.ne.s32.totalorder %s178, %s192
      %p194 = scmp.eq.s32.totalorder %s37, 0
      %p195 = por %p193, %p194
      %s197 = sadd.s32 %s196, 1
      %p200 = scmp.eq.s32.totalorder %s31, 1
      %p201 = scmp.ne.s32.totalorder %s196, %s198
      %p202 = scmp.eq.s32.totalorder %s31, 0
      %p203 = por %p201, %p202
      %p204 = scmp.ne.s32.totalorder %s196, %s198
      %p205 = scmp.eq.s32.totalorder %s36, 1
      %p206 = por %p204, %p205
      %p207 = scmp.ne.s32.totalorder %s198, %s199
      %p208 = scmp.eq.s32.totalorder %s36, 0
      %p209 = por %p207, %p208
      %p210 = scmp.ne.s32.totalorder %s198, %s199
      %p211 = scmp.eq.s32.totalorder %s37, 1
      %p212 = por %p210, %p211
      %p214 = scmp.ne.s32.totalorder %s199, %s213
      %p215 = scmp.eq.s32.totalorder %s37, 0
      %p216 = por %p214, %p215
      %s218 = sadd.s32 %s217, 1
      %p221 = scmp.eq.s32.totalorder %s31, 1
      %p222 = scmp.ne.s32.totalorder %s217, %s219
      %p223 = scmp.eq.s32.totalorder %s31, 0
      %p224 = por %p222, %p223
      %p225 = scmp.ne.s32.totalorder %s217, %s219
      %p226 = scmp.eq.s32.totalorder %s36, 1
      %p227 = por %p225, %p226
      %p228 = scmp.ne.s32.totalorder %s219, %s220
      %p229 = scmp.eq.s32.totalorder %s36, 0
      %p230 = por %p228, %p229
      %p231 = scmp.ne.s32.totalorder %s219, %s220
      %p232 = scmp.eq.s32.totalorder %s37, 1
      %p233 = por %p231, %p232
      %p235 = scmp.ne.s32.totalorder %s220, %s234
      %p236 = scmp.eq.s32.totalorder %s37, 0
      %p237 = por %p235, %p236
      %s239 = sadd.s32 %s238, 1
      %p242 = scmp.eq.s32.totalorder %s31, 1
      %p243 = scmp.ne.s32.totalorder %s238, %s240
      %p244 = scmp.eq.s32.totalorder %s31, 0
      %p245 = por %p243, %p244
      %p246 = scmp.ne.s32.totalorder %s238, %s240
      %p247 = scmp.eq.s32.totalorder %s36, 1
      %p248 = por %p246, %p247
      %p249 = scmp.ne.s32.totalorder %s240, %s241
      %p250 = scmp.eq.s32.totalorder %s36, 0
      %p251 = por %p249, %p250
      %p252 = scmp.ne.s32.totalorder %s240, %s241
      %p253 = scmp.eq.s32.totalorder %s37, 1
      %p254 = por %p252, %p253
      %p256 = scmp.ne.s32.totalorder %s241, %s255
      %p257 = scmp.eq.s32.totalorder %s37, 0
      %p258 = por %p256, %p257
      %s260 = sadd.s32 %s259, 1
      %p263 = scmp.eq.s32.totalorder %s31, 1
      %p264 = scmp.ne.s32.totalorder %s259, %s261
      %p265 = scmp.eq.s32.totalorder %s31, 0
      %p266 = por %p264, %p265
      %p267 = scmp.ne.s32.totalorder %s259, %s261
      %p268 = scmp.eq.s32.totalorder %s36, 1
      %p269 = por %p267, %p268
      %p270 = scmp.ne.s32.totalorder %s261, %s262
      %p271 = scmp.eq.s32.totalorder %s36, 0
      %p272 = por %p270, %p271
      %p273 = scmp.ne.s32.totalorder %s261, %s262
      %p274 = scmp.eq.s32.totalorder %s37, 1
      %p275 = por %p273, %p274
      %p277 = scmp.ne.s32.totalorder %s262, %s276
      %p278 = scmp.eq.s32.totalorder %s37, 0
      %p279 = por %p277, %p278
      %s281 = sadd.s32 %s280, 1
      %p284 = scmp.eq.s32.totalorder %s31, 1
      %p285 = scmp.ne.s32.totalorder %s280, %s282
      %p286 = scmp.eq.s32.totalorder %s31, 0
      %p287 = por %p285, %p286
      %p288 = scmp.ne.s32.totalorder %s280, %s282
      %p289 = scmp.eq.s32.totalorder %s36, 1
      %p290 = por %p288, %p289
      %p291 = scmp.ne.s32.totalorder %s282, %s283
      %p292 = scmp.eq.s32.totalorder %s36, 0
      %p293 = por %p291, %p292
      %p294 = scmp.ne.s32.totalorder %s282, %s283
      %p295 = scmp.eq.s32.totalorder %s37, 1
      %p296 = por %p294, %p295
      %p298 = scmp.ne.s32.totalorder %s283, %s297
      %p299 = scmp.eq.s32.totalorder %s37, 0
      %p300 = por %p298, %p299
      %s302 = sadd.s32 %s301, 1
      %p305 = scmp.eq.s32.totalorder %s31, 1
      %p306 = scmp.ne.s32.totalorder %s301, %s303
      %p307 = scmp.eq.s32.totalorder %s31, 0
      %p308 = por %p306, %p307
      %p309 = scmp.ne.s32.totalorder %s301, %s303
      %p310 = scmp.eq.s32.totalorder %s36, 1
      %p311 = por %p309, %p310
      %p312 = scmp.ne.s32.totalorder %s303, %s304
      %p313 = scmp.eq.s32.totalorder %s36, 0
      %p314 = por %p312, %p313
      %p315 = scmp.ne.s32.totalorder %s303, %s304
      %p316 = scmp.eq.s32.totalorder %s37, 1
      %p317 = por %p315, %p316
      %p319 = scmp.ne.s32.totalorder %s304, %s318
      %p320 = scmp.eq.s32.totalorder %s37, 0
      %p321 = por %p319, %p320
      %s323 = sadd.s32 %s322, 1
      %p326 = scmp.eq.s32.totalorder %s31, 1
      %p327 = scmp.ne.s32.totalorder %s322, %s324
      %p328 = scmp.eq.s32.totalorder %s31, 0
      %p329 = por %p327, %p328
      %p330 = scmp.ne.s32.totalorder %s322, %s324
      %p331 = scmp.eq.s32.totalorder %s36, 1
      %p332 = por %p330, %p331
      %p333 = scmp.ne.s32.totalorder %s324, %s325
      %p334 = scmp.eq.s32.totalorder %s36, 0
      %p335 = por %p333, %p334
      %p336 = scmp.ne.s32.totalorder %s324, %s325
      %p337 = scmp.eq.s32.totalorder %s37, 1
      %p338 = por %p336, %p337
      %p340 = scmp.ne.s32.totalorder %s325, %s339
      %p341 = scmp.eq.s32.totalorder %s37, 0
      %p342 = por %p340, %p341
      %s344 = sadd.s32 %s343, 1
      %p347 = scmp.eq.s32.totalorder %s31, 1
      %p348 = scmp.ne.s32.totalorder %s343, %s345
      %p349 = scmp.eq.s32.totalorder %s31, 0
      %p350 = por %p348, %p349
      %p351 = scmp.ne.s32.totalorder %s343, %s345
      %p352 = scmp.eq.s32.totalorder %s36, 1
      %p353 = por %p351, %p352
      %p354 = scmp.ne.s32.totalorder %s345, %s346
      %p355 = scmp.eq.s32.totalorder %s36, 0
      %p356 = por %p354, %p355
      %p357 = scmp.ne.s32.totalorder %s345, %s346
      %p358 = scmp.eq.s32.totalorder %s37, 1
      %p359 = por %p357, %p358
      %p361 = scmp.ne.s32.totalorder %s346, %s360
      %p362 = scmp.eq.s32.totalorder %s37, 0
      %p363 = por %p361, %p362
      %s365 = sadd.s32 %s364, 1
      %p368 = scmp.eq.s32.totalorder %s31, 1
      %p369 = scmp.ne.s32.totalorder %s364, %s366
      %p370 = scmp.eq.s32.totalorder %s31, 0
      %p371 = por %p369, %p370
      %p372 = scmp.ne.s32.totalorder %s364, %s366
      %p373 = scmp.eq.s32.totalorder %s36, 1
      %p374 = por %p372, %p373
      %p375 = scmp.ne.s32.totalorder %s366, %s367
      %p376 = scmp.eq.s32.totalorder %s36, 0
      %p377 = por %p375, %p376
      %p378 = scmp.ne.s32.totalorder %s366, %s367
      %p379 = scmp.eq.s32.totalorder %s37, 1
      %p380 = por %p378, %p379
      %p382 = scmp.ne.s32.totalorder %s367, %s381
      %p383 = scmp.eq.s32.totalorder %s37, 0
      %p384 = por %p382, %p383
      %s386 = sadd.s32 %s385, 1
      %p389 = scmp.eq.s32.totalorder %s31, 1
      %p390 = scmp.ne.s32.totalorder %s385, %s387
      %p391 = scmp.eq.s32.totalorder %s31, 0
      %p392 = por %p390, %p391
      %p393 = scmp.ne.s32.totalorder %s385, %s387
      %p394 = scmp.eq.s32.totalorder %s36, 1
      %p395 = por %p393, %p394
      %p396 = scmp.ne.s32.totalorder %s387, %s388
      %p397 = scmp.eq.s32.totalorder %s36, 0
      %p398 = por %p396, %p397
      %p399 = scmp.ne.s32.totalorder %s387, %s388
      %p400 = scmp.eq.s32.totalorder %s37, 1
      %p401 = por %p399, %p400
      %p403 = scmp.ne.s32.totalorder %s388, %s402
      %p404 = scmp.eq.s32.totalorder %s37, 0
      %p405 = por %p403, %p404
      %s407 = sadd.s32 %s406, 1
      %p410 = scmp.eq.s32.totalorder %s31, 1
      %p411 = scmp.ne.s32.totalorder %s406, %s408
      %p412 = scmp.eq.s32.totalorder %s31, 0
      %p413 = por %p411, %p412
      %p414 = scmp.ne.s32.totalorder %s406, %s408
      %p415 = scmp.eq.s32.totalorder %s36, 1
      %p416 = por %p414, %p415
      %p417 = scmp.ne.s32.totalorder %s408, %s409
      %p418 = scmp.eq.s32.totalorder %s36, 0
      %p419 = por %p417, %p418
      %p420 = scmp.ne.s32.totalorder %s408, %s409
      %p421 = scmp.eq.s32.totalorder %s37, 1
      %p422 = por %p420, %p421
      %p424 = scmp.ne.s32.totalorder %s409, %s423
      %p425 = scmp.eq.s32.totalorder %s37, 0
      %p426 = por %p424, %p425
      %s428 = sadd.s32 %s427, 1
      %p431 = scmp.eq.s32.totalorder %s31, 1
      %p432 = scmp.ne.s32.totalorder %s427, %s429
      %p433 = scmp.eq.s32.totalorder %s31, 0
      %p434 = por %p432, %p433
      %p435 = scmp.ne.s32.totalorder %s427, %s429
      %p436 = scmp.eq.s32.totalorder %s36, 1
      %p437 = por %p435, %p436
      %p438 = scmp.ne.s32.totalorder %s429, %s430
      %p439 = scmp.eq.s32.totalorder %s36, 0
      %p440 = por %p438, %p439
      %p441 = scmp.ne.s32.totalorder %s429, %s430
      %p442 = scmp.eq.s32.totalorder %s37, 1
      %p443 = por %p441, %p442
      %p445 = scmp.ne.s32.totalorder %s430, %s444
      %p446 = scmp.eq.s32.totalorder %s37, 0
      %p447 = por %p445, %p446
      %s449 = sadd.s32 %s448, 1
      %p452 = scmp.eq.s32.totalorder %s31, 1
      %p453 = scmp.ne.s32.totalorder %s448, %s450
      %p454 = scmp.eq.s32.totalorder %s31, 0
      %p455 = por %p453, %p454
      %p456 = scmp.ne.s32.totalorder %s448, %s450
      %p457 = scmp.eq.s32.totalorder %s36, 1
      %p458 = por %p456, %p457
      %p459 = scmp.ne.s32.totalorder %s450, %s451
      %p460 = scmp.eq.s32.totalorder %s36, 0
      %p461 = por %p459, %p460
      %p462 = scmp.ne.s32.totalorder %s450, %s451
      %p463 = scmp.eq.s32.totalorder %s37, 1
      %p464 = por %p462, %p463
      %p466 = scmp.ne.s32.totalorder %s451, %s465
      %p467 = scmp.eq.s32.totalorder %s37, 0
      %p468 = por %p466, %p467
      %s470 = sadd.s32 %s469, 1
      %p473 = scmp.eq.s32.totalorder %s31, 1
      %p474 = scmp.ne.s32.totalorder %s469, %s471
      %p475 = scmp.eq.s32.totalorder %s31, 0
      %p476 = por %p474, %p475
      %p477 = scmp.ne.s32.totalorder %s469, %s471
      %p478 = scmp.eq.s32.totalorder %s36, 1
      %p479 = por %p477, %p478
      %p480 = scmp.ne.s32.totalorder %s471, %s472
      %p481 = scmp.eq.s32.totalorder %s36, 0
      %p482 = por %p480, %p481
      %p483 = scmp.ne.s32.totalorder %s471, %s472
      %p484 = scmp.eq.s32.totalorder %s37, 1
      %p485 = por %p483, %p484
      %p487 = scmp.ne.s32.totalorder %s472, %s486
      %p488 = scmp.eq.s32.totalorder %s37, 0
      %p489 = por %p487, %p488
      %s491 = sadd.s32 %s490, 1
      %p494 = scmp.eq.s32.totalorder %s31, 1
      %p495 = scmp.ne.s32.totalorder %s490, %s492
      %p496 = scmp.eq.s32.totalorder %s31, 0
      %p497 = por %p495, %p496
      %p498 = scmp.ne.s32.totalorder %s490, %s492
      %p499 = scmp.eq.s32.totalorder %s36, 1
      %p500 = por %p498, %p499
      %p501 = scmp.ne.s32.totalorder %s492, %s493
      %p502 = scmp.eq.s32.totalorder %s36, 0
      %p503 = por %p501, %p502
      %p504 = scmp.ne.s32.totalorder %s492, %s493
      %p505 = scmp.eq.s32.totalorder %s37, 1
      %p506 = por %p504, %p505
      %p508 = scmp.ne.s32.totalorder %s493, %s507
      %p509 = scmp.eq.s32.totalorder %s37, 0
      %p510 = por %p508, %p509
      %s511 = ssub.s32 %s31, %s38
      %p512 = scmp.eq.s32.totalorder %s511, 0
      %s514 = sadd.s32 %s513, 1
      %s515 = scalar_select %p512, %s513, %s514
      %p518 = pneg %p512
      %p519 = scmp.eq.s32.totalorder %s31, 1
      %p520 = por %p518, %p519
      %p521 = scmp.ne.s32.totalorder %s513, %s516
      %p522 = scmp.eq.s32.totalorder %s31, 0
      %p523 = por %p521, %p522
      %p524 = scmp.ne.s32.totalorder %s513, %s516
      %p525 = scmp.eq.s32.totalorder %s36, 1
      %p526 = por %p524, %p525
      %p527 = scmp.ne.s32.totalorder %s516, %s517
      %p528 = scmp.eq.s32.totalorder %s36, 0
      %p529 = por %p527, %p528
      %p530 = scmp.ne.s32.totalorder %s516, %s517
      %p531 = scmp.eq.s32.totalorder %s37, 1
      %p532 = por %p530, %p531
      %p534 = scmp.ne.s32.totalorder %s517, %s533
      %p535 = scmp.eq.s32.totalorder %s37, 0
      %p536 = por %p534, %p535
      %p537 = scmp.le.s32.totalorder 1, %s31
      %p538 = scmp.lt.s32.totalorder %s31, 3
      %p539 = pnand %p537, %p538
      %p540 = pneg %p539
      // Predicated region
      $region9: #{bert_classifier_forward.1} parent=5 // pred_check
        _
      $region10: #{bert_classifier_forward.1} parent=5 // pred_check_branch
        %542 = sbr.rel (%p539) target = $region12
      $region11: #{bert_classifier_forward.1} parent=5 // pred_region
        %s543 = ssub.s32 %s31, 1
        // Predicated region
        $region13: #{bert_classifier_forward.1} parent=11 // pred_check
          %p544 = pneg %p104
        $region14: #{bert_classifier_forward.1} parent=11 // pred_check_branch
          %546 = sbr.rel (%p544) target = $region16
        $region15: #{bert_classifier_forward.1} parent=11 // pred_region
          _
        $region16: #{bert_classifier_forward.1} parent=11 // pred_fallthru
          _
        // Predicated region
        $region17: #{bert_classifier_forward.1} parent=11 // pred_check
          %p547 = pneg %p125
        $region18: #{bert_classifier_forward.1} parent=11 // pred_check_branch
          %549 = sbr.rel (%p547) target = $region20
        $region19: #{bert_classifier_forward.1} parent=11 // pred_region
          _
        $region20: #{bert_classifier_forward.1} parent=11 // pred_fallthru
          _
        // Predicated region
        $region21: #{bert_classifier_forward.1} parent=11 // pred_check
          %p550 = pneg %p146
        $region22: #{bert_classifier_forward.1} parent=11 // pred_check_branch
          %552 = sbr.rel (%p550) target = $region24
        $region23: #{bert_classifier_forward.1} parent=11 // pred_region
          _
        $region24: #{bert_classifier_forward.1} parent=11 // pred_fallthru
          _
        // Predicated region
        $region25: #{bert_classifier_forward.1} parent=11 // pred_check
          %p553 = pneg %p167
        $region26: #{bert_classifier_forward.1} parent=11 // pred_check_branch
          %555 = sbr.rel (%p553) target = $region28
        $region27: #{bert_classifier_forward.1} parent=11 // pred_region
          _
        $region28: #{bert_classifier_forward.1} parent=11 // pred_fallthru
          _
        // Predicated region
        $region29: #{bert_classifier_forward.1} parent=11 // pred_check
          %p556 = pneg %p188
        $region30: #{bert_classifier_forward.1} parent=11 // pred_check_branch
          %558 = sbr.rel (%p556) target = $region32
        $region31: #{bert_classifier_forward.1} parent=11 // pred_region
          _
        $region32: #{bert_classifier_forward.1} parent=11 // pred_fallthru
          _
        // Predicated region
        $region33: #{bert_classifier_forward.1} parent=11 // pred_check
          %p559 = pneg %p209
        $region34: #{bert_classifier_forward.1} parent=11 // pred_check_branch
          %561 = sbr.rel (%p559) target = $region36
        $region35: #{bert_classifier_forward.1} parent=11 // pred_region
          _
        $region36: #{bert_classifier_forward.1} parent=11 // pred_fallthru
          _
        // Predicated region
        $region37: #{bert_classifier_forward.1} parent=11 // pred_check
          %p562 = pneg %p230
        $region38: #{bert_classifier_forward.1} parent=11 // pred_check_branch
          %564 = sbr.rel (%p562) target = $region40
        $region39: #{bert_classifier_forward.1} parent=11 // pred_region
          _
        $region40: #{bert_classifier_forward.1} parent=11 // pred_fallthru
          _
        // Predicated region
        $region41: #{bert_classifier_forward.1} parent=11 // pred_check
          %p565 = pneg %p251
        $region42: #{bert_classifier_forward.1} parent=11 // pred_check_branch
          %567 = sbr.rel (%p565) target = $region44
        $region43: #{bert_classifier_forward.1} parent=11 // pred_region
          _
        $region44: #{bert_classifier_forward.1} parent=11 // pred_fallthru
          _
        // Predicated region
        $region45: #{bert_classifier_forward.1} parent=11 // pred_check
          %p568 = pneg %p272
        $region46: #{bert_classifier_forward.1} parent=11 // pred_check_branch
          %570 = sbr.rel (%p568) target = $region48
        $region47: #{bert_classifier_forward.1} parent=11 // pred_region
          _
        $region48: #{bert_classifier_forward.1} parent=11 // pred_fallthru
          _
        // Predicated region
        $region49: #{bert_classifier_forward.1} parent=11 // pred_check
          %p571 = pneg %p293
        $region50: #{bert_classifier_forward.1} parent=11 // pred_check_branch
          %573 = sbr.rel (%p571) target = $region52
        $region51: #{bert_classifier_forward.1} parent=11 // pred_region
          _
        $region52: #{bert_classifier_forward.1} parent=11 // pred_fallthru
          _
        // Predicated region
        $region53: #{bert_classifier_forward.1} parent=11 // pred_check
          %p574 = pneg %p314
        $region54: #{bert_classifier_forward.1} parent=11 // pred_check_branch
          %576 = sbr.rel (%p574) target = $region56
        $region55: #{bert_classifier_forward.1} parent=11 // pred_region
          _
        $region56: #{bert_classifier_forward.1} parent=11 // pred_fallthru
          _
        // Predicated region
        $region57: #{bert_classifier_forward.1} parent=11 // pred_check
          %p577 = pneg %p335
        $region58: #{bert_classifier_forward.1} parent=11 // pred_check_branch
          %579 = sbr.rel (%p577) target = $region60
        $region59: #{bert_classifier_forward.1} parent=11 // pred_region
          _
        $region60: #{bert_classifier_forward.1} parent=11 // pred_fallthru
          _
        // Predicated region
        $region61: #{bert_classifier_forward.1} parent=11 // pred_check
          %p580 = pneg %p356
        $region62: #{bert_classifier_forward.1} parent=11 // pred_check_branch
          %582 = sbr.rel (%p580) target = $region64
        $region63: #{bert_classifier_forward.1} parent=11 // pred_region
          _
        $region64: #{bert_classifier_forward.1} parent=11 // pred_fallthru
          _
        // Predicated region
        $region65: #{bert_classifier_forward.1} parent=11 // pred_check
          %p583 = pneg %p377
        $region66: #{bert_classifier_forward.1} parent=11 // pred_check_branch
          %585 = sbr.rel (%p583) target = $region68
        $region67: #{bert_classifier_forward.1} parent=11 // pred_region
          _
        $region68: #{bert_classifier_forward.1} parent=11 // pred_fallthru
          _
        // Predicated region
        $region69: #{bert_classifier_forward.1} parent=11 // pred_check
          %p586 = pneg %p398
        $region70: #{bert_classifier_forward.1} parent=11 // pred_check_branch
          %588 = sbr.rel (%p586) target = $region72
        $region71: #{bert_classifier_forward.1} parent=11 // pred_region
          _
        $region72: #{bert_classifier_forward.1} parent=11 // pred_fallthru
          _
        // Predicated region
        $region73: #{bert_classifier_forward.1} parent=11 // pred_check
          %p589 = pneg %p419
        $region74: #{bert_classifier_forward.1} parent=11 // pred_check_branch
          %591 = sbr.rel (%p589) target = $region76
        $region75: #{bert_classifier_forward.1} parent=11 // pred_region
          _
        $region76: #{bert_classifier_forward.1} parent=11 // pred_fallthru
          _
        // Predicated region
        $region77: #{bert_classifier_forward.1} parent=11 // pred_check
          %p592 = pneg %p440
        $region78: #{bert_classifier_forward.1} parent=11 // pred_check_branch
          %594 = sbr.rel (%p592) target = $region80
        $region79: #{bert_classifier_forward.1} parent=11 // pred_region
          _
        $region80: #{bert_classifier_forward.1} parent=11 // pred_fallthru
          _
        // Predicated region
        $region81: #{bert_classifier_forward.1} parent=11 // pred_check
          %p595 = pneg %p461
        $region82: #{bert_classifier_forward.1} parent=11 // pred_check_branch
          %597 = sbr.rel (%p595) target = $region84
        $region83: #{bert_classifier_forward.1} parent=11 // pred_region
          _
        $region84: #{bert_classifier_forward.1} parent=11 // pred_fallthru
          _
        // Predicated region
        $region85: #{bert_classifier_forward.1} parent=11 // pred_check
          %p598 = pneg %p482
        $region86: #{bert_classifier_forward.1} parent=11 // pred_check_branch
          %600 = sbr.rel (%p598) target = $region88
        $region87: #{bert_classifier_forward.1} parent=11 // pred_region
          _
        $region88: #{bert_classifier_forward.1} parent=11 // pred_fallthru
          _
        // Predicated region
        $region89: #{bert_classifier_forward.1} parent=11 // pred_check
          %p601 = pneg %p503
        $region90: #{bert_classifier_forward.1} parent=11 // pred_check_branch
          %603 = sbr.rel (%p601) target = $region92
        $region91: #{bert_classifier_forward.1} parent=11 // pred_region
          _
        $region92: #{bert_classifier_forward.1} parent=11 // pred_fallthru
          _
      $region12: #{bert_classifier_forward.1} parent=5 // pred_fallthru
        _
      %p604 = scmp.lt.s32.totalorder %s31, 2
      // Predicated region
      $region93: #{bert_classifier_forward.1} parent=5 // pred_check
        %p605 = pneg %p604
      $region94: #{bert_classifier_forward.1} parent=5 // pred_check_branch
        %607 = sbr.rel (%p605) target = $region96
      $region95: #{bert_classifier_forward.1} parent=5 // pred_region
        // Predicated region
        $region97: #{bert_classifier_forward.1} parent=95 // pred_check
          %p608 = pneg %p51
        $region98: #{bert_classifier_forward.1} parent=95 // pred_check_branch
          %610 = sbr.rel (%p608) target = $region100
        $region99: #{bert_classifier_forward.1} parent=95 // pred_region
          %p611 = scmp.lt.s32.totalorder %s31, 1
          %s612 = scalar_select %p611, %s31, 1
          %s613 = smul.addr %s612, 8
          %s614 = scalar_lea.vmem %s0, %s613
        $region100: #{bert_classifier_forward.1} parent=95 // pred_fallthru
          _
        // Predicated region
        $region101: #{bert_classifier_forward.1} parent=95 // pred_check
          %p615 = pneg %p77
        $region102: #{bert_classifier_forward.1} parent=95 // pred_check_branch
          %617 = sbr.rel (%p615) target = $region104
        $region103: #{bert_classifier_forward.1} parent=95 // pred_region
          %p618 = scmp.lt.s32.totalorder %s31, 1
          %s619 = scalar_select %p618, %s31, 1
          %s620 = scalar_lea.vmem %s1, %s619
        $region104: #{bert_classifier_forward.1} parent=95 // pred_fallthru
          _
      $region96: #{bert_classifier_forward.1} parent=5 // pred_fallthru
        _
      %p621 = scmp.le.s32.totalorder 1, %s31
      %p622 = scmp.lt.s32.totalorder %s31, 3
      %p623 = pnand %p621, %p622
      %p624 = pneg %p623
      // Predicated region
      $region105: #{bert_classifier_forward.1} parent=5 // pred_check
        _
      $region106: #{bert_classifier_forward.1} parent=5 // pred_check_branch
        %626 = sbr.rel (%p623) target = $region108
      $region107: #{bert_classifier_forward.1} parent=5 // pred_region
        %s627 = ssub.s32 %s31, 1
        %p628 = scmp.lt.s32.totalorder %s36, 1
        %s629 = scalar_select %p628, %s36, 1
        %s630 = smul.addr %s629, 8
        %s631 = scalar_lea.vmem %s0, %s630
        %p632 = pneg %p57
        %p633 = pneg %p54
        %p634 = scmp.lt.s32.totalorder %s36, 1
        %s635 = scalar_select %p634, %s36, 1
        %s636 = scalar_lea.vmem %s1, %s635
        %p637 = pneg %p83
        %p638 = pneg %p80
        %p639 = pneg %p104
        %p640 = pneg %p101
        %p641 = pneg %p125
        %p642 = pneg %p122
        %p643 = pneg %p146
        %p644 = pneg %p143
        %p645 = pneg %p167
        %p646 = pneg %p164
        %p647 = pneg %p188
        %p648 = pneg %p185
        %p649 = pneg %p209
        %p650 = pneg %p206
        %p651 = pneg %p230
        %p652 = pneg %p227
        %p653 = pneg %p251
        %p654 = pneg %p248
        %p655 = pneg %p272
        %p656 = pneg %p269
        %p657 = pneg %p293
        %p658 = pneg %p290
        %p659 = pneg %p314
        %p660 = pneg %p311
        %p661 = pneg %p335
        %p662 = pneg %p332
        %p663 = pneg %p356
        %p664 = pneg %p353
        %p665 = pneg %p377
        %p666 = pneg %p374
        %p667 = pneg %p398
        %p668 = pneg %p395
        %p669 = pneg %p419
        %p670 = pneg %p416
        %p671 = pneg %p440
        %p672 = pneg %p437
        %p673 = pneg %p461
        %p674 = pneg %p458
        %p675 = pneg %p482
        %p676 = pneg %p479
        %p677 = pneg %p503
        %p678 = pneg %p500
        %p679 = pneg %p529
        %p680 = pneg %p526
        %s681 = sand.u32 %s516, 1
        %s682 = scalar_lea.sflag [#allocation4], %s681
        %s683 = sand.u32 %s516, 1
        %s684 = scalar_lea.vmem [#allocation3], %s683
        %p685 = scmp.lt.s32.totalorder %s36, 1
        %s686 = scalar_select %p685, %s36, 1
        %s687 = smul.addr %s686, 8
        %s688 = scalar_lea.vmem %s0, %s687
        %p689 = scmp.lt.s32.totalorder %s36, 1
        %s690 = scalar_select %p689, %s36, 1
        %s691 = scalar_lea.vmem %s1, %s690
        %v693 = vld [vmem:[%s688] sm:$0xff]
        %v694 = vpack.c.bf16 %v693, %v693
        %v695 = vld [vmem:[%s2] sm:$0xf]
        %v696 = vld [vmem:[%s2 + $0x4] sm:$0xf]
        %v697 = vld [vmem:[%s2 + $0x8] sm:$0xf]
        %v698 = vld [vmem:[%s2 + $0xc] sm:$0xf]
        %v703 = vunpack.c.l.b16 %v695
        %v704 = vunpack.c.l.b16 %v696
        %v705 = vunpack.c.l.b16 %v697
        %v706 = vunpack.c.l.b16 %v698
        %v707 = vpack.c.b16 %v704, %v703
        %v708 = vpack.c.b16 %v706, %v705
        %vm711 = vcmask 261120
        %v713 = vsel %vm711, %v694, 0
        %715 = vmatpush.bf16.msra.mxu0 0
        %716 = vmatpush.bf16.msra.mxu0 0
        %717 = vmatpush.bf16.msra.mxu0 0
        %718 = vmatpush.bf16.msra.mxu0 0
        %719 = vmatpush.bf16.msra.mxu0 0
        %720 = vmatpush.bf16.msra.mxu0 0
        %721 = vmatpush.bf16.msra.mxu0 %v708
        %722 = vmatpush.bf16.msra.mxu0 %v707
        %723 = vmatmul.bf16.gmra.mxu0 %v713
        %v724 = vpop.f32.mrf.mxu0
        %v725 = vadd.f32 0.0, %v724
        %v726 = vpop.f32.mrf.mxu0
        %727 = vdwg.mxu0
        %v728 = vpack.c.bf16 %v725, %v725
        %v730 = vunpack.c.l.b16 %v728
        %v731 = vpack.c.b16 %v730, %v730
        %732 = vrot.lane.b32.xlu0 %v731, 96
        %v733 = vpop.permute.xlu0 %732
        %v735 = vsel %vm711, %v728, 0
        %v738 = vsel %vm711, %v733, 0
        %740 = vmatpush.bf16.xpose.msra.mxu0 0
        %741 = vmatpush.bf16.xpose.msra.mxu0 0
        %742 = vmatpush.bf16.xpose.msra.mxu0 0
        %743 = vmatpush.bf16.xpose.msra.mxu0 0
        %744 = vmatpush.bf16.xpose.msra.mxu0 0
        %745 = vmatpush.bf16.xpose.msra.mxu0 0
        %746 = vmatpush.bf16.xpose.msra.mxu0 0
        %747 = vmatpush.bf16.xpose.msra.mxu0 %v738
        %748 = vmatmul.bf16.gmra.mxu0 %v735
        %v749 = vpop.f32.mrf.mxu0
        %v750 = vadd.f32 0.0, %v749
        %v751 = vpop.f32.mrf.mxu0
        %752 = vdwg.mxu0
        %v753 = vmul.f32 %v750, 0.17677669
        %v754 = vld [vmem:[%s691] sm:$0x1]
        %v755 = vsub.f32 1.0, %v754
        %v756 = vmul.f32 %v755, -1e+09
        %v758 = vperm.slane %v756, 0
        %v760 = vadd.f32 %v753, %v758
        %vm761 = vcmask 64512
        %v762 = vsel %vm761, %v760, -inf
        %763 = vmax.xlane.f32.xlu0 %v762
        %v764 = vpop.xlane.xlu0 %763
        %v765 = vsub.f32 %v760, %v764
        %v766 = vmul.f32 %v765, 1.442695
        %v767 = vpow.pop %v766
        %v768 = vsel %vm761, %v767, 0.0
        %769 = vadd.xlane.f32.xlu0 %v768
        %v770 = vpop.xlane.xlu0 %769
        %v771 = vrcp.pop %v770
        %v772 = vmul.f32 %v767, %v771
        %v773 = vpack.c.bf16 %v772, %v772
        %774 = vrot.lane.b32.xlu0 %v731, 64
        %v775 = vpop.permute.xlu0 %774
        %v777 = vsel %vm761, %v773, 0
        %vm779 = vcmask 1043456
        %v781 = vsel %vm779, %v775, 0
        %783 = vmatpush.bf16.msra.mxu0 0
        %784 = vmatpush.bf16.msra.mxu0 0
        %785 = vmatpush.bf16.msra.mxu0 0
        %786 = vmatpush.bf16.msra.mxu0 0
        %787 = vmatpush.bf16.msra.mxu0 0
        %788 = vmatpush.bf16.msra.mxu0 0
        %789 = vmatpush.bf16.msra.mxu0 0
        %790 = vmatpush.bf16.msra.mxu0 %v781
        %791 = vmatmul.bf16.gmra.mxu0 %v777
        %v792 = vpop.f32.mrf.mxu0
        %v793 = vadd.f32 0.0, %v792
        %v794 = vpop.f32.mrf.mxu0
        %795 = vdwg.mxu0
        %v796 = vpack.c.bf16 %v793, %v793
        %v797 = vld [vmem:[%s3] sm:$0xf]
        %v798 = vld [vmem:[%s3 + $0x4] sm:$0xf]
        %v799 = vld [vmem:[%s3 + $0x8] sm:$0xf]
        %v800 = vld [vmem:[%s3 + $0xc] sm:$0xf]
        %v805 = vunpack.c.l.b16 %v797
        %v806 = vunpack.c.l.b16 %v798
        %v807 = vunpack.c.l.b16 %v799
        %v808 = vunpack.c.l.b16 %v800
        %v809 = vpack.c.b16 %v806, %v805
        %v810 = vpack.c.b16 %v808, %v807
        %v814 = vsel %vm711, %v796, 0
        %816 = vmatpush.bf16.msra.mxu0 0
        %817 = vmatpush.bf16.msra.mxu0 0
        %818 = vmatpush.bf16.msra.mxu0 0
        %819 = vmatpush.bf16.msra.mxu0 0
        %820 = vmatpush.bf16.msra.mxu0 0
        %821 = vmatpush.bf16.msra.mxu0 0
        %822 = vmatpush.bf16.msra.mxu0 %v810
        %823 = vmatpush.bf16.msra.mxu0 %v809
        %824 = vmatmul.bf16.gmra.mxu0 %v814
        %v825 = vpop.f32.mrf.mxu0
        %v826 = vadd.f32 0.0, %v825
        %v827 = vpop.f32.mrf.mxu0
        %828 = vdwg.mxu0
        %v829 = vadd.f32 %v693, %v826
        %v830 = vld [vmem:[%s8] sm:$0x1]
        %v831 = vld [vmem:[%s9] sm:$0x1]
        %v832 = vsel %vm711, %v829, 0.0
        %833 = vadd.xlane.f32.xlu0 %v832
        %v834 = vpop.xlane.xlu0 %833
        %v835 = vrcp.pop 32.0
        %v836 = vmul.f32 32.0, %v835
        %v837 = vsub.f32 1.0, %v836
        %v838 = vmul.f32 %v835, %v837
        %v839 = vadd.f32 %v835, %v838
        %vm840 = vweird.f32 %v835
        %v841 = vsel %vm840, %v835, %v839
        %v842 = vmul.f32 %v834, %v841
        %v843 = vsub.f32 %v829, %v842
        %v844 = vmul.f32 %v843, %v843
        %v845 = vsel %vm711, %v844, 0.0
        %846 = vadd.xlane.f32.xlu0 %v845
        %v847 = vpop.xlane.xlu0 %846
        %v848 = vmul.f32 %v847, %v841
        %v849 = vadd.f32 %v848, 1e-12
        %v850 = vrsqrt.pop %v849
        %v851 = vmul.f32 %v850, %v849
        %v852 = vmul.f32 %v851, %v850
        %v853 = vmul.f32 0.5, %v852
        %v854 = vsub.f32 1.5, %v853
        %v855 = vmul.f32 %v850, %v854
        %vm856 = vweird.f32 %v849
        %vm857 = vweird.f32 %v850
        %vm858 = vmor %vm856, %vm857
        %v859 = vsel %vm858, %v850, %v855
        %v860 = vmul.f32 %v843, %v859
        %v862 = vperm.slane %v830, 0
        %v864 = vmul.f32 %v860, %v862
        %v866 = vperm.slane %v831, 0
        %v868 = vadd.f32 %v864, %v866
        %v869 = vpack.c.bf16 %v868, %v868
        %v870 = vld [vmem:[%s4] sm:$0xf]
        %v871 = vld [vmem:[%s4 + $0x4] sm:$0xf]
        %v872 = vld [vmem:[%s4 + $0x8] sm:$0xf]
        %v873 = vld [vmem:[%s4 + $0xc] sm:$0xf]
        %v874 = vld [vmem:[%s5] sm:$0x1]
        %v876 = vperm.slane %v874, 0
        %v882 = vunpack.c.l.b16 %v870
        %v883 = vunpack.c.l.b16 %v871
        %v884 = vunpack.c.l.b16 %v872
        %v885 = vunpack.c.l.b16 %v873
        %v886 = vpack.c.b16 %v883, %v882
        %v887 = vpack.c.b16 %v885, %v884
        %v891 = vsel %vm711, %v869, 0
        %893 = vmatpush.bf16.msra.mxu0 0
        %894 = vmatpush.bf16.msra.mxu0 0
        %895 = vmatpush.bf16.msra.mxu0 0
        %896 = vmatpush.bf16.msra.mxu0 0
        %897 = vmatpush.bf16.msra.mxu0 0
        %898 = vmatpush.bf16.msra.mxu0 0
        %899 = vmatpush.bf16.msra.mxu0 %v887
        %900 = vmatpush.bf16.msra.mxu0 %v886
        %901 = vmatmul.bf16.gmra.mxu0 %v891
        %v902 = vpop.f32.mrf.mxu0
        %v903 = vadd.f32 %v876, %v902
        %v904 = vpop.f32.mrf.mxu0
        %905 = vdwg.mxu0
        %v906 = vmul.f32 %v903, %v903
        %v907 = vmul.f32 %v903, %v906
        %v908 = vmul.f32 %v907, 0.044715
        %v909 = vadd.f32 %v903, %v908
        %v910 = vmul.f32 %v909, 0.7978846
        %v911 = vtanh.pop %v910
        %v912 = vadd.f32 %v911, 1.0
        %v913 = vmul.f32 %v912, 0.5
        %v914 = vmul.f32 %v903, %v913
        %v915 = vpack.c.bf16 %v914, %v914
        %v916 = vld [vmem:[%s6] sm:$0xf]
        %v917 = vld [vmem:[%s6 + $0x4] sm:$0xf]
        %v918 = vld [vmem:[%s6 + $0x8] sm:$0xf]
        %v919 = vld [vmem:[%s6 + $0xc] sm:$0xf]
        %v920 = vld [vmem:[%s6 + $0x10] sm:$0xf]
        %v921 = vld [vmem:[%s6 + $0x14] sm:$0xf]
        %v922 = vld [vmem:[%s6 + $0x18] sm:$0xf]
        %v923 = vld [vmem:[%s6 + $0x1c] sm:$0xf]
        %v932 = vunpack.c.l.b16 %v916
        %v933 = vunpack.c.l.b16 %v917
        %v934 = vunpack.c.l.b16 %v918
        %v935 = vunpack.c.l.b16 %v919
        %v936 = vunpack.c.l.b16 %v920
        %v937 = vunpack.c.l.b16 %v921
        %v938 = vunpack.c.l.b16 %v922
        %v939 = vunpack.c.l.b16 %v923
        %v940 = vpack.c.b16 %v933, %v932
        %v941 = vpack.c.b16 %v935, %v934
        %v942 = vpack.c.b16 %v937, %v936
        %v943 = vpack.c.b16 %v939, %v938
        %vm948 = vcmask 523264
        %v950 = vsel %vm948, %v915, 0
        %952 = vmatpush.bf16.msra.mxu0 0
        %953 = vmatpush.bf16.msra.mxu0 0
        %954 = vmatpush.bf16.msra.mxu0 0
        %955 = vmatpush.bf16.msra.mxu0 0
        %956 = vmatpush.bf16.msra.mxu0 %v943
        %957 = vmatpush.bf16.msra.mxu0 %v942
        %958 = vmatpush.bf16.msra.mxu0 %v941
        %959 = vmatpush.bf16.msra.mxu0 %v940
        %960 = vmatmul.bf16.gmra.mxu0 %v950
        %v961 = vpop.f32.mrf.mxu0
        %v962 = vadd.f32 0.0, %v961
        %v963 = vpop.f32.mrf.mxu0
        %964 = vdwg.mxu0
        %v965 = vadd.f32 %v868, %v962
        %v966 = vld [vmem:[%s7] sm:$0x1]
        %v968 = vperm.slane %v966, 0
        %v970 = vadd.f32 %v965, %v968
        %v971 = vld [vmem:[%s10] sm:$0x1]
        %v972 = vld [vmem:[%s11] sm:$0x1]
        %v973 = vsel %vm711, %v970, 0.0
        %974 = vadd.xlane.f32.xlu0 %v973
        %v975 = vpop.xlane.xlu0 %974
        %v976 = vmul.f32 %v975, %v841
        %v977 = vsub.f32 %v970, %v976
        %v978 = vmul.f32 %v977, %v977
        %v979 = vsel %vm711, %v978, 0.0
        %980 = vadd.xlane.f32.xlu0 %v979
        %v981 = vpop.xlane.xlu0 %980
        %v982 = vmul.f32 %v981, %v841
        %v983 = vadd.f32 %v982, 1e-12
        %v984 = vrsqrt.pop %v983
        %v985 = vmul.f32 %v984, %v983
        %v986 = vmul.f32 %v985, %v984
        %v987 = vmul.f32 0.5, %v986
        %v988 = vsub.f32 1.5, %v987
        %v989 = vmul.f32 %v984, %v988
        %vm990 = vweird.f32 %v983
        %vm991 = vweird.f32 %v984
        %vm992 = vmor %vm990, %vm991
        %v993 = vsel %vm992, %v984, %v989
        %v994 = vmul.f32 %v977, %v993
        %v996 = vperm.slane %v971, 0
        %v998 = vmul.f32 %v994, %v996
        %v1000 = vperm.slane %v972, 0
        %v1002 = vadd.f32 %v998, %v1000
        %v1003 = vlaneseq
        %v1004 = vand.u32 %v1003, 127
        %vm1005 = vcmp.lt.s32.totalorder %v1004, 0
        %v1006 = vsub.s32 0, %v1004
        %v1007 = vsel %vm1005, %v1006, %v1004
        %v1008 = vshrl.u32 %v1007, 5
        %v1009 = vand.u32 %v1007, 31
        %v1010 = vsub.s32 0, %v1009
        %v1011 = vsel %vm1005, %v1010, %v1009
        %vm1012 = vcmp.ne.s32.totalorder %v1011, 0
        %vm1013 = vcmp.lt.s32.totalorder %v1011, 0
        %vm1014 = vmand %vm1013, %vm1012
        %v1015 = vadd.s32 %v1011, 32
        %v1016 = vsel %vm1014, %v1015, %v1011
        %vm1017 = vcmp.ge.s32.totalorder %v1016, 16
        %v1018 = vpack.c.bf16 %v1002, %v1002
        %v1019 = vld [vmem:[%s12] sm:$0xf]
        %v1020 = vld [vmem:[%s12 + $0x4] sm:$0xf]
        %v1021 = vld [vmem:[%s12 + $0x8] sm:$0xf]
        %v1022 = vld [vmem:[%s12 + $0xc] sm:$0xf]
        %v1023 = vld [vmem:[%s14] sm:$0x1]
        %v1025 = vperm.slane %v1023, 0
        %v1031 = vunpack.c.l.b16 %v1019
        %v1032 = vunpack.c.l.b16 %v1020
        %v1033 = vunpack.c.l.b16 %v1021
        %v1034 = vunpack.c.l.b16 %v1022
        %v1035 = vpack.c.b16 %v1032, %v1031
        %v1036 = vpack.c.b16 %v1034, %v1033
        %v1040 = vsel %vm711, %v1018, 0
        %1042 = vmatpush.bf16.msra.mxu0 0
        %1043 = vmatpush.bf16.msra.mxu0 0
        %1044 = vmatpush.bf16.msra.mxu0 0
        %1045 = vmatpush.bf16.msra.mxu0 0
        %1046 = vmatpush.bf16.msra.mxu0 0
        %1047 = vmatpush.bf16.msra.mxu0 0
        %1048 = vmatpush.bf16.msra.mxu0 %v1036
        %1049 = vmatpush.bf16.msra.mxu0 %v1035
        %1050 = vmatmul.bf16.gmra.mxu0 %v1040
        %v1051 = vpop.f32.mrf.mxu0
        %v1052 = vadd.f32 %v1025, %v1051
        %v1053 = vpop.f32.mrf.mxu0
        %1054 = vdwg.mxu0
        %v1055 = vld [vmem:[%s13] sm:$0xf]
        %v1056 = vld [vmem:[%s13 + $0x4] sm:$0xf]
        %v1057 = vld [vmem:[%s13 + $0x8] sm:$0xf]
        %v1058 = vld [vmem:[%s13 + $0xc] sm:$0xf]
        %v1059 = vld [vmem:[%s15] sm:$0x1]
        %v1061 = vrot.slane %v1052, 1
        %v1063 = vsel %vm1017, %v1052, %v1061
        %v1068 = vunpack.c.l.b16 %v1055
        %v1069 = vunpack.c.l.b16 %v1056
        %v1070 = vunpack.c.l.b16 %v1057
        %v1071 = vunpack.c.l.b16 %v1058
        %v1072 = vpack.c.b16 %v1069, %v1068
        %v1073 = vpack.c.b16 %v1071, %v1070
        %v1077 = vsel %vm711, 0, 0
        %1079 = vmatpush.bf16.msra.mxu0 0
        %1080 = vmatpush.bf16.msra.mxu0 0
        %1081 = vmatpush.bf16.msra.mxu0 0
        %1082 = vmatpush.bf16.msra.mxu0 0
        %1083 = vmatpush.bf16.msra.mxu0 0
        %1084 = vmatpush.bf16.msra.mxu0 0
        %1085 = vmatpush.bf16.msra.mxu0 %v1073
        %1086 = vmatpush.bf16.msra.mxu0 %v1072
        %1087 = vmatmul.bf16.gmra.mxu0 %v1077
        %v1088 = vpop.f32.mrf.mxu0
        %v1089 = vadd.f32 0.0, %v1088
        %v1090 = vpop.f32.mrf.mxu0
        %1091 = vdwg.mxu0
        %v1093 = vrot.slane %v1089, 1
        %v1095 = vadd.f32 %v1063, %v1093
        %v1096 = vxor.u32 %v1095, 2147483648
        %v1097 = vmul.f32 %v1096, 1.442695
        %v1098 = vpow.pop %v1097
        %v1099 = vadd.f32 %v1098, 1.0
        %v1100 = vrcp.pop %v1099
        %v1101 = vmul.f32 %v1099, %v1100
        %v1102 = vsub.f32 1.0, %v1101
        %v1103 = vmul.f32 %v1100, %v1102
        %v1104 = vadd.f32 %v1100, %v1103
        %vm1105 = vweird.f32 %v1099
        %vm1106 = vweird.f32 %v1100
        %vm1107 = vmor %vm1105, %vm1106
        %v1108 = vsel %vm1107, %v1100, %v1104
        %v1109 = vand.u32 2147483647, %v1099
        %vm1110 = vcmp.eq.f32.partialorder %v1109, 8.507059e+37
        %v1111 = vand.u32 %v1099, 2147483648
        %v1112 = vor.u32 1.1754944e-38, %v1111
        %v1113 = vsel %vm1110, %v1112, %v1108
        %v1114 = vmul.f32 1.0, %v1113
        %v1116 = vperm.slane %v1059, 0
        %1117 = vrot.lane.b32.xlu0 %v1116, 64
        %v1118 = vpop.permute.xlu0 %1117
        %v1120 = vadd.f32 %v1089, %v1118
        %v1122 = vrot.slane %v1120, 1
        %1123 = vrot.lane.b32.xlu0 %v1122, 64
        %v1124 = vpop.permute.xlu0 %1123
        %v1126 = vmul.f32 %v1114, %v1124
        %1128 = vrot.lane.b32.xlu0 %v1126, 64
        %v1129 = vpop.permute.xlu0 %1128
        %v1131 = vadd.f32 %v1063, %v1129
        %v1132 = vtanh.pop %v1131
        %v1133 = vsub.f32 1.0, %v1114
        %1135 = vrot.lane.b32.xlu0 %v1132, 96
        %v1136 = vpop.permute.xlu0 %1135
        %v1138 = vmul.f32 %v1133, %v1136
        %v1139 = vmul.f32 %v1114, 0.0
        %v1140 = vadd.f32 %v1138, %v1139
        %1142 = vrot.lane.b32.xlu0 %v1140, 96
        %v1143 = vpop.permute.xlu0 %1142
        %vm1145 = vcmask 130055
        %1146 = vst.msk [vmem:[#allocation2 - $0x7] sm:$0x80] %vm1145, %v1143
        %s1147 = scalar_lea.vmem [#allocation2], 7
        %vm1148 = vcmask 261255
        %1149 = vst.msk [vmem:[%s1147 - $0x7] sm:$0x80] %vm1148, %v1143
        %v1150 = vrot.slane %v1052, 3
        %v1152 = vsel %vm1017, %v1052, %v1150
        %v1153 = vpack.c.bf16 %v1140, %v1140
        %v1155 = vshrl.u32 %v1153, 16
        %v1157 = vrot.slane %v1155, 3
        %1158 = vrot.lane.b32.xlu0 %v1157, 96
        %v1159 = vpop.permute.xlu0 %1158
        %v1161 = vsel %vm711, %v1159, 0
        %1163 = vmatpush.bf16.msra.mxu0 0
        %1164 = vmatpush.bf16.msra.mxu0 0
        %1165 = vmatpush.bf16.msra.mxu0 0
        %1166 = vmatpush.bf16.msra.mxu0 0
        %1167 = vmatpush.bf16.msra.mxu0 0
        %1168 = vmatpush.bf16.msra.mxu0 0
        %1169 = vmatpush.bf16.msra.mxu0 %v1073
        %1170 = vmatpush.bf16.msra.mxu0 %v1072
        %1171 = vmatmul.bf16.gmra.mxu0 %v1161
        %v1172 = vpop.f32.mrf.mxu0
        %v1173 = vadd.f32 0.0, %v1172
        %v1174 = vpop.f32.mrf.mxu0
        %1175 = vdwg.mxu0
        %v1177 = vrot.slane %v1173, 2
        %v1179 = vadd.f32 %v1152, %v1177
        %v1180 = vxor.u32 %v1179, 2147483648
        %v1181 = vmul.f32 %v1180, 1.442695
        %v1182 = vpow.pop %v1181
        %v1183 = vadd.f32 %v1182, 1.0
        %v1184 = vrcp.pop %v1183
        %v1185 = vmul.f32 %v1183, %v1184
        %v1186 = vsub.f32 1.0, %v1185
        %v1187 = vmul.f32 %v1184, %v1186
        %v1188 = vadd.f32 %v1184, %v1187
        %vm1189 = vweird.f32 %v1183
        %vm1190 = vweird.f32 %v1184
        %vm1191 = vmor %vm1189, %vm1190
        %v1192 = vsel %vm1191, %v1184, %v1188
        %v1193 = vand.u32 2147483647, %v1183
        %vm1194 = vcmp.eq.f32.partialorder %v1193, 8.507059e+37
        %v1195 = vand.u32 %v1183, 2147483648
        %v1196 = vor.u32 1.1754944e-38, %v1195
        %v1197 = vsel %vm1194, %v1196, %v1192
        %v1198 = vmul.f32 1.0, %v1197
        %v1199 = vadd.f32 %v1173, %v1118
        %v1201 = vrot.slane %v1199, 2
        %1202 = vrot.lane.b32.xlu0 %v1201, 64
        %v1203 = vpop.permute.xlu0 %1202
        %v1205 = vmul.f32 %v1198, %v1203
        %1207 = vrot.lane.b32.xlu0 %v1205, 64
        %v1208 = vpop.permute.xlu0 %1207
        %v1210 = vadd.f32 %v1152, %v1208
        %v1211 = vtanh.pop %v1210
        %v1212 = vsub.f32 1.0, %v1198
        %1214 = vrot.lane.b32.xlu0 %v1211, 96
        %v1215 = vpop.permute.xlu0 %1214
        %v1217 = vmul.f32 %v1212, %v1215
        %v1218 = vrot.slane %v1140, 1
        %v1220 = vmul.f32 %v1198, %v1218
        %v1221 = vadd.f32 %v1217, %v1220
        %1223 = vrot.lane.b32.xlu0 %v1221, 96
        %v1224 = vpop.permute.xlu0 %1223
        %s1226 = scalar_lea.vmem [#allocation2], 1
        %vm1227 = vcmask 129030
        %1228 = vst.msk [vmem:[%s1226 - $0x6] sm:$0x40] %vm1227, %v1224
        %s1229 = scalar_lea.vmem [#allocation2], 6
        %vm1230 = vcmask 260230
        %1231 = vst.msk [vmem:[%s1229 - $0x6] sm:$0x40] %vm1230, %v1224
        %v1232 = vrot.slane %v1052, 5
        %v1234 = vsel %vm1017, %v1052, %v1232
        %v1235 = vpack.c.bf16 %v1221, %v1221
        %v1237 = vrot.slane %v1235, 3
        %1238 = vrot.lane.b32.xlu0 %v1237, 96
        %v1239 = vpop.permute.xlu0 %1238
        %v1241 = vsel %vm711, %v1239, 0
        %1243 = vmatpush.bf16.msra.mxu0 0
        %1244 = vmatpush.bf16.msra.mxu0 0
        %1245 = vmatpush.bf16.msra.mxu0 0
        %1246 = vmatpush.bf16.msra.mxu0 0
        %1247 = vmatpush.bf16.msra.mxu0 0
        %1248 = vmatpush.bf16.msra.mxu0 0
        %1249 = vmatpush.bf16.msra.mxu0 %v1073
        %1250 = vmatpush.bf16.msra.mxu0 %v1072
        %1251 = vmatmul.bf16.gmra.mxu0 %v1241
        %v1252 = vpop.f32.mrf.mxu0
        %v1253 = vadd.f32 0.0, %v1252
        %v1254 = vpop.f32.mrf.mxu0
        %1255 = vdwg.mxu0
        %v1257 = vrot.slane %v1253, 3
        %v1259 = vadd.f32 %v1234, %v1257
        %v1260 = vxor.u32 %v1259, 2147483648
        %v1261 = vmul.f32 %v1260, 1.442695
        %v1262 = vpow.pop %v1261
        %v1263 = vadd.f32 %v1262, 1.0
        %v1264 = vrcp.pop %v1263
        %v1265 = vmul.f32 %v1263, %v1264
        %v1266 = vsub.f32 1.0, %v1265
        %v1267 = vmul.f32 %v1264, %v1266
        %v1268 = vadd.f32 %v1264, %v1267
        %vm1269 = vweird.f32 %v1263
        %vm1270 = vweird.f32 %v1264
        %vm1271 = vmor %vm1269, %vm1270
        %v1272 = vsel %vm1271, %v1264, %v1268
        %v1273 = vand.u32 2147483647, %v1263
        %vm1274 = vcmp.eq.f32.partialorder %v1273, 8.507059e+37
        %v1275 = vand.u32 %v1263, 2147483648
        %v1276 = vor.u32 1.1754944e-38, %v1275
        %v1277 = vsel %vm1274, %v1276, %v1272
        %v1278 = vmul.f32 1.0, %v1277
        %v1279 = vadd.f32 %v1253, %v1118
        %v1281 = vrot.slane %v1279, 3
        %1282 = vrot.lane.b32.xlu0 %v1281, 64
        %v1283 = vpop.permute.xlu0 %1282
        %v1285 = vmul.f32 %v1278, %v1283
        %1287 = vrot.lane.b32.xlu0 %v1285, 64
        %v1288 = vpop.permute.xlu0 %1287
        %v1290 = vadd.f32 %v1234, %v1288
        %v1291 = vtanh.pop %v1290
        %v1292 = vsub.f32 1.0, %v1278
        %1294 = vrot.lane.b32.xlu0 %v1291, 96
        %v1295 = vpop.permute.xlu0 %1294
        %v1297 = vmul.f32 %v1292, %v1295
        %v1298 = vrot.slane %v1221, 1
        %v1300 = vmul.f32 %v1278, %v1298
        %v1301 = vadd.f32 %v1297, %v1300
        %1303 = vrot.lane.b32.xlu0 %v1301, 96
        %v1304 = vpop.permute.xlu0 %1303
        %s1306 = scalar_lea.vmem [#allocation2], 2
        %vm1307 = vcmask 128005
        %1308 = vst.msk [vmem:[%s1306 - $0x5] sm:$0x20] %vm1307, %v1304
        %s1309 = scalar_lea.vmem [#allocation2], 5
        %vm1310 = vcmask 259205
        %1311 = vst.msk [vmem:[%s1309 - $0x5] sm:$0x20] %vm1310, %v1304
        %v1312 = vrot.slane %v1052, 7
        %v1314 = vsel %vm1017, %v1052, %v1312
        %v1315 = vpack.c.bf16 %v1301, %v1301
        %v1317 = vshrl.u32 %v1315, 16
        %v1319 = vrot.slane %v1317, 2
        %1320 = vrot.lane.b32.xlu0 %v1319, 96
        %v1321 = vpop.permute.xlu0 %1320
        %v1323 = vsel %vm711, %v1321, 0
        %1325 = vmatpush.bf16.msra.mxu0 0
        %1326 = vmatpush.bf16.msra.mxu0 0
        %1327 = vmatpush.bf16.msra.mxu0 0
        %1328 = vmatpush.bf16.msra.mxu0 0
        %1329 = vmatpush.bf16.msra.mxu0 0
        %1330 = vmatpush.bf16.msra.mxu0 0
        %1331 = vmatpush.bf16.msra.mxu0 %v1073
        %1332 = vmatpush.bf16.msra.mxu0 %v1072
        %1333 = vmatmul.bf16.gmra.mxu0 %v1323
        %v1334 = vpop.f32.mrf.mxu0
        %v1335 = vadd.f32 0.0, %v1334
        %v1336 = vpop.f32.mrf.mxu0
        %1337 = vdwg.mxu0
        %v1339 = vrot.slane %v1335, 4
        %v1341 = vadd.f32 %v1314, %v1339
        %v1342 = vxor.u32 %v1341, 2147483648
        %v1343 = vmul.f32 %v1342, 1.442695
        %v1344 = vpow.pop %v1343
        %v1345 = vadd.f32 %v1344, 1.0
        %v1346 = vrcp.pop %v1345
        %v1347 = vmul.f32 %v1345, %v1346
        %v1348 = vsub.f32 1.0, %v1347
        %v1349 = vmul.f32 %v1346, %v1348
        %v1350 = vadd.f32 %v1346, %v1349
        %vm1351 = vweird.f32 %v1345
        %vm1352 = vweird.f32 %v1346
        %vm1353 = vmor %vm1351, %vm1352
        %v1354 = vsel %vm1353, %v1346, %v1350
        %v1355 = vand.u32 2147483647, %v1345
        %vm1356 = vcmp.eq.f32.partialorder %v1355, 8.507059e+37
        %v1357 = vand.u32 %v1345, 2147483648
        %v1358 = vor.u32 1.1754944e-38, %v1357
        %v1359 = vsel %vm1356, %v1358, %v1354
        %v1360 = vmul.f32 1.0, %v1359
        %v1361 = vadd.f32 %v1335, %v1118
        %v1363 = vrot.slane %v1361, 4
        %1364 = vrot.lane.b32.xlu0 %v1363, 64
        %v1365 = vpop.permute.xlu0 %1364
        %v1367 = vmul.f32 %v1360, %v1365
        %1369 = vrot.lane.b32.xlu0 %v1367, 64
        %v1370 = vpop.permute.xlu0 %1369
        %v1372 = vadd.f32 %v1314, %v1370
        %v1373 = vtanh.pop %v1372
        %v1374 = vsub.f32 1.0, %v1360
        %1376 = vrot.lane.b32.xlu0 %v1373, 96
        %v1377 = vpop.permute.xlu0 %1376
        %v1379 = vmul.f32 %v1374, %v1377
        %v1380 = vrot.slane %v1301, 1
        %v1382 = vmul.f32 %v1360, %v1380
        %v1383 = vadd.f32 %v1379, %v1382
        %1385 = vrot.lane.b32.xlu0 %v1383, 96
        %v1386 = vpop.permute.xlu0 %1385
        %s1388 = scalar_lea.vmem [#allocation2], 3
        %vm1389 = vcmask 126980
        %1390 = vst.msk [vmem:[%s1388 - $0x4] sm:$0x10] %vm1389, %v1386
        %s1391 = scalar_lea.vmem [#allocation2], 4
        %vm1392 = vcmask 258180
        %1393 = vst.msk [vmem:[%s1391 - $0x4] sm:$0x10] %vm1392, %v1386
        %v1394 = vpack.c.bf16 %v1383, %v1383
        %v1396 = vrot.slane %v1394, 2
        %1397 = vrot.lane.b32.xlu0 %v1396, 96
        %v1398 = vpop.permute.xlu0 %1397
        %v1400 = vsel %vm711, %v1398, 0
        %1402 = vmatpush.bf16.msra.mxu0 0
        %1403 = vmatpush.bf16.msra.mxu0 0
        %1404 = vmatpush.bf16.msra.mxu0 0
        %1405 = vmatpush.bf16.msra.mxu0 0
        %1406 = vmatpush.bf16.msra.mxu0 0
        %1407 = vmatpush.bf16.msra.mxu0 0
        %1408 = vmatpush.bf16.msra.mxu0 %v1073
        %1409 = vmatpush.bf16.msra.mxu0 %v1072
        %1410 = vmatmul.bf16.gmra.mxu0 %v1400
        %v1411 = vpop.f32.mrf.mxu0
        %v1412 = vadd.f32 0.0, %v1411
        %v1413 = vpop.f32.mrf.mxu0
        %1414 = vdwg.mxu0
        %v1416 = vrot.slane %v1412, 5
        %v1418 = vadd.f32 %v1063, %v1416
        %v1419 = vxor.u32 %v1418, 2147483648
        %v1420 = vmul.f32 %v1419, 1.442695
        %v1421 = vpow.pop %v1420
        %v1422 = vadd.f32 %v1421, 1.0
        %v1423 = vrcp.pop %v1422
        %v1424 = vmul.f32 %v1422, %v1423
        %v1425 = vsub.f32 1.0, %v1424
        %v1426 = vmul.f32 %v1423, %v1425
        %v1427 = vadd.f32 %v1423, %v1426
        %vm1428 = vweird.f32 %v1422
        %vm1429 = vweird.f32 %v1423
        %vm1430 = vmor %vm1428, %vm1429
        %v1431 = vsel %vm1430, %v1423, %v1427
        %v1432 = vand.u32 2147483647, %v1422
        %vm1433 = vcmp.eq.f32.partialorder %v1432, 8.507059e+37
        %v1434 = vand.u32 %v1422, 2147483648
        %v1435 = vor.u32 1.1754944e-38, %v1434
        %v1436 = vsel %vm1433, %v1435, %v1431
        %v1437 = vmul.f32 1.0, %v1436
        %v1438 = vadd.f32 %v1412, %v1118
        %v1440 = vrot.slane %v1438, 5
        %1441 = vrot.lane.b32.xlu0 %v1440, 64
        %v1442 = vpop.permute.xlu0 %1441
        %v1444 = vmul.f32 %v1437, %v1442
        %1446 = vrot.lane.b32.xlu0 %v1444, 64
        %v1447 = vpop.permute.xlu0 %1446
        %v1449 = vadd.f32 %v1063, %v1447
        %v1450 = vtanh.pop %v1449
        %v1451 = vsub.f32 1.0, %v1437
        %1453 = vrot.lane.b32.xlu0 %v1450, 96
        %v1454 = vpop.permute.xlu0 %1453
        %v1456 = vmul.f32 %v1451, %v1454
        %v1457 = vrot.slane %v1383, 1
        %v1459 = vmul.f32 %v1437, %v1457
        %v1460 = vadd.f32 %v1456, %v1459
        %1462 = vrot.lane.b32.xlu0 %v1460, 96
        %v1463 = vpop.permute.xlu0 %1462
        %vm1465 = vcmask 125955
        %1466 = vst.msk [vmem:[%s1391 - $0x3] sm:$0x8] %vm1465, %v1463
        %vm1467 = vcmask 257155
        %1468 = vst.msk [vmem:[%s1388 - $0x3] sm:$0x8] %vm1467, %v1463
        %v1469 = vpack.c.bf16 %v1460, %v1460
        %v1471 = vshrl.u32 %v1469, 16
        %v1473 = vrot.slane %v1471, 1
        %1474 = vrot.lane.b32.xlu0 %v1473, 96
        %v1475 = vpop.permute.xlu0 %1474
        %v1477 = vsel %vm711, %v1475, 0
        %1479 = vmatpush.bf16.msra.mxu0 0
        %1480 = vmatpush.bf16.msra.mxu0 0
        %1481 = vmatpush.bf16.msra.mxu0 0
        %1482 = vmatpush.bf16.msra.mxu0 0
        %1483 = vmatpush.bf16.msra.mxu0 0
        %1484 = vmatpush.bf16.msra.mxu0 0
        %1485 = vmatpush.bf16.msra.mxu0 %v1073
        %1486 = vmatpush.bf16.msra.mxu0 %v1072
        %1487 = vmatmul.bf16.gmra.mxu0 %v1477
        %v1488 = vpop.f32.mrf.mxu0
        %v1489 = vadd.f32 0.0, %v1488
        %v1490 = vpop.f32.mrf.mxu0
        %1491 = vdwg.mxu0
        %v1493 = vrot.slane %v1489, 6
        %v1495 = vadd.f32 %v1152, %v1493
        %v1496 = vxor.u32 %v1495, 2147483648
        %v1497 = vmul.f32 %v1496, 1.442695
        %v1498 = vpow.pop %v1497
        %v1499 = vadd.f32 %v1498, 1.0
        %v1500 = vrcp.pop %v1499
        %v1501 = vmul.f32 %v1499, %v1500
        %v1502 = vsub.f32 1.0, %v1501
        %v1503 = vmul.f32 %v1500, %v1502
        %v1504 = vadd.f32 %v1500, %v1503
        %vm1505 = vweird.f32 %v1499
        %vm1506 = vweird.f32 %v1500
        %vm1507 = vmor %vm1505, %vm1506
        %v1508 = vsel %vm1507, %v1500, %v1504
        %v1509 = vand.u32 2147483647, %v1499
        %vm1510 = vcmp.eq.f32.partialorder %v1509, 8.507059e+37
        %v1511 = vand.u32 %v1499, 2147483648
        %v1512 = vor.u32 1.1754944e-38, %v1511
        %v1513 = vsel %vm1510, %v1512, %v1508
        %v1514 = vmul.f32 1.0, %v1513
        %v1515 = vadd.f32 %v1489, %v1118
        %v1517 = vrot.slane %v1515, 6
        %1518 = vrot.lane.b32.xlu0 %v1517, 64
        %v1519 = vpop.permute.xlu0 %1518
        %v1521 = vmul.f32 %v1514, %v1519
        %1523 = vrot.lane.b32.xlu0 %v1521, 64
        %v1524 = vpop.permute.xlu0 %1523
        %v1526 = vadd.f32 %v1152, %v1524
        %v1527 = vtanh.pop %v1526
        %v1528 = vsub.f32 1.0, %v1514
        %1530 = vrot.lane.b32.xlu0 %v1527, 96
        %v1531 = vpop.permute.xlu0 %1530
        %v1533 = vmul.f32 %v1528, %v1531
        %v1534 = vrot.slane %v1460, 1
        %v1536 = vmul.f32 %v1514, %v1534
        %v1537 = vadd.f32 %v1533, %v1536
        %1539 = vrot.lane.b32.xlu0 %v1537, 96
        %v1540 = vpop.permute.xlu0 %1539
        %vm1542 = vcmask 124930
        %1543 = vst.msk [vmem:[%s1309 - $0x2] sm:$0x4] %vm1542, %v1540
        %vm1544 = vcmask 256130
        %1545 = vst.msk [vmem:[%s1306 - $0x2] sm:$0x4] %vm1544, %v1540
        %v1546 = vpack.c.bf16 %v1537, %v1537
        %v1548 = vrot.slane %v1546, 1
        %1549 = vrot.lane.b32.xlu0 %v1548, 96
        %v1550 = vpop.permute.xlu0 %1549
        %v1552 = vsel %vm711, %v1550, 0
        %1554 = vmatpush.bf16.msra.mxu0 0
        %1555 = vmatpush.bf16.msra.mxu0 0
        %1556 = vmatpush.bf16.msra.mxu0 0
        %1557 = vmatpush.bf16.msra.mxu0 0
        %1558 = vmatpush.bf16.msra.mxu0 0
        %1559 = vmatpush.bf16.msra.mxu0 0
        %1560 = vmatpush.bf16.msra.mxu0 %v1073
        %1561 = vmatpush.bf16.msra.mxu0 %v1072
        %1562 = vmatmul.bf16.gmra.mxu0 %v1552
        %v1563 = vpop.f32.mrf.mxu0
        %v1564 = vadd.f32 0.0, %v1563
        %v1565 = vpop.f32.mrf.mxu0
        %1566 = vdwg.mxu0
        %v1568 = vrot.slane %v1564, 7
        %v1570 = vadd.f32 %v1234, %v1568
        %v1571 = vxor.u32 %v1570, 2147483648
        %v1572 = vmul.f32 %v1571, 1.442695
        %v1573 = vpow.pop %v1572
        %v1574 = vadd.f32 %v1573, 1.0
        %v1575 = vrcp.pop %v1574
        %v1576 = vmul.f32 %v1574, %v1575
        %v1577 = vsub.f32 1.0, %v1576
        %v1578 = vmul.f32 %v1575, %v1577
        %v1579 = vadd.f32 %v1575, %v1578
        %vm1580 = vweird.f32 %v1574
        %vm1581 = vweird.f32 %v1575
        %vm1582 = vmor %vm1580, %vm1581
        %v1583 = vsel %vm1582, %v1575, %v1579
        %v1584 = vand.u32 2147483647, %v1574
        %vm1585 = vcmp.eq.f32.partialorder %v1584, 8.507059e+37
        %v1586 = vand.u32 %v1574, 2147483648
        %v1587 = vor.u32 1.1754944e-38, %v1586
        %v1588 = vsel %vm1585, %v1587, %v1583
        %v1589 = vmul.f32 1.0, %v1588
        %v1590 = vadd.f32 %v1564, %v1118
        %v1592 = vrot.slane %v1590, 7
        %1593 = vrot.lane.b32.xlu0 %v1592, 64
        %v1594 = vpop.permute.xlu0 %1593
        %v1596 = vmul.f32 %v1589, %v1594
        %1598 = vrot.lane.b32.xlu0 %v1596, 64
        %v1599 = vpop.permute.xlu0 %1598
        %v1601 = vadd.f32 %v1234, %v1599
        %v1602 = vtanh.pop %v1601
        %v1603 = vsub.f32 1.0, %v1589
        %1605 = vrot.lane.b32.xlu0 %v1602, 96
        %v1606 = vpop.permute.xlu0 %1605
        %v1608 = vmul.f32 %v1603, %v1606
        %v1609 = vrot.slane %v1537, 1
        %v1611 = vmul.f32 %v1589, %v1609
        %v1612 = vadd.f32 %v1608, %v1611
        %1614 = vrot.lane.b32.xlu0 %v1612, 96
        %v1615 = vpop.permute.xlu0 %1614
        %vm1617 = vcmask 123905
        %1618 = vst.msk [vmem:[%s1229 - $0x1] sm:$0x2] %vm1617, %v1615
        %vm1619 = vcmask 255105
        %1620 = vst.msk [vmem:[%s1226 - $0x1] sm:$0x2] %vm1619, %v1615
        %v1621 = vpack.c.bf16 %v1612, %v1612
        %v1623 = vshrl.u32 %v1621, 16
        %1625 = vrot.lane.b32.xlu0 %v1623, 96
        %v1626 = vpop.permute.xlu0 %1625
        %v1628 = vsel %vm711, %v1626, 0
        %1630 = vmatpush.bf16.msra.mxu0 0
        %1631 = vmatpush.bf16.msra.mxu0 0
        %1632 = vmatpush.bf16.msra.mxu0 0
        %1633 = vmatpush.bf16.msra.mxu0 0
        %1634 = vmatpush.bf16.msra.mxu0 0
        %1635 = vmatpush.bf16.msra.mxu0 0
        %1636 = vmatpush.bf16.msra.mxu0 %v1073
        %1637 = vmatpush.bf16.msra.mxu0 %v1072
        %1638 = vmatmul.bf16.gmra.mxu0 %v1628
        %v1639 = vpop.f32.mrf.mxu0
        %v1640 = vadd.f32 0.0, %v1639
        %v1641 = vpop.f32.mrf.mxu0
        %1642 = vdwg.mxu0
        %v1643 = vadd.f32 %v1314, %v1640
        %v1644 = vxor.u32 %v1643, 2147483648
        %v1645 = vmul.f32 %v1644, 1.442695
        %v1646 = vpow.pop %v1645
        %v1647 = vadd.f32 %v1646, 1.0
        %v1648 = vrcp.pop %v1647
        %v1649 = vmul.f32 %v1647, %v1648
        %v1650 = vsub.f32 1.0, %v1649
        %v1651 = vmul.f32 %v1648, %v1650
        %v1652 = vadd.f32 %v1648, %v1651
        %vm1653 = vweird.f32 %v1647
        %vm1654 = vweird.f32 %v1648
        %vm1655 = vmor %vm1653, %vm1654
        %v1656 = vsel %vm1655, %v1648, %v1652
        %v1657 = vand.u32 2147483647, %v1647
        %vm1658 = vcmp.eq.f32.partialorder %v1657, 8.507059e+37
        %v1659 = vand.u32 %v1647, 2147483648
        %v1660 = vor.u32 1.1754944e-38, %v1659
        %v1661 = vsel %vm1658, %v1660, %v1656
        %v1662 = vmul.f32 1.0, %v1661
        %v1663 = vadd.f32 %v1640, %v1118
        %1665 = vrot.lane.b32.xlu0 %v1663, 64
        %v1666 = vpop.permute.xlu0 %1665
        %v1668 = vmul.f32 %v1662, %v1666
        %1670 = vrot.lane.b32.xlu0 %v1668, 64
        %v1671 = vpop.permute.xlu0 %1670
        %v1673 = vadd.f32 %v1314, %v1671
        %v1674 = vtanh.pop %v1673
        %v1675 = vsub.f32 1.0, %v1662
        %1677 = vrot.lane.b32.xlu0 %v1674, 96
        %v1678 = vpop.permute.xlu0 %1677
        %v1680 = vmul.f32 %v1675, %v1678
        %v1681 = vrot.slane %v1612, 1
        %v1683 = vmul.f32 %v1662, %v1681
        %v1684 = vadd.f32 %v1680, %v1683
        %1686 = vrot.lane.b32.xlu0 %v1684, 96
        %v1687 = vpop.permute.xlu0 %1686
        %vm1689 = vcmask 122880
        %1690 = vst.msk [vmem:[%s1147] sm:$0x1] %vm1689, %v1687
        %vm1691 = vcmask 254080
        %1692 = vst.msk [vmem:[#allocation2] sm:$0x1] %vm1691, %v1687
        %v1693 = vld [vmem:[#allocation2] sm:$0x1]
        %v1694 = vld [vmem:[#allocation2 + $0x1] sm:$0x1]
        %v1695 = vld [vmem:[#allocation2 + $0x2] sm:$0x1]
        %v1696 = vld [vmem:[#allocation2 + $0x3] sm:$0x1]
        %v1697 = vld [vmem:[#allocation2 + $0x4] sm:$0x1]
        %v1698 = vld [vmem:[#allocation2 + $0x5] sm:$0x1]
        %v1699 = vld [vmem:[#allocation2 + $0x6] sm:$0x1]
        %v1700 = vld [vmem:[#allocation2 + $0x7] sm:$0x1]
        %v1701 = vpack.c.bf16 %v1693, %v1693
        %v1702 = vpack.c.bf16 %v1694, %v1694
        %v1703 = vpack.c.bf16 %v1695, %v1695
        %v1704 = vpack.c.bf16 %v1696, %v1696
        %v1705 = vpack.c.bf16 %v1697, %v1697
        %v1706 = vpack.c.bf16 %v1698, %v1698
        %v1707 = vpack.c.bf16 %v1699, %v1699
        %v1708 = vpack.c.bf16 %v1700, %v1700
        %v1709 = vld [vmem:[%s16] sm:$0xf]
        %v1710 = vld [vmem:[%s16 + $0x4] sm:$0xf]
        %v1711 = vld [vmem:[%s16 + $0x8] sm:$0xf]
        %v1712 = vld [vmem:[%s16 + $0xc] sm:$0xf]
        %v1713 = vld [vmem:[%s18] sm:$0x1]
        %v1715 = vperm.slane %v1713, 0
        %v1725 = vunpack.c.l.b16 %v1701
        %v1726 = vunpack.c.l.b16 %v1702
        %v1727 = vunpack.c.l.b16 %v1703
        %v1728 = vunpack.c.l.b16 %v1704
        %v1729 = vunpack.c.l.b16 %v1705
        %v1730 = vunpack.c.l.b16 %v1706
        %v1731 = vunpack.c.l.b16 %v1707
        %v1732 = vunpack.c.l.b16 %v1708
        %v1733 = vrot.slane %v1726, 7
        %vm1734 = vcmask 1041409
        %v1735 = vsel %vm1734, %v1733, %v1725
        %v1736 = vrot.slane %v1727, 6
        %vm1737 = vcmask 1042434
        %v1738 = vsel %vm1737, %v1736, %v1735
        %v1739 = vrot.slane %v1728, 5
        %vm1740 = vcmask 1043459
        %v1741 = vsel %vm1740, %v1739, %v1738
        %v1742 = vrot.slane %v1729, 4
        %vm1743 = vcmask 1044484
        %v1744 = vsel %vm1743, %v1742, %v1741
        %v1745 = vrot.slane %v1730, 3
        %vm1746 = vcmask 1045509
        %v1747 = vsel %vm1746, %v1745, %v1744
        %v1748 = vrot.slane %v1731, 2
        %vm1749 = vcmask 1046534
        %v1750 = vsel %vm1749, %v1748, %v1747
        %v1751 = vrot.slane %v1732, 1
        %vm1752 = vcmask 1047559
        %v1753 = vsel %vm1752, %v1751, %v1750
        %v1754 = vpack.c.b16 %v1753, %v1753
        %v1759 = vunpack.c.l.b16 %v1709
        %v1760 = vunpack.c.l.b16 %v1710
        %v1761 = vunpack.c.l.b16 %v1711
        %v1762 = vunpack.c.l.b16 %v1712
        %v1763 = vpack.c.b16 %v1760, %v1759
        %v1764 = vpack.c.b16 %v1762, %v1761
        %v1768 = vsel %vm711, %v1754, 0
        %1770 = vmatpush.bf16.msra.mxu0 0
        %1771 = vmatpush.bf16.msra.mxu0 0
        %1772 = vmatpush.bf16.msra.mxu0 0
        %1773 = vmatpush.bf16.msra.mxu0 0
        %1774 = vmatpush.bf16.msra.mxu0 0
        %1775 = vmatpush.bf16.msra.mxu0 0
        %1776 = vmatpush.bf16.msra.mxu0 %v1764
        %1777 = vmatpush.bf16.msra.mxu0 %v1763
        %1778 = vmatmul.bf16.gmra.mxu0 %v1768
        %v1779 = vpop.f32.mrf.mxu0
        %v1780 = vadd.f32 %v1715, %v1779
        %v1781 = vpop.f32.mrf.mxu0
        %1782 = vdwg.mxu0
        %v1783 = vld [vmem:[%s17] sm:$0xf]
        %v1784 = vld [vmem:[%s17 + $0x4] sm:$0xf]
        %v1785 = vld [vmem:[%s17 + $0x8] sm:$0xf]
        %v1786 = vld [vmem:[%s17 + $0xc] sm:$0xf]
        %v1787 = vld [vmem:[%s19] sm:$0x1]
        %v1789 = vrot.slane %v1780, 1
        %v1791 = vsel %vm1017, %v1780, %v1789
        %v1796 = vunpack.c.l.b16 %v1783
        %v1797 = vunpack.c.l.b16 %v1784
        %v1798 = vunpack.c.l.b16 %v1785
        %v1799 = vunpack.c.l.b16 %v1786
        %v1800 = vpack.c.b16 %v1797, %v1796
        %v1801 = vpack.c.b16 %v1799, %v1798
        %1804 = vmatpush.bf16.msra.mxu0 0
        %1805 = vmatpush.bf16.msra.mxu0 0
        %1806 = vmatpush.bf16.msra.mxu0 0
        %1807 = vmatpush.bf16.msra.mxu0 0
        %1808 = vmatpush.bf16.msra.mxu0 0
        %1809 = vmatpush.bf16.msra.mxu0 0
        %1810 = vmatpush.bf16.msra.mxu0 %v1801
        %1811 = vmatpush.bf16.msra.mxu0 %v1800
        %1812 = vmatmul.bf16.gmra.mxu0 %v1077
        %v1813 = vpop.f32.mrf.mxu0
        %v1814 = vadd.f32 0.0, %v1813
        %v1815 = vpop.f32.mrf.mxu0
        %1816 = vdwg.mxu0
        %v1818 = vrot.slane %v1814, 1
        %v1820 = vadd.f32 %v1791, %v1818
        %v1821 = vxor.u32 %v1820, 2147483648
        %v1822 = vmul.f32 %v1821, 1.442695
        %v1823 = vpow.pop %v1822
        %v1824 = vadd.f32 %v1823, 1.0
        %v1825 = vrcp.pop %v1824
        %v1826 = vmul.f32 %v1824, %v1825
        %v1827 = vsub.f32 1.0, %v1826
        %v1828 = vmul.f32 %v1825, %v1827
        %v1829 = vadd.f32 %v1825, %v1828
        %vm1830 = vweird.f32 %v1824
        %vm1831 = vweird.f32 %v1825
        %vm1832 = vmor %vm1830, %vm1831
        %v1833 = vsel %vm1832, %v1825, %v1829
        %v1834 = vand.u32 2147483647, %v1824
        %vm1835 = vcmp.eq.f32.partialorder %v1834, 8.507059e+37
        %v1836 = vand.u32 %v1824, 2147483648
        %v1837 = vor.u32 1.1754944e-38, %v1836
        %v1838 = vsel %vm1835, %v1837, %v1833
        %v1839 = vmul.f32 1.0, %v1838
        %v1841 = vperm.slane %v1787, 0
        %1842 = vrot.lane.b32.xlu0 %v1841, 64
        %v1843 = vpop.permute.xlu0 %1842
        %v1845 = vadd.f32 %v1814, %v1843
        %v1847 = vrot.slane %v1845, 1
        %1848 = vrot.lane.b32.xlu0 %v1847, 64
        %v1849 = vpop.permute.xlu0 %1848
        %v1851 = vmul.f32 %v1839, %v1849
        %1853 = vrot.lane.b32.xlu0 %v1851, 64
        %v1854 = vpop.permute.xlu0 %1853
        %v1856 = vadd.f32 %v1791, %v1854
        %v1857 = vtanh.pop %v1856
        %v1858 = vsub.f32 1.0, %v1839
        %1860 = vrot.lane.b32.xlu0 %v1857, 96
        %v1861 = vpop.permute.xlu0 %1860
        %v1863 = vmul.f32 %v1858, %v1861
        %v1864 = vmul.f32 %v1839, 0.0
        %v1865 = vadd.f32 %v1863, %v1864
        %v1866 = vrot.slane %v1780, 3
        %v1868 = vsel %vm1017, %v1780, %v1866
        %v1869 = vpack.c.bf16 %v1865, %v1865
        %v1871 = vshrl.u32 %v1869, 16
        %v1873 = vrot.slane %v1871, 3
        %1874 = vrot.lane.b32.xlu0 %v1873, 96
        %v1875 = vpop.permute.xlu0 %1874
        %v1877 = vsel %vm711, %v1875, 0
        %1879 = vmatpush.bf16.msra.mxu0 0
        %1880 = vmatpush.bf16.msra.mxu0 0
        %1881 = vmatpush.bf16.msra.mxu0 0
        %1882 = vmatpush.bf16.msra.mxu0 0
        %1883 = vmatpush.bf16.msra.mxu0 0
        %1884 = vmatpush.bf16.msra.mxu0 0
        %1885 = vmatpush.bf16.msra.mxu0 %v1801
        %1886 = vmatpush.bf16.msra.mxu0 %v1800
        %1887 = vmatmul.bf16.gmra.mxu0 %v1877
        %v1888 = vpop.f32.mrf.mxu0
        %v1889 = vadd.f32 0.0, %v1888
        %v1890 = vpop.f32.mrf.mxu0
        %1891 = vdwg.mxu0
        %v1893 = vrot.slane %v1889, 2
        %v1895 = vadd.f32 %v1868, %v1893
        %v1896 = vxor.u32 %v1895, 2147483648
        %v1897 = vmul.f32 %v1896, 1.442695
        %v1898 = vpow.pop %v1897
        %v1899 = vadd.f32 %v1898, 1.0
        %v1900 = vrcp.pop %v1899
        %v1901 = vmul.f32 %v1899, %v1900
        %v1902 = vsub.f32 1.0, %v1901
        %v1903 = vmul.f32 %v1900, %v1902
        %v1904 = vadd.f32 %v1900, %v1903
        %vm1905 = vweird.f32 %v1899
        %vm1906 = vweird.f32 %v1900
        %vm1907 = vmor %vm1905, %vm1906
        %v1908 = vsel %vm1907, %v1900, %v1904
        %v1909 = vand.u32 2147483647, %v1899
        %vm1910 = vcmp.eq.f32.partialorder %v1909, 8.507059e+37
        %v1911 = vand.u32 %v1899, 2147483648
        %v1912 = vor.u32 1.1754944e-38, %v1911
        %v1913 = vsel %vm1910, %v1912, %v1908
        %v1914 = vmul.f32 1.0, %v1913
        %v1915 = vadd.f32 %v1889, %v1843
        %v1917 = vrot.slane %v1915, 2
        %1918 = vrot.lane.b32.xlu0 %v1917, 64
        %v1919 = vpop.permute.xlu0 %1918
        %v1921 = vmul.f32 %v1914, %v1919
        %1923 = vrot.lane.b32.xlu0 %v1921, 64
        %v1924 = vpop.permute.xlu0 %1923
        %v1926 = vadd.f32 %v1868, %v1924
        %v1927 = vtanh.pop %v1926
        %v1928 = vsub.f32 1.0, %v1914
        %1930 = vrot.lane.b32.xlu0 %v1927, 96
        %v1931 = vpop.permute.xlu0 %1930
        %v1933 = vmul.f32 %v1928, %v1931
        %v1935 = vrot.slane %v1865, 1
        %v1937 = vmul.f32 %v1914, %v1935
        %v1938 = vadd.f32 %v1933, %v1937
        %v1939 = vrot.slane %v1780, 5
        %v1941 = vsel %vm1017, %v1780, %v1939
        %v1942 = vpack.c.bf16 %v1938, %v1938
        %v1944 = vrot.slane %v1942, 3
        %1945 = vrot.lane.b32.xlu0 %v1944, 96
        %v1946 = vpop.permute.xlu0 %1945
        %v1948 = vsel %vm711, %v1946, 0
        %1950 = vmatpush.bf16.msra.mxu0 0
        %1951 = vmatpush.bf16.msra.mxu0 0
        %1952 = vmatpush.bf16.msra.mxu0 0
        %1953 = vmatpush.bf16.msra.mxu0 0
        %1954 = vmatpush.bf16.msra.mxu0 0
        %1955 = vmatpush.bf16.msra.mxu0 0
        %1956 = vmatpush.bf16.msra.mxu0 %v1801
        %1957 = vmatpush.bf16.msra.mxu0 %v1800
        %1958 = vmatmul.bf16.gmra.mxu0 %v1948
        %v1959 = vpop.f32.mrf.mxu0
        %v1960 = vadd.f32 0.0, %v1959
        %v1961 = vpop.f32.mrf.mxu0
        %1962 = vdwg.mxu0
        %v1964 = vrot.slane %v1960, 3
        %v1966 = vadd.f32 %v1941, %v1964
        %v1967 = vxor.u32 %v1966, 2147483648
        %v1968 = vmul.f32 %v1967, 1.442695
        %v1969 = vpow.pop %v1968
        %v1970 = vadd.f32 %v1969, 1.0
        %v1971 = vrcp.pop %v1970
        %v1972 = vmul.f32 %v1970, %v1971
        %v1973 = vsub.f32 1.0, %v1972
        %v1974 = vmul.f32 %v1971, %v1973
        %v1975 = vadd.f32 %v1971, %v1974
        %vm1976 = vweird.f32 %v1970
        %vm1977 = vweird.f32 %v1971
        %vm1978 = vmor %vm1976, %vm1977
        %v1979 = vsel %vm1978, %v1971, %v1975
        %v1980 = vand.u32 2147483647, %v1970
        %vm1981 = vcmp.eq.f32.partialorder %v1980, 8.507059e+37
        %v1982 = vand.u32 %v1970, 2147483648
        %v1983 = vor.u32 1.1754944e-38, %v1982
        %v1984 = vsel %vm1981, %v1983, %v1979
        %v1985 = vmul.f32 1.0, %v1984
        %v1986 = vadd.f32 %v1960, %v1843
        %v1988 = vrot.slane %v1986, 3
        %1989 = vrot.lane.b32.xlu0 %v1988, 64
        %v1990 = vpop.permute.xlu0 %1989
        %v1992 = vmul.f32 %v1985, %v1990
        %1994 = vrot.lane.b32.xlu0 %v1992, 64
        %v1995 = vpop.permute.xlu0 %1994
        %v1997 = vadd.f32 %v1941, %v1995
        %v1998 = vtanh.pop %v1997
        %v1999 = vsub.f32 1.0, %v1985
        %2001 = vrot.lane.b32.xlu0 %v1998, 96
        %v2002 = vpop.permute.xlu0 %2001
        %v2004 = vmul.f32 %v1999, %v2002
        %v2006 = vrot.slane %v1938, 1
        %v2008 = vmul.f32 %v1985, %v2006
        %v2009 = vadd.f32 %v2004, %v2008
        %v2010 = vrot.slane %v1780, 7
        %v2012 = vsel %vm1017, %v1780, %v2010
        %v2013 = vpack.c.bf16 %v2009, %v2009
        %v2015 = vshrl.u32 %v2013, 16
        %v2017 = vrot.slane %v2015, 2
        %2018 = vrot.lane.b32.xlu0 %v2017, 96
        %v2019 = vpop.permute.xlu0 %2018
        %v2021 = vsel %vm711, %v2019, 0
        %2023 = vmatpush.bf16.msra.mxu0 0
        %2024 = vmatpush.bf16.msra.mxu0 0
        %2025 = vmatpush.bf16.msra.mxu0 0
        %2026 = vmatpush.bf16.msra.mxu0 0
        %2027 = vmatpush.bf16.msra.mxu0 0
        %2028 = vmatpush.bf16.msra.mxu0 0
        %2029 = vmatpush.bf16.msra.mxu0 %v1801
        %2030 = vmatpush.bf16.msra.mxu0 %v1800
        %2031 = vmatmul.bf16.gmra.mxu0 %v2021
        %v2032 = vpop.f32.mrf.mxu0
        %v2033 = vadd.f32 0.0, %v2032
        %v2034 = vpop.f32.mrf.mxu0
        %2035 = vdwg.mxu0
        %v2037 = vrot.slane %v2033, 4
        %v2039 = vadd.f32 %v2012, %v2037
        %v2040 = vxor.u32 %v2039, 2147483648
        %v2041 = vmul.f32 %v2040, 1.442695
        %v2042 = vpow.pop %v2041
        %v2043 = vadd.f32 %v2042, 1.0
        %v2044 = vrcp.pop %v2043
        %v2045 = vmul.f32 %v2043, %v2044
        %v2046 = vsub.f32 1.0, %v2045
        %v2047 = vmul.f32 %v2044, %v2046
        %v2048 = vadd.f32 %v2044, %v2047
        %vm2049 = vweird.f32 %v2043
        %vm2050 = vweird.f32 %v2044
        %vm2051 = vmor %vm2049, %vm2050
        %v2052 = vsel %vm2051, %v2044, %v2048
        %v2053 = vand.u32 2147483647, %v2043
        %vm2054 = vcmp.eq.f32.partialorder %v2053, 8.507059e+37
        %v2055 = vand.u32 %v2043, 2147483648
        %v2056 = vor.u32 1.1754944e-38, %v2055
        %v2057 = vsel %vm2054, %v2056, %v2052
        %v2058 = vmul.f32 1.0, %v2057
        %v2059 = vadd.f32 %v2033, %v1843
        %v2061 = vrot.slane %v2059, 4
        %2062 = vrot.lane.b32.xlu0 %v2061, 64
        %v2063 = vpop.permute.xlu0 %2062
        %v2065 = vmul.f32 %v2058, %v2063
        %2067 = vrot.lane.b32.xlu0 %v2065, 64
        %v2068 = vpop.permute.xlu0 %2067
        %v2070 = vadd.f32 %v2012, %v2068
        %v2071 = vtanh.pop %v2070
        %v2072 = vsub.f32 1.0, %v2058
        %2074 = vrot.lane.b32.xlu0 %v2071, 96
        %v2075 = vpop.permute.xlu0 %2074
        %v2077 = vmul.f32 %v2072, %v2075
        %v2079 = vrot.slane %v2009, 1
        %v2081 = vmul.f32 %v2058, %v2079
        %v2082 = vadd.f32 %v2077, %v2081
        %v2083 = vpack.c.bf16 %v2082, %v2082
        %v2085 = vrot.slane %v2083, 2
        %2086 = vrot.lane.b32.xlu0 %v2085, 96
        %v2087 = vpop.permute.xlu0 %2086
        %v2089 = vsel %vm711, %v2087, 0
        %2091 = vmatpush.bf16.msra.mxu0 0
        %2092 = vmatpush.bf16.msra.mxu0 0
        %2093 = vmatpush.bf16.msra.mxu0 0
        %2094 = vmatpush.bf16.msra.mxu0 0
        %2095 = vmatpush.bf16.msra.mxu0 0
        %2096 = vmatpush.bf16.msra.mxu0 0
        %2097 = vmatpush.bf16.msra.mxu0 %v1801
        %2098 = vmatpush.bf16.msra.mxu0 %v1800
        %2099 = vmatmul.bf16.gmra.mxu0 %v2089
        %v2100 = vpop.f32.mrf.mxu0
        %v2101 = vadd.f32 0.0, %v2100
        %v2102 = vpop.f32.mrf.mxu0
        %2103 = vdwg.mxu0
        %v2105 = vrot.slane %v2101, 5
        %v2107 = vadd.f32 %v1791, %v2105
        %v2108 = vxor.u32 %v2107, 2147483648
        %v2109 = vmul.f32 %v2108, 1.442695
        %v2110 = vpow.pop %v2109
        %v2111 = vadd.f32 %v2110, 1.0
        %v2112 = vrcp.pop %v2111
        %v2113 = vmul.f32 %v2111, %v2112
        %v2114 = vsub.f32 1.0, %v2113
        %v2115 = vmul.f32 %v2112, %v2114
        %v2116 = vadd.f32 %v2112, %v2115
        %vm2117 = vweird.f32 %v2111
        %vm2118 = vweird.f32 %v2112
        %vm2119 = vmor %vm2117, %vm2118
        %v2120 = vsel %vm2119, %v2112, %v2116
        %v2121 = vand.u32 2147483647, %v2111
        %vm2122 = vcmp.eq.f32.partialorder %v2121, 8.507059e+37
        %v2123 = vand.u32 %v2111, 2147483648
        %v2124 = vor.u32 1.1754944e-38, %v2123
        %v2125 = vsel %vm2122, %v2124, %v2120
        %v2126 = vmul.f32 1.0, %v2125
        %v2127 = vadd.f32 %v2101, %v1843
        %v2129 = vrot.slane %v2127, 5
        %2130 = vrot.lane.b32.xlu0 %v2129, 64
        %v2131 = vpop.permute.xlu0 %2130
        %v2133 = vmul.f32 %v2126, %v2131
        %2135 = vrot.lane.b32.xlu0 %v2133, 64
        %v2136 = vpop.permute.xlu0 %2135
        %v2138 = vadd.f32 %v1791, %v2136
        %v2139 = vtanh.pop %v2138
        %v2140 = vsub.f32 1.0, %v2126
        %2142 = vrot.lane.b32.xlu0 %v2139, 96
        %v2143 = vpop.permute.xlu0 %2142
        %v2145 = vmul.f32 %v2140, %v2143
        %v2147 = vrot.slane %v2082, 1
        %v2149 = vmul.f32 %v2126, %v2147
        %v2150 = vadd.f32 %v2145, %v2149
        %v2151 = vpack.c.bf16 %v2150, %v2150
        %v2153 = vshrl.u32 %v2151, 16
        %v2155 = vrot.slane %v2153, 1
        %2156 = vrot.lane.b32.xlu0 %v2155, 96
        %v2157 = vpop.permute.xlu0 %2156
        %v2159 = vsel %vm711, %v2157, 0
        %2161 = vmatpush.bf16.msra.mxu0 0
        %2162 = vmatpush.bf16.msra.mxu0 0
        %2163 = vmatpush.bf16.msra.mxu0 0
        %2164 = vmatpush.bf16.msra.mxu0 0
        %2165 = vmatpush.bf16.msra.mxu0 0
        %2166 = vmatpush.bf16.msra.mxu0 0
        %2167 = vmatpush.bf16.msra.mxu0 %v1801
        %2168 = vmatpush.bf16.msra.mxu0 %v1800
        %2169 = vmatmul.bf16.gmra.mxu0 %v2159
        %v2170 = vpop.f32.mrf.mxu0
        %v2171 = vadd.f32 0.0, %v2170
        %v2172 = vpop.f32.mrf.mxu0
        %2173 = vdwg.mxu0
        %v2175 = vrot.slane %v2171, 6
        %v2177 = vadd.f32 %v1868, %v2175
        %v2178 = vxor.u32 %v2177, 2147483648
        %v2179 = vmul.f32 %v2178, 1.442695
        %v2180 = vpow.pop %v2179
        %v2181 = vadd.f32 %v2180, 1.0
        %v2182 = vrcp.pop %v2181
        %v2183 = vmul.f32 %v2181, %v2182
        %v2184 = vsub.f32 1.0, %v2183
        %v2185 = vmul.f32 %v2182, %v2184
        %v2186 = vadd.f32 %v2182, %v2185
        %vm2187 = vweird.f32 %v2181
        %vm2188 = vweird.f32 %v2182
        %vm2189 = vmor %vm2187, %vm2188
        %v2190 = vsel %vm2189, %v2182, %v2186
        %v2191 = vand.u32 2147483647, %v2181
        %vm2192 = vcmp.eq.f32.partialorder %v2191, 8.507059e+37
        %v2193 = vand.u32 %v2181, 2147483648
        %v2194 = vor.u32 1.1754944e-38, %v2193
        %v2195 = vsel %vm2192, %v2194, %v2190
        %v2196 = vmul.f32 1.0, %v2195
        %v2197 = vadd.f32 %v2171, %v1843
        %v2199 = vrot.slane %v2197, 6
        %2200 = vrot.lane.b32.xlu0 %v2199, 64
        %v2201 = vpop.permute.xlu0 %2200
        %v2203 = vmul.f32 %v2196, %v2201
        %2205 = vrot.lane.b32.xlu0 %v2203, 64
        %v2206 = vpop.permute.xlu0 %2205
        %v2208 = vadd.f32 %v1868, %v2206
        %v2209 = vtanh.pop %v2208
        %v2210 = vsub.f32 1.0, %v2196
        %2212 = vrot.lane.b32.xlu0 %v2209, 96
        %v2213 = vpop.permute.xlu0 %2212
        %v2215 = vmul.f32 %v2210, %v2213
        %v2217 = vrot.slane %v2150, 1
        %v2219 = vmul.f32 %v2196, %v2217
        %v2220 = vadd.f32 %v2215, %v2219
        %v2221 = vpack.c.bf16 %v2220, %v2220
        %v2223 = vrot.slane %v2221, 1
        %2224 = vrot.lane.b32.xlu0 %v2223, 96
        %v2225 = vpop.permute.xlu0 %2224
        %v2227 = vsel %vm711, %v2225, 0
        %2229 = vmatpush.bf16.msra.mxu0 0
        %2230 = vmatpush.bf16.msra.mxu0 0
        %2231 = vmatpush.bf16.msra.mxu0 0
        %2232 = vmatpush.bf16.msra.mxu0 0
        %2233 = vmatpush.bf16.msra.mxu0 0
        %2234 = vmatpush.bf16.msra.mxu0 0
        %2235 = vmatpush.bf16.msra.mxu0 %v1801
        %2236 = vmatpush.bf16.msra.mxu0 %v1800
        %2237 = vmatmul.bf16.gmra.mxu0 %v2227
        %v2238 = vpop.f32.mrf.mxu0
        %v2239 = vadd.f32 0.0, %v2238
        %v2240 = vpop.f32.mrf.mxu0
        %2241 = vdwg.mxu0
        %v2243 = vrot.slane %v2239, 7
        %v2245 = vadd.f32 %v1941, %v2243
        %v2246 = vxor.u32 %v2245, 2147483648
        %v2247 = vmul.f32 %v2246, 1.442695
        %v2248 = vpow.pop %v2247
        %v2249 = vadd.f32 %v2248, 1.0
        %v2250 = vrcp.pop %v2249
        %v2251 = vmul.f32 %v2249, %v2250
        %v2252 = vsub.f32 1.0, %v2251
        %v2253 = vmul.f32 %v2250, %v2252
        %v2254 = vadd.f32 %v2250, %v2253
        %vm2255 = vweird.f32 %v2249
        %vm2256 = vweird.f32 %v2250
        %vm2257 = vmor %vm2255, %vm2256
        %v2258 = vsel %vm2257, %v2250, %v2254
        %v2259 = vand.u32 2147483647, %v2249
        %vm2260 = vcmp.eq.f32.partialorder %v2259, 8.507059e+37
        %v2261 = vand.u32 %v2249, 2147483648
        %v2262 = vor.u32 1.1754944e-38, %v2261
        %v2263 = vsel %vm2260, %v2262, %v2258
        %v2264 = vmul.f32 1.0, %v2263
        %v2265 = vadd.f32 %v2239, %v1843
        %v2267 = vrot.slane %v2265, 7
        %2268 = vrot.lane.b32.xlu0 %v2267, 64
        %v2269 = vpop.permute.xlu0 %2268
        %v2271 = vmul.f32 %v2264, %v2269
        %2273 = vrot.lane.b32.xlu0 %v2271, 64
        %v2274 = vpop.permute.xlu0 %2273
        %v2276 = vadd.f32 %v1941, %v2274
        %v2277 = vtanh.pop %v2276
        %v2278 = vsub.f32 1.0, %v2264
        %2280 = vrot.lane.b32.xlu0 %v2277, 96
        %v2281 = vpop.permute.xlu0 %2280
        %v2283 = vmul.f32 %v2278, %v2281
        %v2285 = vrot.slane %v2220, 1
        %v2287 = vmul.f32 %v2264, %v2285
        %v2288 = vadd.f32 %v2283, %v2287
        %v2289 = vpack.c.bf16 %v2288, %v2288
        %v2291 = vshrl.u32 %v2289, 16
        %2293 = vrot.lane.b32.xlu0 %v2291, 96
        %v2294 = vpop.permute.xlu0 %2293
        %v2296 = vsel %vm711, %v2294, 0
        %2298 = vmatpush.bf16.msra.mxu0 0
        %2299 = vmatpush.bf16.msra.mxu0 0
        %2300 = vmatpush.bf16.msra.mxu0 0
        %2301 = vmatpush.bf16.msra.mxu0 0
        %2302 = vmatpush.bf16.msra.mxu0 0
        %2303 = vmatpush.bf16.msra.mxu0 0
        %2304 = vmatpush.bf16.msra.mxu0 %v1801
        %2305 = vmatpush.bf16.msra.mxu0 %v1800
        %2306 = vmatmul.bf16.gmra.mxu0 %v2296
        %v2307 = vpop.f32.mrf.mxu0
        %v2308 = vadd.f32 0.0, %v2307
        %v2309 = vpop.f32.mrf.mxu0
        %2310 = vdwg.mxu0
        %v2311 = vadd.f32 %v2012, %v2308
        %v2312 = vxor.u32 %v2311, 2147483648
        %v2313 = vmul.f32 %v2312, 1.442695
        %v2314 = vpow.pop %v2313
        %v2315 = vadd.f32 %v2314, 1.0
        %v2316 = vrcp.pop %v2315
        %v2317 = vmul.f32 %v2315, %v2316
        %v2318 = vsub.f32 1.0, %v2317
        %v2319 = vmul.f32 %v2316, %v2318
        %v2320 = vadd.f32 %v2316, %v2319
        %vm2321 = vweird.f32 %v2315
        %vm2322 = vweird.f32 %v2316
        %vm2323 = vmor %vm2321, %vm2322
        %v2324 = vsel %vm2323, %v2316, %v2320
        %v2325 = vand.u32 2147483647, %v2315
        %vm2326 = vcmp.eq.f32.partialorder %v2325, 8.507059e+37
        %v2327 = vand.u32 %v2315, 2147483648
        %v2328 = vor.u32 1.1754944e-38, %v2327
        %v2329 = vsel %vm2326, %v2328, %v2324
        %v2330 = vmul.f32 1.0, %v2329
        %v2331 = vadd.f32 %v2308, %v1843
        %2333 = vrot.lane.b32.xlu0 %v2331, 64
        %v2334 = vpop.permute.xlu0 %2333
        %v2336 = vmul.f32 %v2330, %v2334
        %2338 = vrot.lane.b32.xlu0 %v2336, 64
        %v2339 = vpop.permute.xlu0 %2338
        %v2341 = vadd.f32 %v2012, %v2339
        %v2342 = vtanh.pop %v2341
        %v2343 = vsub.f32 1.0, %v2330
        %2345 = vrot.lane.b32.xlu0 %v2342, 96
        %v2346 = vpop.permute.xlu0 %2345
        %v2348 = vmul.f32 %v2343, %v2346
        %v2350 = vrot.slane %v2288, 1
        %v2352 = vmul.f32 %v2330, %v2350
        %v2353 = vadd.f32 %v2348, %v2352
        %v2354 = vpack.c.bf16 %v2353, %v2353
        %v2355 = vld [vmem:[%s20] sm:$0xf]
        %v2356 = vld [vmem:[%s20 + $0x4] sm:$0xf]
        %v2357 = vld [vmem:[%s20 + $0x8] sm:$0xf]
        %v2358 = vld [vmem:[%s20 + $0xc] sm:$0xf]
        %v2359 = vld [vmem:[%s21] sm:$0x1]
        %2361 = vrot.lane.b32.xlu0 %v2354, 96
        %v2362 = vpop.permute.xlu0 %2361
        %v2367 = vunpack.c.l.b16 %v2355
        %v2368 = vunpack.c.l.b16 %v2356
        %v2369 = vunpack.c.l.b16 %v2357
        %v2370 = vunpack.c.l.b16 %v2358
        %v2371 = vpack.c.b16 %v2368, %v2367
        %v2372 = vpack.c.b16 %v2370, %v2369
        %v2376 = vsel %vm711, %v2362, 0
        %2378 = vmatpush.bf16.msra.mxu0 0
        %2379 = vmatpush.bf16.msra.mxu0 0
        %2380 = vmatpush.bf16.msra.mxu0 0
        %2381 = vmatpush.bf16.msra.mxu0 0
        %2382 = vmatpush.bf16.msra.mxu0 0
        %2383 = vmatpush.bf16.msra.mxu0 0
        %2384 = vmatpush.bf16.msra.mxu0 %v2372
        %2385 = vmatpush.bf16.msra.mxu0 %v2371
        %2386 = vmatmul.bf16.gmra.mxu0 %v2376
        %v2387 = vpop.f32.mrf.mxu0
        %v2388 = vadd.f32 %v2359, %v2387
        %v2389 = vpop.f32.mrf.mxu0
        %2390 = vdwg.mxu0
        %vm2391 = vcmask 16384
        %2392 = vst.msk [vmem:[%s684] sm:$0x1] %vm2391, %v2388
        %s2393 = sand.u32 %s516, 1
        %s2394 = scalar_lea.sflag [#allocation4], %s2393
        %s2395 = sand.u32 %s516, 1
        %s2396 = scalar_lea.vmem [#allocation3], %s2395
        // Predicated region
        $region109: #{bert_classifier_forward.1} parent=107 // pred_check
          %p2397 = pneg %p526
        $region110: #{bert_classifier_forward.1} parent=107 // pred_check_branch
          %2399 = sbr.rel (%p2397) target = $region112
        $region111: #{bert_classifier_forward.1} parent=107 // pred_region
          %2401 = vsyncadd %s2394, 0
          %s2402 = scalar_lea.hbm %s22, %s36
          %s2404 = sshll.u32 %s2396, 4
          %s2405 = int_to_ptr.vmem [resolvable:$true] %s2404
          %s2406 = sshll.u32 %s2402, 4
          %s2407 = int_to_ptr.hbm [resolvable:$true] %s2406
          %2409 = dma.vmem_to_hbm [thread:$0]  %s2405, 16, %s2407, %s2394
        $region112: #{bert_classifier_forward.1} parent=107 // pred_fallthru
          _
      $region108: #{bert_classifier_forward.1} parent=5 // pred_fallthru
        _
      %p2410 = scmp.le.s32.totalorder 2, %s31
      // Predicated region
      $region113: #{bert_classifier_forward.1} parent=5 // pred_check
        %p2411 = pneg %p2410
      $region114: #{bert_classifier_forward.1} parent=5 // pred_check_branch
        %2413 = sbr.rel (%p2411) target = $region116
      $region115: #{bert_classifier_forward.1} parent=5 // pred_region
        %s2414 = ssub.s32 %s31, 2
        // Predicated region
        $region117: #{bert_classifier_forward.1} parent=115 // pred_check
          %p2415 = pneg %p532
        $region118: #{bert_classifier_forward.1} parent=115 // pred_check_branch
          %2417 = sbr.rel (%p2415) target = $region120
        $region119: #{bert_classifier_forward.1} parent=115 // pred_region
          %s2418 = sand.u32 %s517, 1
          %s2419 = scalar_lea.sflag [#allocation4], %s2418
          %s2420 = sand.u32 %s517, 1
          %s2421 = scalar_lea.vmem [#allocation3], %s2420
          %2423 = dma.done %s2419, 16
        $region120: #{bert_classifier_forward.1} parent=115 // pred_fallthru
          _
      $region116: #{bert_classifier_forward.1} parent=5 // pred_fallthru
        _
    $region6: #{bert_classifier_forward.1} parent=1 // loop_footer
      %s35 = sadd.s32 1, %s31
    $region7: #{bert_classifier_forward.1} parent=1 // loop_footer_branch
      %30 = sbr.rel target = $region3
    $region8: #{bert_classifier_forward.1} parent=1 // loop_exit
      _
    %2424 = vsyncpa [#allocation4], 1
    %s2425 = scalar_lea.sflag [#allocation4], 1
    %2426 = vsyncpa %s2425, 1

</llo_original>
